<compile_context>
chip_gen: v6e
topology: v6e:2x2x1
jax: 0.10.0
libtpu: 0.0.40
codegen_flags: <defaults>
</compile_context>

<pallas_src>
import functools
import math

import jax
import jax.numpy as jnp
import numpy as np
from jax.experimental import pallas as pl
from jax.experimental.pallas import tpu as pltpu  # noqa: F401  (kept for TPU-specific tuning hooks)

# ----------------------------- configuration --------------------------------
D_MODEL = 32
NHEAD = 4
DK = D_MODEL // NHEAD
NUM_LAYERS = 2
DIM_FF = 64
BATCH = 4
SEQ = 8
MAX_LEN = 64
LN_EPS = 1e-5

PROJ_W = 2 * D_MODEL + NHEAD * D_MODEL      # fused [Q | K | X@(Wv_h Wo_h) per head] width (192)
HEAD_HID = 3 * (D_MODEL // 2)               # fused cls/vol/trd hidden width (48)
HEAD_OUT = 4 + 1 + 1                        # fused head output width (6)
NEG_INF = np.float32(-1e30)


# ----------------------------- slab helpers ----------------------------------
def pack_slab(entries):
    """Concatenate (name, 2D array) entries row-wise into one f32 slab.

    Returns (slab, layout) with layout[name] = (row_offset, n_rows, n_cols); the
    placement and the layout come from the same list, so kernel slices can't drift.
    """
    arrs = [(name, jnp.asarray(a, jnp.float32)) for name, a in entries]
    width = max(a.shape[1] for _, a in arrs)
    layout = {}
    padded = []
    row = 0
    for name, a in arrs:
        nr, nc = a.shape
        layout[name] = (row, nr, nc)
        if nc < width:
            a = jnp.pad(a, ((0, 0), (0, width - nc)))
        padded.append(a)
        row += nr
    return jnp.concatenate(padded, axis=0), layout


def _slab(ref, layout, name):
    r, nr, nc = layout[name]
    return ref[r:r + nr, 0:nc]


# ----------------------------- fused Pallas kernel ---------------------------
def fused_forward_kernel(src_ref, wide_ref, narrow_ref,
                         enh_ref, attnw_ref, heads_ref,
                         *, wide_layout, narrow_layout, nhead, num_layers):
    B, S, D = src_ref.shape
    T = B * S
    dk = D // nhead

    wget = functools.partial(_slab, wide_ref, wide_layout)
    nget = functools.partial(_slab, narrow_ref, narrow_layout)

    def layer_norm(v, g, b):
        m = jnp.mean(v, axis=-1, keepdims=True)
        var = jnp.mean((v - m) ** 2, axis=-1, keepdims=True)
        return (v - m) * jax.lax.rsqrt(var + LN_EPS) * g + b

    def mha(xin, w_proj, b_proj, b_out, mask_bias, want_probs):
        """Multi-head attention on the flat (T, D) token slab.

        Group structure (which tokens attend to which) is encoded in `mask_bias`
        (0 inside the group, -1e30 outside).  The output projection W_o is folded
        into the V projection at pack time, and 1/sqrt(dk) is baked into Q.
        """
        proj = jnp.dot(xin, w_proj, preferred_element_type=jnp.float32) + b_proj
        attn = None
        probs = None
        for h in range(nhead):                       # static, trace-time unrolled
            q_h = proj[:, h * dk:(h + 1) * dk]
            k_h = proj[:, D + h * dk:D + (h + 1) * dk]
            vo_h = proj[:, 2 * D + h * D:2 * D + (h + 1) * D]
            s = jax.lax.dot_general(q_h, k_h, (((1,), (1,)), ((), ())),
                                    preferred_element_type=jnp.float32)   # (T, T)
            s = s + mask_bias
            s = s - jnp.max(s, axis=-1, keepdims=True)
            e = jnp.exp(s)
            p = e * pl.reciprocal(jnp.sum(e, axis=-1, keepdims=True), approx=True)
            if want_probs:
                probs = p if probs is None else probs + p
            ctx = jnp.dot(p, vo_h, preferred_element_type=jnp.float32)    # (T, D)
            attn = ctx if attn is None else attn + ctx
        return attn + b_out, probs

    # static masks / pooling matrices (packed constants)
    enc_mask = nget("enc_mask")                      # (T, T): same-batch block mask
    reg_mask = nget("reg_mask")                      # (T, T): same-seq-position mask
    g_att = nget("g_att")                            # (T, B): batch-group sum, 1/H baked in
    g_pool = nget("g_pool")                          # (B, T): per-batch mean over S, 1/S baked in

    # positional encoding (broadcast over batch)
    x = src_ref[...] + nget("pe")[None, :, :]        # (B, S, D)
    xf = x.reshape(T, D)                             # flat token slab, row order (b, s)

    # ---- transformer encoder stack (post-norm, matching the reference) ----
    for l in range(num_layers):
        attn, _ = mha(xf, wget(f"enc{l}_wproj"), wget(f"enc{l}_bproj"),
                      nget(f"enc{l}_bout"), enc_mask, want_probs=False)
        y = layer_norm(attn + xf, nget(f"enc{l}_ln1g"), nget(f"enc{l}_ln1b"))
        hid = jnp.maximum(
            jnp.dot(y, nget(f"enc{l}_w1"), preferred_element_type=jnp.float32)
            + nget(f"enc{l}_b1"), 0.0)
        z = jnp.dot(hid, nget(f"enc{l}_w2"), preferred_element_type=jnp.float32) \
            + nget(f"enc{l}_b2")
        xf = layer_norm(z + y, nget(f"enc{l}_ln2g"), nget(f"enc{l}_ln2b"))

    # ---- regime attention: nn.MultiheadAttention with batch_first=False --------
    # The reference feeds a (B, S, D) tensor, so torch attends over the batch axis,
    # independently per sequence position.  Same flat slab, different group mask.
    feat, probs_sum = mha(xf, wget("reg_wproj"), wget("reg_bproj"),
                          nget("reg_bout"), reg_mask, want_probs=True)

    # Head-averaged attention weights: off-group probabilities are exactly zero, so a
    # segment-sum over batch groups (one tiny matmul) recovers weights[(b,s), c].
    psum = jnp.dot(probs_sum, g_att, preferred_element_type=jnp.float32)  # (T, B)
    attnw_ref[...] = psum.reshape(B, S, B)           # wrapper transposes to (S, B, B)

    # ---- enhanced features: x + 0.3 * regime_features -------------------------
    enh_ref[...] = (xf + 0.3 * feat).reshape(B, S, D)

    # ---- mean pooling + fused prediction heads (dropout = identity) -----------
    pooled_f = jnp.dot(g_pool, feat, preferred_element_type=jnp.float32)  # (B, D)
    pooled_x = jnp.dot(g_pool, xf, preferred_element_type=jnp.float32)    # (B, D)
    hid = jnp.maximum(
        jnp.dot(pooled_f, nget("head_w1t"), preferred_element_type=jnp.float32)
        + jnp.dot(pooled_x, nget("head_w1b"), preferred_element_type=jnp.float32)
        + nget("head_b1"), 0.0)                                           # (B, 48)
    heads_ref[...] = jnp.dot(hid, nget("head_w2"),
                             preferred_element_type=jnp.float32) + nget("head_b2")


# ----------------------------- parameters ------------------------------------
def positional_encoding(max_len, d_model):
    position = jnp.arange(max_len, dtype=jnp.float32)[:, None]
    div_term = jnp.exp(jnp.arange(0, d_model, 2, dtype=jnp.float32)
                       * (-math.log(10000.0) / d_model))
    pe = jnp.zeros((max_len, d_model), jnp.float32)
    pe = pe.at[:, 0::2].set(jnp.sin(position * div_term))
    pe = pe.at[:, 1::2].set(jnp.cos(position * div_term))
    return pe


def _xavier(key, fan_in, fan_out):
    limit = math.sqrt(6.0 / (fan_in + fan_out))
    return jax.random.uniform(key, (fan_in, fan_out), jnp.float32, -limit, limit)


def init_params(key):
    keys = iter(jax.random.split(key, 64))

    def lin(fan_in, fan_out):
        return _xavier(next(keys), fan_in, fan_out), jnp.zeros((1, fan_out), jnp.float32)

    layers = []
    for _ in range(NUM_LAYERS):
        p = {}
        p["wq"], p["bq"] = lin(D_MODEL, D_MODEL)
        p["wk"], p["bk"] = lin(D_MODEL, D_MODEL)
        p["wv"], p["bv"] = lin(D_MODEL, D_MODEL)
        p["wo"], p["bo"] = lin(D_MODEL, D_MODEL)
        p["ln1g"] = jnp.ones((1, D_MODEL), jnp.float32)
        p["ln1b"] = jnp.zeros((1, D_MODEL), jnp.float32)
        p["w1"], p["b1"] = lin(D_MODEL, DIM_FF)
        p["w2"], p["b2"] = lin(DIM_FF, D_MODEL)
        p["ln2g"] = jnp.ones((1, D_MODEL), jnp.float32)
        p["ln2b"] = jnp.zeros((1, D_MODEL), jnp.float32)
        layers.append(p)

    regime = {}
    regime["wq"], regime["bq"] = lin(D_MODEL, D_MODEL)
    regime["wk"], regime["bk"] = lin(D_MODEL, D_MODEL)
    regime["wv"], regime["bv"] = lin(D_MODEL, D_MODEL)
    regime["wo"], regime["bo"] = lin(D_MODEL, D_MODEL)

    half = D_MODEL // 2
    heads = {
        "cls": lin(D_MODEL, half) + lin(half, 4),
        "vol": lin(D_MODEL, half) + lin(half, 1),
        "trd": lin(D_MODEL, half) + lin(half, 1),
    }
    return {"pe": positional_encoding(MAX_LEN, D_MODEL), "layers": layers,
            "regime": regime, "heads": heads}


def pack_params(params, batch, seq):
    """Pack all parameters + static masks into two pre-concatenated VMEM slabs."""
    B, S, T = batch, seq, batch * seq
    scale = 1.0 / math.sqrt(DK)

    def attn_pack(p):
        wq, bq = p["wq"] * scale, p["bq"] * scale            # bake 1/sqrt(dk) into Q
        wvo = [p["wv"][:, h * DK:(h + 1) * DK] @ p["wo"][h * DK:(h + 1) * DK, :]
               for h in range(NHEAD)]                        # fold Wo into V per head
        w_proj = jnp.concatenate([wq, p["wk"]] + wvo, axis=1)                 # (D, 192)
        b_proj = jnp.concatenate(
            [bq, p["bk"], jnp.zeros((1, NHEAD * D_MODEL), jnp.float32)], axis=1)
        b_out = p["bo"] + p["bv"] @ p["wo"]                  # folded V-bias (rows of P sum to 1)
        return w_proj, b_proj, b_out

    # --- wide slab: fused QKVO projections (+ their biases) ---
    wide_w, wide_b, bouts = [], [], []
    for l, p in enumerate(params["layers"]):
        w_proj, b_proj, b_out = attn_pack(p)
        wide_w.append((f"enc{l}_wproj", w_proj))
        wide_b.append((f"enc{l}_bproj", b_proj))
        bouts.append(b_out)
    rw, rb, rbo = attn_pack(params["regime"])
    wide_w.append(("reg_wproj", rw))
    wide_b.append(("reg_bproj", rb))
    wide_entries = wide_w + wide_b

    # --- static group masks / pooling matrices (token order is (b, s)) ---
    t_idx = np.arange(T)
    b_id = t_idx // S
    s_id = t_idx - b_id * S
    enc_mask = np.where(b_id[:, None] == b_id[None, :], np.float32(0.0), NEG_INF
                        ).astype(np.float32)
    reg_mask = np.where(s_id[:, None] == s_id[None, :], np.float32(0.0), NEG_INF
                        ).astype(np.float32)
    g_att = (b_id[:, None] == np.arange(B)[None, :]).astype(np.float32) / NHEAD   # (T, B)
    g_pool = (np.arange(B)[:, None] == b_id[None, :]).astype(np.float32) / S      # (B, T)

    # --- fused prediction heads (block-structured weights) ---
    half = D_MODEL // 2
    cw1, cb1, cw2, cb2 = params["heads"]["cls"]
    vw1, vb1, vw2, vb2 = params["heads"]["vol"]
    tw1, tb1, tw2, tb2 = params["heads"]["trd"]
    head_w1t = jnp.concatenate([cw1, jnp.zeros((D_MODEL, 2 * half), jnp.float32)], axis=1)
    head_w1b = jnp.concatenate([jnp.zeros((D_MODEL, half), jnp.float32), vw1, tw1], axis=1)
    head_w2 = jnp.zeros((HEAD_HID, HEAD_OUT), jnp.float32)
    head_w2 = head_w2.at[0:half, 0:4].set(cw2)
    head_w2 = head_w2.at[half:2 * half, 4:5].set(vw2)
    head_w2 = head_w2.at[2 * half:3 * half, 5:6].set(tw2)
    head_b1 = jnp.concatenate([cb1, vb1, tb1], axis=1)       # (1, 48)
    head_b2 = jnp.concatenate([cb2, vb2, tb2], axis=1)       # (1, 6)

    pe = params["pe"][:S]                                    # (S, D)

    # --- narrow slab: FFN / head weights, masks, PE, and all row-vector params ---
    narrow_entries = []
    for l, p in enumerate(params["layers"]):
        narrow_entries += [(f"enc{l}_w1", p["w1"]), (f"enc{l}_w2", p["w2"])]
    narrow_entries += [("head_w1t", head_w1t), ("head_w1b", head_w1b), ("head_w2", head_w2),
                       ("enc_mask", enc_mask), ("reg_mask", reg_mask),
                       ("g_att", g_att), ("pe", pe), ("g_pool", g_pool)]
    for l, p in enumerate(params["layers"]):
        narrow_entries += [(f"enc{l}_bout", bouts[l]),
                           (f"enc{l}_ln1g", p["ln1g"]), (f"enc{l}_ln1b", p["ln1b"]),
                           (f"enc{l}_b1", p["b1"]), (f"enc{l}_b2", p["b2"]),
                           (f"enc{l}_ln2g", p["ln2g"]), (f"enc{l}_ln2b", p["ln2b"])]
    narrow_entries += [("reg_bout", rbo), ("head_b1", head_b1), ("head_b2", head_b2)]

    wide_slab, wide_layout = pack_slab(wide_entries)
    narrow_slab, narrow_layout = pack_slab(narrow_entries)
    return {"wide": wide_slab, "wide_layout": wide_layout,
            "narrow": narrow_slab, "narrow_layout": narrow_layout,
            "batch": B, "seq": S}


# ----------------------------- wrapper ---------------------------------------
def transformer_attention_forward(src, packed, nhead=NHEAD, num_layers=NUM_LAYERS):
    """src: (B, S, D) float32 -> (enhanced_features, dict of outputs)."""
    # TODO(synk): src_mask is not supported (reference is exercised with mask=None).
    B, S, D = src.shape
    assert (B, S) == (packed["batch"], packed["seq"])

    kernel = functools.partial(fused_forward_kernel,
                               wide_layout=packed["wide_layout"],
                               narrow_layout=packed["narrow_layout"],
                               nhead=nhead, num_layers=num_layers)

    enhanced, attnw_bsb, heads = pl.pallas_call(
        kernel,
        out_shape=(
            jax.ShapeDtypeStruct((B, S, D), jnp.float32),        # enhanced features
            jax.ShapeDtypeStruct((B, S, B), jnp.float32),        # attn weights, (b, s, c)
            jax.ShapeDtypeStruct((B, HEAD_OUT), jnp.float32),    # fused head outputs
        ),
    )(src, packed["wide"], packed["narrow"])

    # Layout plumbing outside the kernel: torch returns (N=S, L=B, L=B).
    attention_weights = jnp.transpose(attnw_bsb, (1, 0, 2))
    return enhanced, {
        "regime_probs": heads[:, 0:4],
        "volatility": heads[:, 4:5],
        "trend_strength": heads[:, 5:6],
        "attention_weights": attention_weights,
    }


# ----------------------------- pure-JAX reference ----------------------------
def reference_forward(src, params, nhead=NHEAD):
    B, S, D = src.shape
    dk = D // nhead
    x = src + params["pe"][:S][None]

    def ln(v, g, b):
        m = v.mean(-1, keepdims=True)
        var = ((v - m) ** 2).mean(-1, keepdims=True)
        return (v - m) * jax.lax.rsqrt(var + LN_EPS) * g + b

    def mha(x_nld, p):
        n, l, _ = x_nld.shape
        q = x_nld @ p["wq"] + p["bq"]
        k = x_nld @ p["wk"] + p["bk"]
        v = x_nld @ p["wv"] + p["bv"]
        q = q.reshape(n, l, nhead, dk).transpose(0, 2, 1, 3)
        k = k.reshape(n, l, nhead, dk).transpose(0, 2, 1, 3)
        v = v.reshape(n, l, nhead, dk).transpose(0, 2, 1, 3)
        s = jnp.einsum('nhqd,nhkd->nhqk', q, k) / math.sqrt(dk)
        p_attn = jax.nn.softmax(s, axis=-1)
        ctx = jnp.einsum('nhqk,nhkd->nhqd', p_attn, v)
        ctx = ctx.transpose(0, 2, 1, 3).reshape(n, l, D)
        return ctx @ p["wo"] + p["bo"], p_attn.mean(axis=1)

    for p in params["layers"]:
        attn, _ = mha(x, p)
        y = ln(attn + x, p["ln1g"], p["ln1b"])
        h = jax.nn.relu(y @ p["w1"] + p["b1"])
        z = h @ p["w2"] + p["b2"]
        x = ln(z + y, p["ln2g"], p["ln2b"])

    xt = jnp.transpose(x, (1, 0, 2))                      # batch_first=False quirk
    feat_t, attn_w = mha(xt, params["regime"])            # (S, B, D), (S, B, B)
    regime_features = jnp.transpose(feat_t, (1, 0, 2))    # (B, S, D)

    def head(v, w1, b1, w2, b2):
        return jax.nn.relu(v @ w1 + b1) @ w2 + b2

    pooled_regime = regime_features.mean(axis=1)
    pooled_x = x.mean(axis=1)
    return x + 0.3 * regime_features, {
        "regime_probs": head(pooled_regime, *params["heads"]["cls"]),
        "volatility": head(pooled_x, *params["heads"]["vol"]),
        "trend_strength": head(pooled_x, *params["heads"]["trd"]),
        "attention_weights": attn_w,
    }


# ----------------------------------- main ------------------------------------
if __name__ == "__main__":
    key = jax.random.PRNGKey(0)
    pkey, xkey = jax.random.split(key)
    params = init_params(pkey)
    src = jax.random.normal(xkey, (BATCH, SEQ, D_MODEL), jnp.float32)

    packed = pack_params(params, BATCH, SEQ)               # one-time parameter packing

    enhanced, outputs = transformer_attention_forward(src, packed)
    enhanced = jax.block_until_ready(enhanced)
    outputs = jax.tree_util.tree_map(jax.block_until_ready, outputs)

    # shape / sanity checks
    assert enhanced.shape == (BATCH, SEQ, D_MODEL)
    assert outputs["regime_probs"].shape == (BATCH, 4)
    assert outputs["volatility"].shape == (BATCH, 1)
    assert outputs["trend_strength"].shape == (BATCH, 1)
    assert outputs["attention_weights"].shape == (SEQ, BATCH, BATCH)
    assert bool(jnp.all(jnp.isfinite(enhanced)))

    # numerical check against a plain-JAX reference (tolerant of MXU / approx-rcp precision)
    ref_enh, ref_out = reference_forward(src, params)

    def close(a, b):
        return bool(jnp.max(jnp.abs(a - b)) < 5e-2)

    assert close(enhanced, ref_enh)
    assert close(outputs["attention_weights"], ref_out["attention_weights"])
    assert close(outputs["regime_probs"], ref_out["regime_probs"])
    assert close(outputs["volatility"], ref_out["volatility"])
    assert close(outputs["trend_strength"], ref_out["trend_strength"])

    print("KERNEL_OK")
</pallas_src>

<mosaic_0001>
module attributes {stable_mosaic.version = 11 : i64} {
  func.func @fused_forward_kernel(%arg0: memref<4x8x32xf32, #tpu.memory_space<vmem>>, %arg1: memref<99x192xf32, #tpu.memory_space<vmem>>, %arg2: memref<429x64xf32, #tpu.memory_space<vmem>>, %arg3: memref<4x8x32xf32, #tpu.memory_space<vmem>>, %arg4: memref<4x8x4xf32, #tpu.memory_space<vmem>>, %arg5: memref<4x6xf32, #tpu.memory_space<vmem>>) attributes {dimension_semantics = [], scalar_prefetch = 0 : i64, scratch_operands = 0 : i64, tpu.core_type = #tpu.core_type<tc>} {
    %c304 = arith.constant 304 : index
    %c0 = arith.constant 0 : index
    %0 = vector.load %arg2[%c304, %c0] : memref<429x64xf32, #tpu.memory_space<vmem>>, vector<32x32xf32>
    %c336 = arith.constant 336 : index
    %c0_0 = arith.constant 0 : index
    %1 = vector.load %arg2[%c336, %c0_0] : memref<429x64xf32, #tpu.memory_space<vmem>>, vector<32x32xf32>
    %c368 = arith.constant 368 : index
    %c0_1 = arith.constant 0 : index
    %2 = vector.load %arg2[%c368, %c0_1] : memref<429x64xf32, #tpu.memory_space<vmem>>, vector<32x4xf32>
    %c408 = arith.constant 408 : index
    %c0_2 = arith.constant 0 : index
    %3 = vector.load %arg2[%c408, %c0_2] : memref<429x64xf32, #tpu.memory_space<vmem>>, vector<4x32xf32>
    %c0_3 = arith.constant 0 : index
    %c0_4 = arith.constant 0 : index
    %c0_5 = arith.constant 0 : index
    %4 = vector.load %arg0[%c0_3, %c0_4, %c0_5] : memref<4x8x32xf32, #tpu.memory_space<vmem>>, vector<4x8x32xf32>
    %c400 = arith.constant 400 : index
    %c0_6 = arith.constant 0 : index
    %5 = vector.load %arg2[%c400, %c0_6] : memref<429x64xf32, #tpu.memory_space<vmem>>, vector<8x32xf32>
    %6 = vector.shape_cast %5 : vector<8x32xf32> to vector<1x8x32xf32>
    %7 = vector.broadcast %6 : vector<1x8x32xf32> to vector<4x8x32xf32>
    %8 = arith.addf %4, %7 : vector<4x8x32xf32>
    %9 = vector.shape_cast %8 : vector<4x8x32xf32> to vector<32x32xf32>
    %c0_7 = arith.constant 0 : index
    %c0_8 = arith.constant 0 : index
    %10 = vector.load %arg1[%c0_7, %c0_8] : memref<99x192xf32, #tpu.memory_space<vmem>>, vector<32x192xf32>
    %c96 = arith.constant 96 : index
    %c0_9 = arith.constant 0 : index
    %11 = vector.load %arg1[%c96, %c0_9] : memref<99x192xf32, #tpu.memory_space<vmem>>, vector<1x192xf32>
    %c412 = arith.constant 412 : index
    %c0_10 = arith.constant 0 : index
    %12 = vector.load %arg2[%c412, %c0_10] : memref<429x64xf32, #tpu.memory_space<vmem>>, vector<1x32xf32>
    %cst = arith.constant dense<0.000000e+00> : vector<32x192xf32>
    %13 = tpu.matmul %9, %10, %cst {dimension_numbers = #tpu.dot_dimension_numbers<[1], [0], [0], [1], [0, 0, 1, 1], [], []>} : vector<32x32xf32>, vector<32x192xf32>, vector<32x192xf32> -> vector<32x192xf32>
    %14 = vector.broadcast %11 : vector<1x192xf32> to vector<32x192xf32>
    %15 = arith.addf %13, %14 : vector<32x192xf32>
    %16 = vector.extract_strided_slice %15 {offsets = [0, 0], sizes = [32, 8], strides = [1, 1]} : vector<32x192xf32> to vector<32x8xf32>
    %17 = vector.extract_strided_slice %15 {offsets = [0, 32], sizes = [32, 8], strides = [1, 1]} : vector<32x192xf32> to vector<32x8xf32>
    %18 = vector.extract_strided_slice %15 {offsets = [0, 64], sizes = [32, 32], strides = [1, 1]} : vector<32x192xf32> to vector<32x32xf32>
    %cst_11 = arith.constant dense<0.000000e+00> : vector<32x32xf32>
    %19 = tpu.matmul %16, %17, %cst_11 {dimension_numbers = #tpu.dot_dimension_numbers<[1], [1], [0], [0], [0, 0, 1, 0], [], []>} : vector<32x8xf32>, vector<32x8xf32>, vector<32x32xf32> -> vector<32x32xf32>
    %20 = arith.addf %19, %0 : vector<32x32xf32>
    %cst_12 = arith.constant dense<0xFF800000> : vector<32xf32>
    %21 = vector.multi_reduction <maximumf>, %20, %cst_12 [1] : vector<32x32xf32> to vector<32xf32>
    %22 = vector.shape_cast %21 : vector<32xf32> to vector<32x1xf32>
    %23 = vector.broadcast %22 : vector<32x1xf32> to vector<32x32xf32>
    %24 = arith.subf %20, %23 : vector<32x32xf32>
    %25 = math.exp %24 : vector<32x32xf32>
    %cst_13 = arith.constant dense<0.000000e+00> : vector<32xf32>
    %26 = vector.multi_reduction <add>, %25, %cst_13 [1] : vector<32x32xf32> to vector<32xf32>
    %27 = vector.shape_cast %26 : vector<32xf32> to vector<32x1xf32>
    %28 = tpu.reciprocal %27 {approx = true} : vector<32x1xf32> -> vector<32x1xf32>
    %29 = vector.broadcast %28 : vector<32x1xf32> to vector<32x32xf32>
    %30 = arith.mulf %25, %29 : vector<32x32xf32>
    %cst_14 = arith.constant dense<0.000000e+00> : vector<32x32xf32>
    %31 = tpu.matmul %30, %18, %cst_14 {dimension_numbers = #tpu.dot_dimension_numbers<[1], [0], [0], [1], [0, 0, 1, 1], [], []>} : vector<32x32xf32>, vector<32x32xf32>, vector<32x32xf32> -> vector<32x32xf32>
    %32 = vector.extract_strided_slice %15 {offsets = [0, 8], sizes = [32, 8], strides = [1, 1]} : vector<32x192xf32> to vector<32x8xf32>
    %33 = vector.extract_strided_slice %15 {offsets = [0, 40], sizes = [32, 8], strides = [1, 1]} : vector<32x192xf32> to vector<32x8xf32>
    %34 = vector.extract_strided_slice %15 {offsets = [0, 96], sizes = [32, 32], strides = [1, 1]} : vector<32x192xf32> to vector<32x32xf32>
    %cst_15 = arith.constant dense<0.000000e+00> : vector<32x32xf32>
    %35 = tpu.matmul %32, %33, %cst_15 {dimension_numbers = #tpu.dot_dimension_numbers<[1], [1], [0], [0], [0, 0, 1, 0], [], []>} : vector<32x8xf32>, vector<32x8xf32>, vector<32x32xf32> -> vector<32x32xf32>
    %36 = arith.addf %35, %0 : vector<32x32xf32>
    %cst_16 = arith.constant dense<0xFF800000> : vector<32xf32>
    %37 = vector.multi_reduction <maximumf>, %36, %cst_16 [1] : vector<32x32xf32> to vector<32xf32>
    %38 = vector.shape_cast %37 : vector<32xf32> to vector<32x1xf32>
    %39 = vector.broadcast %38 : vector<32x1xf32> to vector<32x32xf32>
    %40 = arith.subf %36, %39 : vector<32x32xf32>
    %41 = math.exp %40 : vector<32x32xf32>
    %cst_17 = arith.constant dense<0.000000e+00> : vector<32xf32>
    %42 = vector.multi_reduction <add>, %41, %cst_17 [1] : vector<32x32xf32> to vector<32xf32>
    %43 = vector.shape_cast %42 : vector<32xf32> to vector<32x1xf32>
    %44 = tpu.reciprocal %43 {approx = true} : vector<32x1xf32> -> vector<32x1xf32>
    %45 = vector.broadcast %44 : vector<32x1xf32> to vector<32x32xf32>
    %46 = arith.mulf %41, %45 : vector<32x32xf32>
    %cst_18 = arith.constant dense<0.000000e+00> : vector<32x32xf32>
    %47 = tpu.matmul %46, %34, %cst_18 {dimension_numbers = #tpu.dot_dimension_numbers<[1], [0], [0], [1], [0, 0, 1, 1], [], []>} : vector<32x32xf32>, vector<32x32xf32>, vector<32x32xf32> -> vector<32x32xf32>
    %48 = arith.addf %31, %47 : vector<32x32xf32>
    %49 = vector.extract_strided_slice %15 {offsets = [0, 16], sizes = [32, 8], strides = [1, 1]} : vector<32x192xf32> to vector<32x8xf32>
    %50 = vector.extract_strided_slice %15 {offsets = [0, 48], sizes = [32, 8], strides = [1, 1]} : vector<32x192xf32> to vector<32x8xf32>
    %51 = vector.extract_strided_slice %15 {offsets = [0, 128], sizes = [32, 32], strides = [1, 1]} : vector<32x192xf32> to vector<32x32xf32>
    %cst_19 = arith.constant dense<0.000000e+00> : vector<32x32xf32>
    %52 = tpu.matmul %49, %50, %cst_19 {dimension_numbers = #tpu.dot_dimension_numbers<[1], [1], [0], [0], [0, 0, 1, 0], [], []>} : vector<32x8xf32>, vector<32x8xf32>, vector<32x32xf32> -> vector<32x32xf32>
    %53 = arith.addf %52, %0 : vector<32x32xf32>
    %cst_20 = arith.constant dense<0xFF800000> : vector<32xf32>
    %54 = vector.multi_reduction <maximumf>, %53, %cst_20 [1] : vector<32x32xf32> to vector<32xf32>
    %55 = vector.shape_cast %54 : vector<32xf32> to vector<32x1xf32>
    %56 = vector.broadcast %55 : vector<32x1xf32> to vector<32x32xf32>
    %57 = arith.subf %53, %56 : vector<32x32xf32>
    %58 = math.exp %57 : vector<32x32xf32>
    %cst_21 = arith.constant dense<0.000000e+00> : vector<32xf32>
    %59 = vector.multi_reduction <add>, %58, %cst_21 [1] : vector<32x32xf32> to vector<32xf32>
    %60 = vector.shape_cast %59 : vector<32xf32> to vector<32x1xf32>
    %61 = tpu.reciprocal %60 {approx = true} : vector<32x1xf32> -> vector<32x1xf32>
    %62 = vector.broadcast %61 : vector<32x1xf32> to vector<32x32xf32>
    %63 = arith.mulf %58, %62 : vector<32x32xf32>
    %cst_22 = arith.constant dense<0.000000e+00> : vector<32x32xf32>
    %64 = tpu.matmul %63, %51, %cst_22 {dimension_numbers = #tpu.dot_dimension_numbers<[1], [0], [0], [1], [0, 0, 1, 1], [], []>} : vector<32x32xf32>, vector<32x32xf32>, vector<32x32xf32> -> vector<32x32xf32>
    %65 = arith.addf %48, %64 : vector<32x32xf32>
    %66 = vector.extract_strided_slice %15 {offsets = [0, 24], sizes = [32, 8], strides = [1, 1]} : vector<32x192xf32> to vector<32x8xf32>
    %67 = vector.extract_strided_slice %15 {offsets = [0, 56], sizes = [32, 8], strides = [1, 1]} : vector<32x192xf32> to vector<32x8xf32>
    %68 = vector.extract_strided_slice %15 {offsets = [0, 160], sizes = [32, 32], strides = [1, 1]} : vector<32x192xf32> to vector<32x32xf32>
    %cst_23 = arith.constant dense<0.000000e+00> : vector<32x32xf32>
    %69 = tpu.matmul %66, %67, %cst_23 {dimension_numbers = #tpu.dot_dimension_numbers<[1], [1], [0], [0], [0, 0, 1, 0], [], []>} : vector<32x8xf32>, vector<32x8xf32>, vector<32x32xf32> -> vector<32x32xf32>
    %70 = arith.addf %69, %0 : vector<32x32xf32>
    %cst_24 = arith.constant dense<0xFF800000> : vector<32xf32>
    %71 = vector.multi_reduction <maximumf>, %70, %cst_24 [1] : vector<32x32xf32> to vector<32xf32>
    %72 = vector.shape_cast %71 : vector<32xf32> to vector<32x1xf32>
    %73 = vector.broadcast %72 : vector<32x1xf32> to vector<32x32xf32>
    %74 = arith.subf %70, %73 : vector<32x32xf32>
    %75 = math.exp %74 : vector<32x32xf32>
    %cst_25 = arith.constant dense<0.000000e+00> : vector<32xf32>
    %76 = vector.multi_reduction <add>, %75, %cst_25 [1] : vector<32x32xf32> to vector<32xf32>
    %77 = vector.shape_cast %76 : vector<32xf32> to vector<32x1xf32>
    %78 = tpu.reciprocal %77 {approx = true} : vector<32x1xf32> -> vector<32x1xf32>
    %79 = vector.broadcast %78 : vector<32x1xf32> to vector<32x32xf32>
    %80 = arith.mulf %75, %79 : vector<32x32xf32>
    %cst_26 = arith.constant dense<0.000000e+00> : vector<32x32xf32>
    %81 = tpu.matmul %80, %68, %cst_26 {dimension_numbers = #tpu.dot_dimension_numbers<[1], [0], [0], [1], [0, 0, 1, 1], [], []>} : vector<32x32xf32>, vector<32x32xf32>, vector<32x32xf32> -> vector<32x32xf32>
    %82 = arith.addf %65, %81 : vector<32x32xf32>
    %83 = vector.broadcast %12 : vector<1x32xf32> to vector<32x32xf32>
    %84 = arith.addf %82, %83 : vector<32x32xf32>
    %85 = arith.addf %84, %9 : vector<32x32xf32>
    %c413 = arith.constant 413 : index
    %c0_27 = arith.constant 0 : index
    %86 = vector.load %arg2[%c413, %c0_27] : memref<429x64xf32, #tpu.memory_space<vmem>>, vector<1x32xf32>
    %c414 = arith.constant 414 : index
    %c0_28 = arith.constant 0 : index
    %87 = vector.load %arg2[%c414, %c0_28] : memref<429x64xf32, #tpu.memory_space<vmem>>, vector<1x32xf32>
    %cst_29 = arith.constant dense<0.000000e+00> : vector<32xf32>
    %88 = vector.multi_reduction <add>, %85, %cst_29 [1] : vector<32x32xf32> to vector<32xf32>
    %89 = vector.shape_cast %88 : vector<32xf32> to vector<32x1xf32>
    %cst_30 = arith.constant 3.200000e+01 : f32
    %90 = vector.broadcast %cst_30 : f32 to vector<32x1xf32>
    %91 = arith.divf %89, %90 : vector<32x1xf32>
    %92 = vector.broadcast %91 : vector<32x1xf32> to vector<32x32xf32>
    %93 = arith.subf %85, %92 : vector<32x32xf32>
    %94 = arith.mulf %93, %93 : vector<32x32xf32>
    %cst_31 = arith.constant dense<0.000000e+00> : vector<32xf32>
    %95 = vector.multi_reduction <add>, %94, %cst_31 [1] : vector<32x32xf32> to vector<32xf32>
    %96 = vector.shape_cast %95 : vector<32xf32> to vector<32x1xf32>
    %cst_32 = arith.constant 3.200000e+01 : f32
    %97 = vector.broadcast %cst_32 : f32 to vector<32x1xf32>
    %98 = arith.divf %96, %97 : vector<32x1xf32>
    %99 = vector.broadcast %91 : vector<32x1xf32> to vector<32x32xf32>
    %100 = arith.subf %85, %99 : vector<32x32xf32>
    %cst_33 = arith.constant 9.99999974E-6 : f32
    %101 = vector.broadcast %cst_33 : f32 to vector<32x1xf32>
    %102 = arith.addf %98, %101 : vector<32x1xf32>
    %103 = math.rsqrt %102 : vector<32x1xf32>
    %104 = vector.broadcast %103 : vector<32x1xf32> to vector<32x32xf32>
    %105 = arith.mulf %100, %104 : vector<32x32xf32>
    %106 = vector.broadcast %86 : vector<1x32xf32> to vector<32x32xf32>
    %107 = arith.mulf %105, %106 : vector<32x32xf32>
    %108 = vector.broadcast %87 : vector<1x32xf32> to vector<32x32xf32>
    %109 = arith.addf %107, %108 : vector<32x32xf32>
    %c0_34 = arith.constant 0 : index
    %c0_35 = arith.constant 0 : index
    %110 = vector.load %arg2[%c0_34, %c0_35] : memref<429x64xf32, #tpu.memory_space<vmem>>, vector<32x64xf32>
    %cst_36 = arith.constant dense<0.000000e+00> : vector<32x64xf32>
    %111 = tpu.matmul %109, %110, %cst_36 {dimension_numbers = #tpu.dot_dimension_numbers<[1], [0], [0], [1], [0, 0, 1, 1], [], []>} : vector<32x32xf32>, vector<32x64xf32>, vector<32x64xf32> -> vector<32x64xf32>
    %c415 = arith.constant 415 : index
    %c0_37 = arith.constant 0 : index
    %112 = vector.load %arg2[%c415, %c0_37] : memref<429x64xf32, #tpu.memory_space<vmem>>, vector<1x64xf32>
    %113 = vector.broadcast %112 : vector<1x64xf32> to vector<32x64xf32>
    %114 = arith.addf %111, %113 : vector<32x64xf32>
    %cst_38 = arith.constant 0.000000e+00 : f32
    %115 = vector.broadcast %cst_38 : f32 to vector<32x64xf32>
    %116 = arith.maximumf %114, %115 : vector<32x64xf32>
    %c32 = arith.constant 32 : index
    %c0_39 = arith.constant 0 : index
    %117 = vector.load %arg2[%c32, %c0_39] : memref<429x64xf32, #tpu.memory_space<vmem>>, vector<64x32xf32>
    %cst_40 = arith.constant dense<0.000000e+00> : vector<32x32xf32>
    %118 = tpu.matmul %116, %117, %cst_40 {dimension_numbers = #tpu.dot_dimension_numbers<[1], [0], [0], [1], [0, 0, 1, 1], [], []>} : vector<32x64xf32>, vector<64x32xf32>, vector<32x32xf32> -> vector<32x32xf32>
    %c416 = arith.constant 416 : index
    %c0_41 = arith.constant 0 : index
    %119 = vector.load %arg2[%c416, %c0_41] : memref<429x64xf32, #tpu.memory_space<vmem>>, vector<1x32xf32>
    %120 = vector.broadcast %119 : vector<1x32xf32> to vector<32x32xf32>
    %121 = arith.addf %118, %120 : vector<32x32xf32>
    %122 = arith.addf %121, %109 : vector<32x32xf32>
    %c417 = arith.constant 417 : index
    %c0_42 = arith.constant 0 : index
    %123 = vector.load %arg2[%c417, %c0_42] : memref<429x64xf32, #tpu.memory_space<vmem>>, vector<1x32xf32>
    %c418 = arith.constant 418 : index
    %c0_43 = arith.constant 0 : index
    %124 = vector.load %arg2[%c418, %c0_43] : memref<429x64xf32, #tpu.memory_space<vmem>>, vector<1x32xf32>
    %cst_44 = arith.constant dense<0.000000e+00> : vector<32xf32>
    %125 = vector.multi_reduction <add>, %122, %cst_44 [1] : vector<32x32xf32> to vector<32xf32>
    %126 = vector.shape_cast %125 : vector<32xf32> to vector<32x1xf32>
    %cst_45 = arith.constant 3.200000e+01 : f32
    %127 = vector.broadcast %cst_45 : f32 to vector<32x1xf32>
    %128 = arith.divf %126, %127 : vector<32x1xf32>
    %129 = vector.broadcast %128 : vector<32x1xf32> to vector<32x32xf32>
    %130 = arith.subf %122, %129 : vector<32x32xf32>
    %131 = arith.mulf %130, %130 : vector<32x32xf32>
    %cst_46 = arith.constant dense<0.000000e+00> : vector<32xf32>
    %132 = vector.multi_reduction <add>, %131, %cst_46 [1] : vector<32x32xf32> to vector<32xf32>
    %133 = vector.shape_cast %132 : vector<32xf32> to vector<32x1xf32>
    %cst_47 = arith.constant 3.200000e+01 : f32
    %134 = vector.broadcast %cst_47 : f32 to vector<32x1xf32>
    %135 = arith.divf %133, %134 : vector<32x1xf32>
    %136 = vector.broadcast %128 : vector<32x1xf32> to vector<32x32xf32>
    %137 = arith.subf %122, %136 : vector<32x32xf32>
    %cst_48 = arith.constant 9.99999974E-6 : f32
    %138 = vector.broadcast %cst_48 : f32 to vector<32x1xf32>
    %139 = arith.addf %135, %138 : vector<32x1xf32>
    %140 = math.rsqrt %139 : vector<32x1xf32>
    %141 = vector.broadcast %140 : vector<32x1xf32> to vector<32x32xf32>
    %142 = arith.mulf %137, %141 : vector<32x32xf32>
    %143 = vector.broadcast %123 : vector<1x32xf32> to vector<32x32xf32>
    %144 = arith.mulf %142, %143 : vector<32x32xf32>
    %145 = vector.broadcast %124 : vector<1x32xf32> to vector<32x32xf32>
    %146 = arith.addf %144, %145 : vector<32x32xf32>
    %c32_49 = arith.constant 32 : index
    %c0_50 = arith.constant 0 : index
    %147 = vector.load %arg1[%c32_49, %c0_50] : memref<99x192xf32, #tpu.memory_space<vmem>>, vector<32x192xf32>
    %c97 = arith.constant 97 : index
    %c0_51 = arith.constant 0 : index
    %148 = vector.load %arg1[%c97, %c0_51] : memref<99x192xf32, #tpu.memory_space<vmem>>, vector<1x192xf32>
    %c419 = arith.constant 419 : index
    %c0_52 = arith.constant 0 : index
    %149 = vector.load %arg2[%c419, %c0_52] : memref<429x64xf32, #tpu.memory_space<vmem>>, vector<1x32xf32>
    %cst_53 = arith.constant dense<0.000000e+00> : vector<32x192xf32>
    %150 = tpu.matmul %146, %147, %cst_53 {dimension_numbers = #tpu.dot_dimension_numbers<[1], [0], [0], [1], [0, 0, 1, 1], [], []>} : vector<32x32xf32>, vector<32x192xf32>, vector<32x192xf32> -> vector<32x192xf32>
    %151 = vector.broadcast %148 : vector<1x192xf32> to vector<32x192xf32>
    %152 = arith.addf %150, %151 : vector<32x192xf32>
    %153 = vector.extract_strided_slice %152 {offsets = [0, 0], sizes = [32, 8], strides = [1, 1]} : vector<32x192xf32> to vector<32x8xf32>
    %154 = vector.extract_strided_slice %152 {offsets = [0, 32], sizes = [32, 8], strides = [1, 1]} : vector<32x192xf32> to vector<32x8xf32>
    %155 = vector.extract_strided_slice %152 {offsets = [0, 64], sizes = [32, 32], strides = [1, 1]} : vector<32x192xf32> to vector<32x32xf32>
    %cst_54 = arith.constant dense<0.000000e+00> : vector<32x32xf32>
    %156 = tpu.matmul %153, %154, %cst_54 {dimension_numbers = #tpu.dot_dimension_numbers<[1], [1], [0], [0], [0, 0, 1, 0], [], []>} : vector<32x8xf32>, vector<32x8xf32>, vector<32x32xf32> -> vector<32x32xf32>
    %157 = arith.addf %156, %0 : vector<32x32xf32>
    %cst_55 = arith.constant dense<0xFF800000> : vector<32xf32>
    %158 = vector.multi_reduction <maximumf>, %157, %cst_55 [1] : vector<32x32xf32> to vector<32xf32>
    %159 = vector.shape_cast %158 : vector<32xf32> to vector<32x1xf32>
    %160 = vector.broadcast %159 : vector<32x1xf32> to vector<32x32xf32>
    %161 = arith.subf %157, %160 : vector<32x32xf32>
    %162 = math.exp %161 : vector<32x32xf32>
    %cst_56 = arith.constant dense<0.000000e+00> : vector<32xf32>
    %163 = vector.multi_reduction <add>, %162, %cst_56 [1] : vector<32x32xf32> to vector<32xf32>
    %164 = vector.shape_cast %163 : vector<32xf32> to vector<32x1xf32>
    %165 = tpu.reciprocal %164 {approx = true} : vector<32x1xf32> -> vector<32x1xf32>
    %166 = vector.broadcast %165 : vector<32x1xf32> to vector<32x32xf32>
    %167 = arith.mulf %162, %166 : vector<32x32xf32>
    %cst_57 = arith.constant dense<0.000000e+00> : vector<32x32xf32>
    %168 = tpu.matmul %167, %155, %cst_57 {dimension_numbers = #tpu.dot_dimension_numbers<[1], [0], [0], [1], [0, 0, 1, 1], [], []>} : vector<32x32xf32>, vector<32x32xf32>, vector<32x32xf32> -> vector<32x32xf32>
    %169 = vector.extract_strided_slice %152 {offsets = [0, 8], sizes = [32, 8], strides = [1, 1]} : vector<32x192xf32> to vector<32x8xf32>
    %170 = vector.extract_strided_slice %152 {offsets = [0, 40], sizes = [32, 8], strides = [1, 1]} : vector<32x192xf32> to vector<32x8xf32>
    %171 = vector.extract_strided_slice %152 {offsets = [0, 96], sizes = [32, 32], strides = [1, 1]} : vector<32x192xf32> to vector<32x32xf32>
    %cst_58 = arith.constant dense<0.000000e+00> : vector<32x32xf32>
    %172 = tpu.matmul %169, %170, %cst_58 {dimension_numbers = #tpu.dot_dimension_numbers<[1], [1], [0], [0], [0, 0, 1, 0], [], []>} : vector<32x8xf32>, vector<32x8xf32>, vector<32x32xf32> -> vector<32x32xf32>
    %173 = arith.addf %172, %0 : vector<32x32xf32>
    %cst_59 = arith.constant dense<0xFF800000> : vector<32xf32>
    %174 = vector.multi_reduction <maximumf>, %173, %cst_59 [1] : vector<32x32xf32> to vector<32xf32>
    %175 = vector.shape_cast %174 : vector<32xf32> to vector<32x1xf32>
    %176 = vector.broadcast %175 : vector<32x1xf32> to vector<32x32xf32>
    %177 = arith.subf %173, %176 : vector<32x32xf32>
    %178 = math.exp %177 : vector<32x32xf32>
    %cst_60 = arith.constant dense<0.000000e+00> : vector<32xf32>
    %179 = vector.multi_reduction <add>, %178, %cst_60 [1] : vector<32x32xf32> to vector<32xf32>
    %180 = vector.shape_cast %179 : vector<32xf32> to vector<32x1xf32>
    %181 = tpu.reciprocal %180 {approx = true} : vector<32x1xf32> -> vector<32x1xf32>
    %182 = vector.broadcast %181 : vector<32x1xf32> to vector<32x32xf32>
    %183 = arith.mulf %178, %182 : vector<32x32xf32>
    %cst_61 = arith.constant dense<0.000000e+00> : vector<32x32xf32>
    %184 = tpu.matmul %183, %171, %cst_61 {dimension_numbers = #tpu.dot_dimension_numbers<[1], [0], [0], [1], [0, 0, 1, 1], [], []>} : vector<32x32xf32>, vector<32x32xf32>, vector<32x32xf32> -> vector<32x32xf32>
    %185 = arith.addf %168, %184 : vector<32x32xf32>
    %186 = vector.extract_strided_slice %152 {offsets = [0, 16], sizes = [32, 8], strides = [1, 1]} : vector<32x192xf32> to vector<32x8xf32>
    %187 = vector.extract_strided_slice %152 {offsets = [0, 48], sizes = [32, 8], strides = [1, 1]} : vector<32x192xf32> to vector<32x8xf32>
    %188 = vector.extract_strided_slice %152 {offsets = [0, 128], sizes = [32, 32], strides = [1, 1]} : vector<32x192xf32> to vector<32x32xf32>
    %cst_62 = arith.constant dense<0.000000e+00> : vector<32x32xf32>
    %189 = tpu.matmul %186, %187, %cst_62 {dimension_numbers = #tpu.dot_dimension_numbers<[1], [1], [0], [0], [0, 0, 1, 0], [], []>} : vector<32x8xf32>, vector<32x8xf32>, vector<32x32xf32> -> vector<32x32xf32>
    %190 = arith.addf %189, %0 : vector<32x32xf32>
    %cst_63 = arith.constant dense<0xFF800000> : vector<32xf32>
    %191 = vector.multi_reduction <maximumf>, %190, %cst_63 [1] : vector<32x32xf32> to vector<32xf32>
    %192 = vector.shape_cast %191 : vector<32xf32> to vector<32x1xf32>
    %193 = vector.broadcast %192 : vector<32x1xf32> to vector<32x32xf32>
    %194 = arith.subf %190, %193 : vector<32x32xf32>
    %195 = math.exp %194 : vector<32x32xf32>
    %cst_64 = arith.constant dense<0.000000e+00> : vector<32xf32>
    %196 = vector.multi_reduction <add>, %195, %cst_64 [1] : vector<32x32xf32> to vector<32xf32>
    %197 = vector.shape_cast %196 : vector<32xf32> to vector<32x1xf32>
    %198 = tpu.reciprocal %197 {approx = true} : vector<32x1xf32> -> vector<32x1xf32>
    %199 = vector.broadcast %198 : vector<32x1xf32> to vector<32x32xf32>
    %200 = arith.mulf %195, %199 : vector<32x32xf32>
    %cst_65 = arith.constant dense<0.000000e+00> : vector<32x32xf32>
    %201 = tpu.matmul %200, %188, %cst_65 {dimension_numbers = #tpu.dot_dimension_numbers<[1], [0], [0], [1], [0, 0, 1, 1], [], []>} : vector<32x32xf32>, vector<32x32xf32>, vector<32x32xf32> -> vector<32x32xf32>
    %202 = arith.addf %185, %201 : vector<32x32xf32>
    %203 = vector.extract_strided_slice %152 {offsets = [0, 24], sizes = [32, 8], strides = [1, 1]} : vector<32x192xf32> to vector<32x8xf32>
    %204 = vector.extract_strided_slice %152 {offsets = [0, 56], sizes = [32, 8], strides = [1, 1]} : vector<32x192xf32> to vector<32x8xf32>
    %205 = vector.extract_strided_slice %152 {offsets = [0, 160], sizes = [32, 32], strides = [1, 1]} : vector<32x192xf32> to vector<32x32xf32>
    %cst_66 = arith.constant dense<0.000000e+00> : vector<32x32xf32>
    %206 = tpu.matmul %203, %204, %cst_66 {dimension_numbers = #tpu.dot_dimension_numbers<[1], [1], [0], [0], [0, 0, 1, 0], [], []>} : vector<32x8xf32>, vector<32x8xf32>, vector<32x32xf32> -> vector<32x32xf32>
    %207 = arith.addf %206, %0 : vector<32x32xf32>
    %cst_67 = arith.constant dense<0xFF800000> : vector<32xf32>
    %208 = vector.multi_reduction <maximumf>, %207, %cst_67 [1] : vector<32x32xf32> to vector<32xf32>
    %209 = vector.shape_cast %208 : vector<32xf32> to vector<32x1xf32>
    %210 = vector.broadcast %209 : vector<32x1xf32> to vector<32x32xf32>
    %211 = arith.subf %207, %210 : vector<32x32xf32>
    %212 = math.exp %211 : vector<32x32xf32>
    %cst_68 = arith.constant dense<0.000000e+00> : vector<32xf32>
    %213 = vector.multi_reduction <add>, %212, %cst_68 [1] : vector<32x32xf32> to vector<32xf32>
    %214 = vector.shape_cast %213 : vector<32xf32> to vector<32x1xf32>
    %215 = tpu.reciprocal %214 {approx = true} : vector<32x1xf32> -> vector<32x1xf32>
    %216 = vector.broadcast %215 : vector<32x1xf32> to vector<32x32xf32>
    %217 = arith.mulf %212, %216 : vector<32x32xf32>
    %cst_69 = arith.constant dense<0.000000e+00> : vector<32x32xf32>
    %218 = tpu.matmul %217, %205, %cst_69 {dimension_numbers = #tpu.dot_dimension_numbers<[1], [0], [0], [1], [0, 0, 1, 1], [], []>} : vector<32x32xf32>, vector<32x32xf32>, vector<32x32xf32> -> vector<32x32xf32>
    %219 = arith.addf %202, %218 : vector<32x32xf32>
    %220 = vector.broadcast %149 : vector<1x32xf32> to vector<32x32xf32>
    %221 = arith.addf %219, %220 : vector<32x32xf32>
    %222 = arith.addf %221, %146 : vector<32x32xf32>
    %c420 = arith.constant 420 : index
    %c0_70 = arith.constant 0 : index
    %223 = vector.load %arg2[%c420, %c0_70] : memref<429x64xf32, #tpu.memory_space<vmem>>, vector<1x32xf32>
    %c421 = arith.constant 421 : index
    %c0_71 = arith.constant 0 : index
    %224 = vector.load %arg2[%c421, %c0_71] : memref<429x64xf32, #tpu.memory_space<vmem>>, vector<1x32xf32>
    %cst_72 = arith.constant dense<0.000000e+00> : vector<32xf32>
    %225 = vector.multi_reduction <add>, %222, %cst_72 [1] : vector<32x32xf32> to vector<32xf32>
    %226 = vector.shape_cast %225 : vector<32xf32> to vector<32x1xf32>
    %cst_73 = arith.constant 3.200000e+01 : f32
    %227 = vector.broadcast %cst_73 : f32 to vector<32x1xf32>
    %228 = arith.divf %226, %227 : vector<32x1xf32>
    %229 = vector.broadcast %228 : vector<32x1xf32> to vector<32x32xf32>
    %230 = arith.subf %222, %229 : vector<32x32xf32>
    %231 = arith.mulf %230, %230 : vector<32x32xf32>
    %cst_74 = arith.constant dense<0.000000e+00> : vector<32xf32>
    %232 = vector.multi_reduction <add>, %231, %cst_74 [1] : vector<32x32xf32> to vector<32xf32>
    %233 = vector.shape_cast %232 : vector<32xf32> to vector<32x1xf32>
    %cst_75 = arith.constant 3.200000e+01 : f32
    %234 = vector.broadcast %cst_75 : f32 to vector<32x1xf32>
    %235 = arith.divf %233, %234 : vector<32x1xf32>
    %236 = vector.broadcast %228 : vector<32x1xf32> to vector<32x32xf32>
    %237 = arith.subf %222, %236 : vector<32x32xf32>
    %cst_76 = arith.constant 9.99999974E-6 : f32
    %238 = vector.broadcast %cst_76 : f32 to vector<32x1xf32>
    %239 = arith.addf %235, %238 : vector<32x1xf32>
    %240 = math.rsqrt %239 : vector<32x1xf32>
    %241 = vector.broadcast %240 : vector<32x1xf32> to vector<32x32xf32>
    %242 = arith.mulf %237, %241 : vector<32x32xf32>
    %243 = vector.broadcast %223 : vector<1x32xf32> to vector<32x32xf32>
    %244 = arith.mulf %242, %243 : vector<32x32xf32>
    %245 = vector.broadcast %224 : vector<1x32xf32> to vector<32x32xf32>
    %246 = arith.addf %244, %245 : vector<32x32xf32>
    %c96_77 = arith.constant 96 : index
    %c0_78 = arith.constant 0 : index
    %247 = vector.load %arg2[%c96_77, %c0_78] : memref<429x64xf32, #tpu.memory_space<vmem>>, vector<32x64xf32>
    %cst_79 = arith.constant dense<0.000000e+00> : vector<32x64xf32>
    %248 = tpu.matmul %246, %247, %cst_79 {dimension_numbers = #tpu.dot_dimension_numbers<[1], [0], [0], [1], [0, 0, 1, 1], [], []>} : vector<32x32xf32>, vector<32x64xf32>, vector<32x64xf32> -> vector<32x64xf32>
    %c422 = arith.constant 422 : index
    %c0_80 = arith.constant 0 : index
    %249 = vector.load %arg2[%c422, %c0_80] : memref<429x64xf32, #tpu.memory_space<vmem>>, vector<1x64xf32>
    %250 = vector.broadcast %249 : vector<1x64xf32> to vector<32x64xf32>
    %251 = arith.addf %248, %250 : vector<32x64xf32>
    %cst_81 = arith.constant 0.000000e+00 : f32
    %252 = vector.broadcast %cst_81 : f32 to vector<32x64xf32>
    %253 = arith.maximumf %251, %252 : vector<32x64xf32>
    %c128 = arith.constant 128 : index
    %c0_82 = arith.constant 0 : index
    %254 = vector.load %arg2[%c128, %c0_82] : memref<429x64xf32, #tpu.memory_space<vmem>>, vector<64x32xf32>
    %cst_83 = arith.constant dense<0.000000e+00> : vector<32x32xf32>
    %255 = tpu.matmul %253, %254, %cst_83 {dimension_numbers = #tpu.dot_dimension_numbers<[1], [0], [0], [1], [0, 0, 1, 1], [], []>} : vector<32x64xf32>, vector<64x32xf32>, vector<32x32xf32> -> vector<32x32xf32>
    %c423 = arith.constant 423 : index
    %c0_84 = arith.constant 0 : index
    %256 = vector.load %arg2[%c423, %c0_84] : memref<429x64xf32, #tpu.memory_space<vmem>>, vector<1x32xf32>
    %257 = vector.broadcast %256 : vector<1x32xf32> to vector<32x32xf32>
    %258 = arith.addf %255, %257 : vector<32x32xf32>
    %259 = arith.addf %258, %246 : vector<32x32xf32>
    %c424 = arith.constant 424 : index
    %c0_85 = arith.constant 0 : index
    %260 = vector.load %arg2[%c424, %c0_85] : memref<429x64xf32, #tpu.memory_space<vmem>>, vector<1x32xf32>
    %c425 = arith.constant 425 : index
    %c0_86 = arith.constant 0 : index
    %261 = vector.load %arg2[%c425, %c0_86] : memref<429x64xf32, #tpu.memory_space<vmem>>, vector<1x32xf32>
    %cst_87 = arith.constant dense<0.000000e+00> : vector<32xf32>
    %262 = vector.multi_reduction <add>, %259, %cst_87 [1] : vector<32x32xf32> to vector<32xf32>
    %263 = vector.shape_cast %262 : vector<32xf32> to vector<32x1xf32>
    %cst_88 = arith.constant 3.200000e+01 : f32
    %264 = vector.broadcast %cst_88 : f32 to vector<32x1xf32>
    %265 = arith.divf %263, %264 : vector<32x1xf32>
    %266 = vector.broadcast %265 : vector<32x1xf32> to vector<32x32xf32>
    %267 = arith.subf %259, %266 : vector<32x32xf32>
    %268 = arith.mulf %267, %267 : vector<32x32xf32>
    %cst_89 = arith.constant dense<0.000000e+00> : vector<32xf32>
    %269 = vector.multi_reduction <add>, %268, %cst_89 [1] : vector<32x32xf32> to vector<32xf32>
    %270 = vector.shape_cast %269 : vector<32xf32> to vector<32x1xf32>
    %cst_90 = arith.constant 3.200000e+01 : f32
    %271 = vector.broadcast %cst_90 : f32 to vector<32x1xf32>
    %272 = arith.divf %270, %271 : vector<32x1xf32>
    %273 = vector.broadcast %265 : vector<32x1xf32> to vector<32x32xf32>
    %274 = arith.subf %259, %273 : vector<32x32xf32>
    %cst_91 = arith.constant 9.99999974E-6 : f32
    %275 = vector.broadcast %cst_91 : f32 to vector<32x1xf32>
    %276 = arith.addf %272, %275 : vector<32x1xf32>
    %277 = math.rsqrt %276 : vector<32x1xf32>
    %278 = vector.broadcast %277 : vector<32x1xf32> to vector<32x32xf32>
    %279 = arith.mulf %274, %278 : vector<32x32xf32>
    %280 = vector.broadcast %260 : vector<1x32xf32> to vector<32x32xf32>
    %281 = arith.mulf %279, %280 : vector<32x32xf32>
    %282 = vector.broadcast %261 : vector<1x32xf32> to vector<32x32xf32>
    %283 = arith.addf %281, %282 : vector<32x32xf32>
    %c64 = arith.constant 64 : index
    %c0_92 = arith.constant 0 : index
    %284 = vector.load %arg1[%c64, %c0_92] : memref<99x192xf32, #tpu.memory_space<vmem>>, vector<32x192xf32>
    %c98 = arith.constant 98 : index
    %c0_93 = arith.constant 0 : index
    %285 = vector.load %arg1[%c98, %c0_93] : memref<99x192xf32, #tpu.memory_space<vmem>>, vector<1x192xf32>
    %c426 = arith.constant 426 : index
    %c0_94 = arith.constant 0 : index
    %286 = vector.load %arg2[%c426, %c0_94] : memref<429x64xf32, #tpu.memory_space<vmem>>, vector<1x32xf32>
    %cst_95 = arith.constant dense<0.000000e+00> : vector<32x192xf32>
    %287 = tpu.matmul %283, %284, %cst_95 {dimension_numbers = #tpu.dot_dimension_numbers<[1], [0], [0], [1], [0, 0, 1, 1], [], []>} : vector<32x32xf32>, vector<32x192xf32>, vector<32x192xf32> -> vector<32x192xf32>
    %288 = vector.broadcast %285 : vector<1x192xf32> to vector<32x192xf32>
    %289 = arith.addf %287, %288 : vector<32x192xf32>
    %290 = vector.extract_strided_slice %289 {offsets = [0, 0], sizes = [32, 8], strides = [1, 1]} : vector<32x192xf32> to vector<32x8xf32>
    %291 = vector.extract_strided_slice %289 {offsets = [0, 32], sizes = [32, 8], strides = [1, 1]} : vector<32x192xf32> to vector<32x8xf32>
    %292 = vector.extract_strided_slice %289 {offsets = [0, 64], sizes = [32, 32], strides = [1, 1]} : vector<32x192xf32> to vector<32x32xf32>
    %cst_96 = arith.constant dense<0.000000e+00> : vector<32x32xf32>
    %293 = tpu.matmul %290, %291, %cst_96 {dimension_numbers = #tpu.dot_dimension_numbers<[1], [1], [0], [0], [0, 0, 1, 0], [], []>} : vector<32x8xf32>, vector<32x8xf32>, vector<32x32xf32> -> vector<32x32xf32>
    %294 = arith.addf %293, %1 : vector<32x32xf32>
    %cst_97 = arith.constant dense<0xFF800000> : vector<32xf32>
    %295 = vector.multi_reduction <maximumf>, %294, %cst_97 [1] : vector<32x32xf32> to vector<32xf32>
    %296 = vector.shape_cast %295 : vector<32xf32> to vector<32x1xf32>
    %297 = vector.broadcast %296 : vector<32x1xf32> to vector<32x32xf32>
    %298 = arith.subf %294, %297 : vector<32x32xf32>
    %299 = math.exp %298 : vector<32x32xf32>
    %cst_98 = arith.constant dense<0.000000e+00> : vector<32xf32>
    %300 = vector.multi_reduction <add>, %299, %cst_98 [1] : vector<32x32xf32> to vector<32xf32>
    %301 = vector.shape_cast %300 : vector<32xf32> to vector<32x1xf32>
    %302 = tpu.reciprocal %301 {approx = true} : vector<32x1xf32> -> vector<32x1xf32>
    %303 = vector.broadcast %302 : vector<32x1xf32> to vector<32x32xf32>
    %304 = arith.mulf %299, %303 : vector<32x32xf32>
    %cst_99 = arith.constant dense<0.000000e+00> : vector<32x32xf32>
    %305 = tpu.matmul %304, %292, %cst_99 {dimension_numbers = #tpu.dot_dimension_numbers<[1], [0], [0], [1], [0, 0, 1, 1], [], []>} : vector<32x32xf32>, vector<32x32xf32>, vector<32x32xf32> -> vector<32x32xf32>
    %306 = vector.extract_strided_slice %289 {offsets = [0, 8], sizes = [32, 8], strides = [1, 1]} : vector<32x192xf32> to vector<32x8xf32>
    %307 = vector.extract_strided_slice %289 {offsets = [0, 40], sizes = [32, 8], strides = [1, 1]} : vector<32x192xf32> to vector<32x8xf32>
    %308 = vector.extract_strided_slice %289 {offsets = [0, 96], sizes = [32, 32], strides = [1, 1]} : vector<32x192xf32> to vector<32x32xf32>
    %cst_100 = arith.constant dense<0.000000e+00> : vector<32x32xf32>
    %309 = tpu.matmul %306, %307, %cst_100 {dimension_numbers = #tpu.dot_dimension_numbers<[1], [1], [0], [0], [0, 0, 1, 0], [], []>} : vector<32x8xf32>, vector<32x8xf32>, vector<32x32xf32> -> vector<32x32xf32>
    %310 = arith.addf %309, %1 : vector<32x32xf32>
    %cst_101 = arith.constant dense<0xFF800000> : vector<32xf32>
    %311 = vector.multi_reduction <maximumf>, %310, %cst_101 [1] : vector<32x32xf32> to vector<32xf32>
    %312 = vector.shape_cast %311 : vector<32xf32> to vector<32x1xf32>
    %313 = vector.broadcast %312 : vector<32x1xf32> to vector<32x32xf32>
    %314 = arith.subf %310, %313 : vector<32x32xf32>
    %315 = math.exp %314 : vector<32x32xf32>
    %cst_102 = arith.constant dense<0.000000e+00> : vector<32xf32>
    %316 = vector.multi_reduction <add>, %315, %cst_102 [1] : vector<32x32xf32> to vector<32xf32>
    %317 = vector.shape_cast %316 : vector<32xf32> to vector<32x1xf32>
    %318 = tpu.reciprocal %317 {approx = true} : vector<32x1xf32> -> vector<32x1xf32>
    %319 = vector.broadcast %318 : vector<32x1xf32> to vector<32x32xf32>
    %320 = arith.mulf %315, %319 : vector<32x32xf32>
    %321 = arith.addf %304, %320 : vector<32x32xf32>
    %cst_103 = arith.constant dense<0.000000e+00> : vector<32x32xf32>
    %322 = tpu.matmul %320, %308, %cst_103 {dimension_numbers = #tpu.dot_dimension_numbers<[1], [0], [0], [1], [0, 0, 1, 1], [], []>} : vector<32x32xf32>, vector<32x32xf32>, vector<32x32xf32> -> vector<32x32xf32>
    %323 = arith.addf %305, %322 : vector<32x32xf32>
    %324 = vector.extract_strided_slice %289 {offsets = [0, 16], sizes = [32, 8], strides = [1, 1]} : vector<32x192xf32> to vector<32x8xf32>
    %325 = vector.extract_strided_slice %289 {offsets = [0, 48], sizes = [32, 8], strides = [1, 1]} : vector<32x192xf32> to vector<32x8xf32>
    %326 = vector.extract_strided_slice %289 {offsets = [0, 128], sizes = [32, 32], strides = [1, 1]} : vector<32x192xf32> to vector<32x32xf32>
    %cst_104 = arith.constant dense<0.000000e+00> : vector<32x32xf32>
    %327 = tpu.matmul %324, %325, %cst_104 {dimension_numbers = #tpu.dot_dimension_numbers<[1], [1], [0], [0], [0, 0, 1, 0], [], []>} : vector<32x8xf32>, vector<32x8xf32>, vector<32x32xf32> -> vector<32x32xf32>
    %328 = arith.addf %327, %1 : vector<32x32xf32>
    %cst_105 = arith.constant dense<0xFF800000> : vector<32xf32>
    %329 = vector.multi_reduction <maximumf>, %328, %cst_105 [1] : vector<32x32xf32> to vector<32xf32>
    %330 = vector.shape_cast %329 : vector<32xf32> to vector<32x1xf32>
    %331 = vector.broadcast %330 : vector<32x1xf32> to vector<32x32xf32>
    %332 = arith.subf %328, %331 : vector<32x32xf32>
    %333 = math.exp %332 : vector<32x32xf32>
    %cst_106 = arith.constant dense<0.000000e+00> : vector<32xf32>
    %334 = vector.multi_reduction <add>, %333, %cst_106 [1] : vector<32x32xf32> to vector<32xf32>
    %335 = vector.shape_cast %334 : vector<32xf32> to vector<32x1xf32>
    %336 = tpu.reciprocal %335 {approx = true} : vector<32x1xf32> -> vector<32x1xf32>
    %337 = vector.broadcast %336 : vector<32x1xf32> to vector<32x32xf32>
    %338 = arith.mulf %333, %337 : vector<32x32xf32>
    %339 = arith.addf %321, %338 : vector<32x32xf32>
    %cst_107 = arith.constant dense<0.000000e+00> : vector<32x32xf32>
    %340 = tpu.matmul %338, %326, %cst_107 {dimension_numbers = #tpu.dot_dimension_numbers<[1], [0], [0], [1], [0, 0, 1, 1], [], []>} : vector<32x32xf32>, vector<32x32xf32>, vector<32x32xf32> -> vector<32x32xf32>
    %341 = arith.addf %323, %340 : vector<32x32xf32>
    %342 = vector.extract_strided_slice %289 {offsets = [0, 24], sizes = [32, 8], strides = [1, 1]} : vector<32x192xf32> to vector<32x8xf32>
    %343 = vector.extract_strided_slice %289 {offsets = [0, 56], sizes = [32, 8], strides = [1, 1]} : vector<32x192xf32> to vector<32x8xf32>
    %344 = vector.extract_strided_slice %289 {offsets = [0, 160], sizes = [32, 32], strides = [1, 1]} : vector<32x192xf32> to vector<32x32xf32>
    %cst_108 = arith.constant dense<0.000000e+00> : vector<32x32xf32>
    %345 = tpu.matmul %342, %343, %cst_108 {dimension_numbers = #tpu.dot_dimension_numbers<[1], [1], [0], [0], [0, 0, 1, 0], [], []>} : vector<32x8xf32>, vector<32x8xf32>, vector<32x32xf32> -> vector<32x32xf32>
    %346 = arith.addf %345, %1 : vector<32x32xf32>
    %cst_109 = arith.constant dense<0xFF800000> : vector<32xf32>
    %347 = vector.multi_reduction <maximumf>, %346, %cst_109 [1] : vector<32x32xf32> to vector<32xf32>
    %348 = vector.shape_cast %347 : vector<32xf32> to vector<32x1xf32>
    %349 = vector.broadcast %348 : vector<32x1xf32> to vector<32x32xf32>
    %350 = arith.subf %346, %349 : vector<32x32xf32>
    %351 = math.exp %350 : vector<32x32xf32>
    %cst_110 = arith.constant dense<0.000000e+00> : vector<32xf32>
    %352 = vector.multi_reduction <add>, %351, %cst_110 [1] : vector<32x32xf32> to vector<32xf32>
    %353 = vector.shape_cast %352 : vector<32xf32> to vector<32x1xf32>
    %354 = tpu.reciprocal %353 {approx = true} : vector<32x1xf32> -> vector<32x1xf32>
    %355 = vector.broadcast %354 : vector<32x1xf32> to vector<32x32xf32>
    %356 = arith.mulf %351, %355 : vector<32x32xf32>
    %357 = arith.addf %339, %356 : vector<32x32xf32>
    %cst_111 = arith.constant dense<0.000000e+00> : vector<32x32xf32>
    %358 = tpu.matmul %356, %344, %cst_111 {dimension_numbers = #tpu.dot_dimension_numbers<[1], [0], [0], [1], [0, 0, 1, 1], [], []>} : vector<32x32xf32>, vector<32x32xf32>, vector<32x32xf32> -> vector<32x32xf32>
    %359 = arith.addf %341, %358 : vector<32x32xf32>
    %360 = vector.broadcast %286 : vector<1x32xf32> to vector<32x32xf32>
    %361 = arith.addf %359, %360 : vector<32x32xf32>
    %cst_112 = arith.constant dense<0.000000e+00> : vector<32x4xf32>
    %362 = tpu.matmul %357, %2, %cst_112 {dimension_numbers = #tpu.dot_dimension_numbers<[1], [0], [0], [1], [0, 0, 1, 1], [], []>} : vector<32x32xf32>, vector<32x4xf32>, vector<32x4xf32> -> vector<32x4xf32>
    %363 = vector.shape_cast %362 : vector<32x4xf32> to vector<4x8x4xf32>
    %c0_113 = arith.constant 0 : index
    %c0_114 = arith.constant 0 : index
    %c0_115 = arith.constant 0 : index
    %364 = vector.load %arg4[%c0_113, %c0_114, %c0_115] : memref<4x8x4xf32, #tpu.memory_space<vmem>>, vector<4x8x4xf32>
    tpu.vector_store %arg4[%c0_113, %c0_114, %c0_115], %363 {strides = array<i32>} : memref<4x8x4xf32, #tpu.memory_space<vmem>>, vector<4x8x4xf32>,
    %cst_116 = arith.constant 3.000000e-01 : f32
    %365 = vector.broadcast %cst_116 : f32 to vector<32x32xf32>
    %366 = arith.mulf %365, %361 : vector<32x32xf32>
    %367 = arith.addf %283, %366 : vector<32x32xf32>
    %368 = vector.shape_cast %367 : vector<32x32xf32> to vector<4x8x32xf32>
    %c0_117 = arith.constant 0 : index
    %c0_118 = arith.constant 0 : index
    %c0_119 = arith.constant 0 : index
    %369 = vector.load %arg3[%c0_117, %c0_118, %c0_119] : memref<4x8x32xf32, #tpu.memory_space<vmem>>, vector<4x8x32xf32>
    tpu.vector_store %arg3[%c0_117, %c0_118, %c0_119], %368 {strides = array<i32>} : memref<4x8x32xf32, #tpu.memory_space<vmem>>, vector<4x8x32xf32>,
    %cst_120 = arith.constant dense<0.000000e+00> : vector<4x32xf32>
    %370 = tpu.matmul %3, %361, %cst_120 {dimension_numbers = #tpu.dot_dimension_numbers<[1], [0], [0], [1], [0, 0, 1, 1], [], []>} : vector<4x32xf32>, vector<32x32xf32>, vector<4x32xf32> -> vector<4x32xf32>
    %cst_121 = arith.constant dense<0.000000e+00> : vector<4x32xf32>
    %371 = tpu.matmul %3, %283, %cst_121 {dimension_numbers = #tpu.dot_dimension_numbers<[1], [0], [0], [1], [0, 0, 1, 1], [], []>} : vector<4x32xf32>, vector<32x32xf32>, vector<4x32xf32> -> vector<4x32xf32>
    %c192 = arith.constant 192 : index
    %c0_122 = arith.constant 0 : index
    %372 = vector.load %arg2[%c192, %c0_122] : memref<429x64xf32, #tpu.memory_space<vmem>>, vector<32x48xf32>
    %cst_123 = arith.constant dense<0.000000e+00> : vector<4x48xf32>
    %373 = tpu.matmul %370, %372, %cst_123 {dimension_numbers = #tpu.dot_dimension_numbers<[1], [0], [0], [1], [0, 0, 1, 1], [], []>} : vector<4x32xf32>, vector<32x48xf32>, vector<4x48xf32> -> vector<4x48xf32>
    %c224 = arith.constant 224 : index
    %c0_124 = arith.constant 0 : index
    %374 = vector.load %arg2[%c224, %c0_124] : memref<429x64xf32, #tpu.memory_space<vmem>>, vector<32x48xf32>
    %cst_125 = arith.constant dense<0.000000e+00> : vector<4x48xf32>
    %375 = tpu.matmul %371, %374, %cst_125 {dimension_numbers = #tpu.dot_dimension_numbers<[1], [0], [0], [1], [0, 0, 1, 1], [], []>} : vector<4x32xf32>, vector<32x48xf32>, vector<4x48xf32> -> vector<4x48xf32>
    %376 = arith.addf %373, %375 : vector<4x48xf32>
    %c427 = arith.constant 427 : index
    %c0_126 = arith.constant 0 : index
    %377 = vector.load %arg2[%c427, %c0_126] : memref<429x64xf32, #tpu.memory_space<vmem>>, vector<1x48xf32>
    %378 = vector.broadcast %377 : vector<1x48xf32> to vector<4x48xf32>
    %379 = arith.addf %376, %378 : vector<4x48xf32>
    %cst_127 = arith.constant 0.000000e+00 : f32
    %380 = vector.broadcast %cst_127 : f32 to vector<4x48xf32>
    %381 = arith.maximumf %379, %380 : vector<4x48xf32>
    %c256 = arith.constant 256 : index
    %c0_128 = arith.constant 0 : index
    %382 = vector.load %arg2[%c256, %c0_128] : memref<429x64xf32, #tpu.memory_space<vmem>>, vector<48x6xf32>
    %cst_129 = arith.constant dense<0.000000e+00> : vector<4x6xf32>
    %383 = tpu.matmul %381, %382, %cst_129 {dimension_numbers = #tpu.dot_dimension_numbers<[1], [0], [0], [1], [0, 0, 1, 1], [], []>} : vector<4x48xf32>, vector<48x6xf32>, vector<4x6xf32> -> vector<4x6xf32>
    %c428 = arith.constant 428 : index
    %c0_130 = arith.constant 0 : index
    %384 = vector.load %arg2[%c428, %c0_130] : memref<429x64xf32, #tpu.memory_space<vmem>>, vector<1x6xf32>
    %385 = vector.broadcast %384 : vector<1x6xf32> to vector<4x6xf32>
    %386 = arith.addf %383, %385 : vector<4x6xf32>
    %c0_131 = arith.constant 0 : index
    %c0_132 = arith.constant 0 : index
    %387 = vector.load %arg5[%c0_131, %c0_132] : memref<4x6xf32, #tpu.memory_space<vmem>>, vector<4x6xf32>
    tpu.vector_store %arg5[%c0_131, %c0_132], %386 {strides = array<i32>} : memref<4x6xf32, #tpu.memory_space<vmem>>, vector<4x6xf32>,
    return
  }
}

</mosaic_0001>

<llo_original>
// kernel: tpu_custom_call.1
$region0: #{tpu_custom_call.1}
  #allocation0 [shape = 'u32[]', space=smem, size = 0x4, offset = 0x4, fixed_abs, tag = 'smem constant byte address 0x4 - core index']
  #allocation1 [shape = 'u32[144,128]{1,0:T(1,128)}', space=vmem, size = 0x12000, scoped, tag = 'internal scratch']
  %s0 = inlined_call_operand.vmem [shape: f32[4,8,32], index: 0, kind: input, shape index: {}]
  %s1 = inlined_call_operand.vmem [shape: f32[99,192], index: 1, kind: input, shape index: {}]
  %s2 = inlined_call_operand.vmem [shape: f32[429,64], index: 2, kind: input, shape index: {}]
  %s3 = inlined_call_operand.hbm [shape: f32[4,8,32], index: 3, kind: output, shape index: {0}]
  %s4 = inlined_call_operand.vmem [shape: f32[4,8,4], index: 4, kind: output, shape index: {1}]
  %s5 = inlined_call_operand.hbm [shape: f32[4,6], index: 5, kind: output, shape index: {2}]
  %6 = xla_tuple %s3, %s4, %s5
  %s7 = sld [smem:[#allocation0]]
  $region38: #{tpu_custom_call.1} parent=0
    _
  %s9 = ssub.s32 1, %s7
  %s10 = scalar_select 0, %s9, %s7
  $region1: #{tpu_custom_call.1} parent=0
    #allocation2 [shape = 'u8[16384]{0}', space=vmem, size = 0x4000, scoped, tag = 'output window, operand 0, single buffered']
    #allocation3 [shape = 's32[1]{0}', space=sflag, size = 0x4, scoped, tag = 'scoped memory for tpu_custom_call.1']
    #allocation4 [shape = 'u8[2048]{0}', space=vmem, size = 0x800, scoped, tag = 'output window, operand 2, single buffered']
    #allocation5 [shape = 's32[1]{0}', space=sflag, size = 0x4, scoped, tag = 'scoped memory for tpu_custom_call.1']
    %11 = vsyncpa [#allocation3], 0
    %12 = vsyncpa [#allocation5], 0
    // Predicated region
    $region2: #{tpu_custom_call.1} parent=1 // pred_check
      _
    $region3: #{tpu_custom_call.1} parent=1 // pred_check_branch
      %14 = sbr.rel (0) target = $region5
    $region4: #{tpu_custom_call.1} parent=1 // pred_region
      _
    $region5: #{tpu_custom_call.1} parent=1 // pred_fallthru
      _
    // Predicated region
    $region6: #{tpu_custom_call.1} parent=1 // pred_check
      _
    $region7: #{tpu_custom_call.1} parent=1 // pred_check_branch
      %16 = sbr.rel (0) target = $region9
    $region8: #{tpu_custom_call.1} parent=1 // pred_region
      _
    $region9: #{tpu_custom_call.1} parent=1 // pred_fallthru
      _
    // Predicated region
    $region10: #{tpu_custom_call.1} parent=1 // pred_check
      _
    $region11: #{tpu_custom_call.1} parent=1 // pred_check_branch
      %18 = sbr.rel (0) target = $region13
    $region12: #{tpu_custom_call.1} parent=1 // pred_region
      _
    $region13: #{tpu_custom_call.1} parent=1 // pred_fallthru
      _
    %v19 = vld [vmem:[%s2 + $0x130] sm:$0xff]
    %v20 = vld [vmem:[%s2 + $0x138] sm:$0xff]
    %v21 = vld [vmem:[%s2 + $0x140] sm:$0xff]
    %v22 = vld [vmem:[%s2 + $0x148] sm:$0xff]
    %v23 = vld [vmem:[%s2 + $0x150] sm:$0xff]
    %v24 = vld [vmem:[%s2 + $0x158] sm:$0xff]
    %v25 = vld [vmem:[%s2 + $0x160] sm:$0xff]
    %v26 = vld [vmem:[%s2 + $0x168] sm:$0xff]
    %v27 = vld [vmem:[%s2 + $0x170] sm:$0xff]
    %v28 = vld [vmem:[%s2 + $0x178] sm:$0xff]
    %v29 = vld [vmem:[%s2 + $0x180] sm:$0xff]
    %v30 = vld [vmem:[%s2 + $0x188] sm:$0xff]
    %v31 = vld [vmem:[%s2 + $0x198] sm:$0xf]
    %v32 = vld [vmem:[%s0] sm:$0xff]
    %v33 = vld [vmem:[%s0 + $0x8] sm:$0xff]
    %v34 = vld [vmem:[%s0 + $0x10] sm:$0xff]
    %v35 = vld [vmem:[%s0 + $0x18] sm:$0xff]
    %v36 = vld [vmem:[%s2 + $0x190] sm:$0xff]
    %v37 = vadd.f32 %v32, %v36
    %v38 = vadd.f32 %v33, %v36
    %v39 = vadd.f32 %v34, %v36
    %v40 = vadd.f32 %v35, %v36
    %v41 = vld [vmem:[%s1] sm:$0xff]
    %v42 = vld [vmem:[%s1 + $0x8] sm:$0xff]
    %v43 = vld [vmem:[%s1 + $0x10] sm:$0xff]
    %v44 = vld [vmem:[%s1 + $0x18] sm:$0xff]
    %v45 = vld [vmem:[%s1 + $0x20] sm:$0xff]
    %v46 = vld [vmem:[%s1 + $0x28] sm:$0xff]
    %v47 = vld [vmem:[%s1 + $0x30] sm:$0xff]
    %v48 = vld [vmem:[%s1 + $0x38] sm:$0xff]
    %s49 = scalar_lea.vmem %s1, 192
    %v50 = vld [vmem:[%s49] ss:$8 sm:$0x3]
    %v51 = vld [vmem:[%s2 + $0x19c] sm:$0x1]
    %v53 = vlaneseq
    %v54 = vshrl.u32 %v53, 7
    %v55 = vsub.s32 0, %v54
    %v56 = vrot.slane %v50, %v55
    %v57 = vlaneseq
    %v58 = vshrl.u32 %v57, 7
    %v59 = vsub.s32 1, %v58
    %v60 = vrot.slane %v50, %v59
    %vm63 = vcmask 261120
    %v65 = vsel %vm63, %v37, 0
    %v68 = vsel %vm63, %v38, 0
    %v71 = vsel %vm63, %v39, 0
    %v74 = vsel %vm63, %v40, 0
    %76 = vmatprep.subr.mxu0 0.0
    %77 = vmatpush1.msra.mxu0 0.0
    %78 = vmatprep.subr.mxu0 0.0
    %79 = vmatpush1.msra.mxu0 0.0
    %80 = vmatprep.subr.mxu0 0.0
    %81 = vmatpush1.msra.mxu0 0.0
    %82 = vmatprep.subr.mxu0 0.0
    %83 = vmatpush1.msra.mxu0 0.0
    %84 = vmatprep.subr.mxu0 0.0
    %85 = vmatpush1.msra.mxu0 0.0
    %86 = vmatprep.subr.mxu0 0.0
    %87 = vmatpush1.msra.mxu0 0.0
    %88 = vmatprep.subr.mxu0 0.0
    %89 = vmatpush1.msra.mxu0 0.0
    %90 = vmatprep.subr.mxu0 0.0
    %91 = vmatpush1.msra.mxu0 0.0
    %92 = vmatprep.subr.mxu0 0.0
    %93 = vmatpush1.msra.mxu0 0.0
    %94 = vmatprep.subr.mxu0 0.0
    %95 = vmatpush1.msra.mxu0 0.0
    %96 = vmatprep.subr.mxu0 0.0
    %97 = vmatpush1.msra.mxu0 0.0
    %98 = vmatprep.subr.mxu0 0.0
    %99 = vmatpush1.msra.mxu0 0.0
    %100 = vmatprep.subr.mxu0 %v48
    %101 = vmatpush1.msra.mxu0 %v47
    %102 = vmatprep.subr.mxu0 %v46
    %103 = vmatpush1.msra.mxu0 %v45
    %104 = vmatprep.subr.mxu0 %v44
    %105 = vmatpush1.msra.mxu0 %v43
    %106 = vmatprep.subr.mxu0 %v42
    %107 = vmatpush1.msra.mxu0 %v41
    %108 = vmatprep.subr.mxu0 0.0
    %109 = vmatpush2.msra.mxu0 0.0
    %110 = vmatprep.subr.mxu0 0.0
    %111 = vmatpush2.msra.mxu0 0.0
    %112 = vmatprep.subr.mxu0 0.0
    %113 = vmatpush2.msra.mxu0 0.0
    %114 = vmatprep.subr.mxu0 0.0
    %115 = vmatpush2.msra.mxu0 0.0
    %116 = vmatprep.subr.mxu0 0.0
    %117 = vmatpush2.msra.mxu0 0.0
    %118 = vmatprep.subr.mxu0 0.0
    %119 = vmatpush2.msra.mxu0 0.0
    %120 = vmatprep.subr.mxu0 0.0
    %121 = vmatpush2.msra.mxu0 0.0
    %122 = vmatprep.subr.mxu0 0.0
    %123 = vmatpush2.msra.mxu0 0.0
    %124 = vmatprep.subr.mxu0 0.0
    %125 = vmatpush2.msra.mxu0 0.0
    %126 = vmatprep.subr.mxu0 0.0
    %127 = vmatpush2.msra.mxu0 0.0
    %128 = vmatprep.subr.mxu0 0.0
    %129 = vmatpush2.msra.mxu0 0.0
    %130 = vmatprep.subr.mxu0 0.0
    %131 = vmatpush2.msra.mxu0 0.0
    %132 = vmatprep.subr.mxu0 0.0
    %133 = vmatpush2.msra.mxu0 0.0
    %134 = vmatprep.subr.mxu0 0.0
    %135 = vmatpush2.msra.mxu0 0.0
    %136 = vmatprep.subr.mxu0 0.0
    %137 = vmatpush2.msra.mxu0 0.0
    %138 = vmatprep.subr.mxu0 0.0
    %139 = vmatpush2.msra.mxu0 0.0
    %140 = vmatprep.mubr.f32.mxu0 0.0
    %141 = vmatmul.mubr.f32.gmra.mxu0 %v65
    %v142 = vpop.f32.mrf.mxu0
    %v143 = vadd.f32 %v56, %v142
    %v144 = vpop.f32.mrf.mxu0
    %v145 = vadd.f32 %v60, %v144
    %146 = vmatprep.mubr.f32.mxu0 0.0
    %147 = vmatmul.mubr.f32.gmra.mxu0 %v68
    %v148 = vpop.f32.mrf.mxu0
    %v149 = vadd.f32 %v56, %v148
    %v150 = vpop.f32.mrf.mxu0
    %v151 = vadd.f32 %v60, %v150
    %152 = vmatprep.mubr.f32.mxu0 0.0
    %153 = vmatmul.mubr.f32.gmra.mxu0 %v71
    %v154 = vpop.f32.mrf.mxu0
    %v155 = vadd.f32 %v56, %v154
    %v156 = vpop.f32.mrf.mxu0
    %v157 = vadd.f32 %v60, %v156
    %158 = vmatprep.mubr.f32.mxu0 0.0
    %159 = vmatmul.mubr.f32.gmra.mxu0 %v74
    %v160 = vpop.f32.mrf.mxu0
    %v161 = vadd.f32 %v56, %v160
    %v162 = vpop.f32.mrf.mxu0
    %v163 = vadd.f32 %v60, %v162
    %164 = vdwg.mxu0
    %169 = vrot.lane.b32.xlu0 %v143, 96
    %v170 = vpop.permute.xlu0 %169
    %171 = vrot.lane.b32.xlu0 %v149, 96
    %v172 = vpop.permute.xlu0 %171
    %173 = vrot.lane.b32.xlu0 %v155, 96
    %v174 = vpop.permute.xlu0 %173
    %175 = vrot.lane.b32.xlu0 %v161, 96
    %v176 = vpop.permute.xlu0 %175
    %vm177 = vcmask 64512
    %v178 = vsel %vm177, %v143, 0
    %v180 = vsel %vm177, %v149, 0
    %v182 = vsel %vm177, %v155, 0
    %v184 = vsel %vm177, %v161, 0
    %v186 = vsel %vm177, %v170, 0
    %v188 = vsel %vm177, %v172, 0
    %v190 = vsel %vm177, %v174, 0
    %v192 = vsel %vm177, %v176, 0
    %194 = vmatprep.subr.mxu0 0.0
    %195 = vmatpush1.xpose.msra.mxu0 0.0
    %196 = vmatprep.subr.mxu0 0.0
    %197 = vmatpush1.xpose.msra.mxu0 0.0
    %198 = vmatprep.subr.mxu0 0.0
    %199 = vmatpush1.xpose.msra.mxu0 0.0
    %200 = vmatprep.subr.mxu0 0.0
    %201 = vmatpush1.xpose.msra.mxu0 0.0
    %202 = vmatprep.subr.mxu0 0.0
    %203 = vmatpush1.xpose.msra.mxu0 0.0
    %204 = vmatprep.subr.mxu0 0.0
    %205 = vmatpush1.xpose.msra.mxu0 0.0
    %206 = vmatprep.subr.mxu0 0.0
    %207 = vmatpush1.xpose.msra.mxu0 0.0
    %208 = vmatprep.subr.mxu0 0.0
    %209 = vmatpush1.xpose.msra.mxu0 0.0
    %210 = vmatprep.subr.mxu0 0.0
    %211 = vmatpush1.xpose.msra.mxu0 0.0
    %212 = vmatprep.subr.mxu0 0.0
    %213 = vmatpush1.xpose.msra.mxu0 0.0
    %214 = vmatprep.subr.mxu0 0.0
    %215 = vmatpush1.xpose.msra.mxu0 0.0
    %216 = vmatprep.subr.mxu0 0.0
    %217 = vmatpush1.xpose.msra.mxu0 0.0
    %218 = vmatprep.subr.mxu0 0.0
    %219 = vmatpush1.xpose.msra.mxu0 %v192
    %220 = vmatprep.subr.mxu0 0.0
    %221 = vmatpush1.xpose.msra.mxu0 %v190
    %222 = vmatprep.subr.mxu0 0.0
    %223 = vmatpush1.xpose.msra.mxu0 %v188
    %224 = vmatprep.subr.mxu0 0.0
    %225 = vmatpush1.xpose.msra.mxu0 %v186
    %226 = vmatprep.subr.mxu0 0.0
    %227 = vmatpush2.xpose.msra.mxu0 0.0
    %228 = vmatprep.subr.mxu0 0.0
    %229 = vmatpush2.xpose.msra.mxu0 0.0
    %230 = vmatprep.subr.mxu0 0.0
    %231 = vmatpush2.xpose.msra.mxu0 0.0
    %232 = vmatprep.subr.mxu0 0.0
    %233 = vmatpush2.xpose.msra.mxu0 0.0
    %234 = vmatprep.subr.mxu0 0.0
    %235 = vmatpush2.xpose.msra.mxu0 0.0
    %236 = vmatprep.subr.mxu0 0.0
    %237 = vmatpush2.xpose.msra.mxu0 0.0
    %238 = vmatprep.subr.mxu0 0.0
    %239 = vmatpush2.xpose.msra.mxu0 0.0
    %240 = vmatprep.subr.mxu0 0.0
    %241 = vmatpush2.xpose.msra.mxu0 0.0
    %242 = vmatprep.subr.mxu0 0.0
    %243 = vmatpush2.xpose.msra.mxu0 0.0
    %244 = vmatprep.subr.mxu0 0.0
    %245 = vmatpush2.xpose.msra.mxu0 0.0
    %246 = vmatprep.subr.mxu0 0.0
    %247 = vmatpush2.xpose.msra.mxu0 0.0
    %248 = vmatprep.subr.mxu0 0.0
    %249 = vmatpush2.xpose.msra.mxu0 0.0
    %250 = vmatprep.subr.mxu0 0.0
    %251 = vmatpush2.xpose.msra.mxu0 0.0
    %252 = vmatprep.subr.mxu0 0.0
    %253 = vmatpush2.xpose.msra.mxu0 0.0
    %254 = vmatprep.subr.mxu0 0.0
    %255 = vmatpush2.xpose.msra.mxu0 0.0
    %256 = vmatprep.subr.mxu0 0.0
    %257 = vmatpush2.xpose.msra.mxu0 0.0
    %258 = vmatprep.mubr.f32.mxu0 0.0
    %259 = vmatmul.mubr.f32.gmra.mxu0 %v178
    %v260 = vpop.f32.mrf.mxu0
    %v261 = vadd.f32 %v19, %v260
    %v262 = vpop.f32.mrf.mxu0
    %263 = vmatprep.mubr.f32.mxu0 0.0
    %264 = vmatmul.mubr.f32.gmra.mxu0 %v180
    %v265 = vpop.f32.mrf.mxu0
    %v266 = vadd.f32 %v20, %v265
    %v267 = vpop.f32.mrf.mxu0
    %268 = vmatprep.mubr.f32.mxu0 0.0
    %269 = vmatmul.mubr.f32.gmra.mxu0 %v182
    %v270 = vpop.f32.mrf.mxu0
    %v271 = vadd.f32 %v21, %v270
    %v272 = vpop.f32.mrf.mxu0
    %273 = vmatprep.mubr.f32.mxu0 0.0
    %274 = vmatmul.mubr.f32.gmra.mxu0 %v184
    %v275 = vpop.f32.mrf.mxu0
    %v276 = vadd.f32 %v22, %v275
    %v277 = vpop.f32.mrf.mxu0
    %278 = vdwg.mxu0
    %v279 = vsel %vm63, %v261, -inf
    %280 = vmax.xlane.f32.xlu0 %v279
    %v281 = vpop.xlane.xlu0 %280
    %v282 = vsel %vm63, %v266, -inf
    %283 = vmax.xlane.f32.xlu0 %v282
    %v284 = vpop.xlane.xlu0 %283
    %v285 = vsel %vm63, %v271, -inf
    %286 = vmax.xlane.f32.xlu0 %v285
    %v287 = vpop.xlane.xlu0 %286
    %v288 = vsel %vm63, %v276, -inf
    %289 = vmax.xlane.f32.xlu0 %v288
    %v290 = vpop.xlane.xlu0 %289
    %v291 = vsub.f32 %v261, %v281
    %v292 = vsub.f32 %v266, %v284
    %v293 = vsub.f32 %v271, %v287
    %v294 = vsub.f32 %v276, %v290
    %v295 = vmul.f32 %v291, 1.442695
    %v296 = vpow.pop %v295
    %v297 = vmul.f32 %v292, 1.442695
    %v298 = vpow.pop %v297
    %v299 = vmul.f32 %v293, 1.442695
    %v300 = vpow.pop %v299
    %v301 = vmul.f32 %v294, 1.442695
    %v302 = vpow.pop %v301
    %v303 = vsel %vm63, %v296, 0.0
    %304 = vadd.xlane.f32.xlu0 %v303
    %v305 = vpop.xlane.xlu0 %304
    %v306 = vsel %vm63, %v298, 0.0
    %307 = vadd.xlane.f32.xlu0 %v306
    %v308 = vpop.xlane.xlu0 %307
    %v309 = vsel %vm63, %v300, 0.0
    %310 = vadd.xlane.f32.xlu0 %v309
    %v311 = vpop.xlane.xlu0 %310
    %v312 = vsel %vm63, %v302, 0.0
    %313 = vadd.xlane.f32.xlu0 %v312
    %v314 = vpop.xlane.xlu0 %313
    %v315 = vrcp.pop %v305
    %v316 = vrcp.pop %v308
    %v317 = vrcp.pop %v311
    %v318 = vrcp.pop %v314
    %v319 = vmul.f32 %v296, %v315
    %v320 = vmul.f32 %v298, %v316
    %v321 = vmul.f32 %v300, %v317
    %v322 = vmul.f32 %v302, %v318
    %323 = vrot.lane.b32.xlu0 %v143, 120
    %v324 = vpop.permute.xlu0 %323
    %325 = vrot.lane.b32.xlu0 %v149, 120
    %v326 = vpop.permute.xlu0 %325
    %327 = vrot.lane.b32.xlu0 %v155, 120
    %v328 = vpop.permute.xlu0 %327
    %329 = vrot.lane.b32.xlu0 %v161, 120
    %v330 = vpop.permute.xlu0 %329
    %331 = vrot.lane.b32.xlu0 %v143, 88
    %v332 = vpop.permute.xlu0 %331
    %333 = vrot.lane.b32.xlu0 %v149, 88
    %v334 = vpop.permute.xlu0 %333
    %335 = vrot.lane.b32.xlu0 %v155, 88
    %v336 = vpop.permute.xlu0 %335
    %337 = vrot.lane.b32.xlu0 %v161, 88
    %v338 = vpop.permute.xlu0 %337
    %v339 = vsel %vm177, %v324, 0
    %v341 = vsel %vm177, %v326, 0
    %v343 = vsel %vm177, %v328, 0
    %v345 = vsel %vm177, %v330, 0
    %v347 = vsel %vm177, %v332, 0
    %v349 = vsel %vm177, %v334, 0
    %v351 = vsel %vm177, %v336, 0
    %v353 = vsel %vm177, %v338, 0
    %355 = vmatprep.subr.mxu0 0.0
    %356 = vmatpush1.xpose.msra.mxu0 0.0
    %357 = vmatprep.subr.mxu0 0.0
    %358 = vmatpush1.xpose.msra.mxu0 0.0
    %359 = vmatprep.subr.mxu0 0.0
    %360 = vmatpush1.xpose.msra.mxu0 0.0
    %361 = vmatprep.subr.mxu0 0.0
    %362 = vmatpush1.xpose.msra.mxu0 0.0
    %363 = vmatprep.subr.mxu0 0.0
    %364 = vmatpush1.xpose.msra.mxu0 0.0
    %365 = vmatprep.subr.mxu0 0.0
    %366 = vmatpush1.xpose.msra.mxu0 0.0
    %367 = vmatprep.subr.mxu0 0.0
    %368 = vmatpush1.xpose.msra.mxu0 0.0
    %369 = vmatprep.subr.mxu0 0.0
    %370 = vmatpush1.xpose.msra.mxu0 0.0
    %371 = vmatprep.subr.mxu0 0.0
    %372 = vmatpush1.xpose.msra.mxu0 0.0
    %373 = vmatprep.subr.mxu0 0.0
    %374 = vmatpush1.xpose.msra.mxu0 0.0
    %375 = vmatprep.subr.mxu0 0.0
    %376 = vmatpush1.xpose.msra.mxu0 0.0
    %377 = vmatprep.subr.mxu0 0.0
    %378 = vmatpush1.xpose.msra.mxu0 0.0
    %379 = vmatprep.subr.mxu0 0.0
    %380 = vmatpush1.xpose.msra.mxu0 %v353
    %381 = vmatprep.subr.mxu0 0.0
    %382 = vmatpush1.xpose.msra.mxu0 %v351
    %383 = vmatprep.subr.mxu0 0.0
    %384 = vmatpush1.xpose.msra.mxu0 %v349
    %385 = vmatprep.subr.mxu0 0.0
    %386 = vmatpush1.xpose.msra.mxu0 %v347
    %387 = vmatprep.subr.mxu0 0.0
    %388 = vmatpush2.xpose.msra.mxu0 0.0
    %389 = vmatprep.subr.mxu0 0.0
    %390 = vmatpush2.xpose.msra.mxu0 0.0
    %391 = vmatprep.subr.mxu0 0.0
    %392 = vmatpush2.xpose.msra.mxu0 0.0
    %393 = vmatprep.subr.mxu0 0.0
    %394 = vmatpush2.xpose.msra.mxu0 0.0
    %395 = vmatprep.subr.mxu0 0.0
    %396 = vmatpush2.xpose.msra.mxu0 0.0
    %397 = vmatprep.subr.mxu0 0.0
    %398 = vmatpush2.xpose.msra.mxu0 0.0
    %399 = vmatprep.subr.mxu0 0.0
    %400 = vmatpush2.xpose.msra.mxu0 0.0
    %401 = vmatprep.subr.mxu0 0.0
    %402 = vmatpush2.xpose.msra.mxu0 0.0
    %403 = vmatprep.subr.mxu0 0.0
    %404 = vmatpush2.xpose.msra.mxu0 0.0
    %405 = vmatprep.subr.mxu0 0.0
    %406 = vmatpush2.xpose.msra.mxu0 0.0
    %407 = vmatprep.subr.mxu0 0.0
    %408 = vmatpush2.xpose.msra.mxu0 0.0
    %409 = vmatprep.subr.mxu0 0.0
    %410 = vmatpush2.xpose.msra.mxu0 0.0
    %411 = vmatprep.subr.mxu0 0.0
    %412 = vmatpush2.xpose.msra.mxu0 0.0
    %413 = vmatprep.subr.mxu0 0.0
    %414 = vmatpush2.xpose.msra.mxu0 0.0
    %415 = vmatprep.subr.mxu0 0.0
    %416 = vmatpush2.xpose.msra.mxu0 0.0
    %417 = vmatprep.subr.mxu0 0.0
    %418 = vmatpush2.xpose.msra.mxu0 0.0
    %419 = vmatprep.mubr.f32.mxu0 0.0
    %420 = vmatmul.mubr.f32.gmra.mxu0 %v339
    %v421 = vpop.f32.mrf.mxu0
    %v422 = vadd.f32 %v19, %v421
    %v423 = vpop.f32.mrf.mxu0
    %424 = vmatprep.mubr.f32.mxu0 0.0
    %425 = vmatmul.mubr.f32.gmra.mxu0 %v341
    %v426 = vpop.f32.mrf.mxu0
    %v427 = vadd.f32 %v20, %v426
    %v428 = vpop.f32.mrf.mxu0
    %429 = vmatprep.mubr.f32.mxu0 0.0
    %430 = vmatmul.mubr.f32.gmra.mxu0 %v343
    %v431 = vpop.f32.mrf.mxu0
    %v432 = vadd.f32 %v21, %v431
    %v433 = vpop.f32.mrf.mxu0
    %434 = vmatprep.mubr.f32.mxu0 0.0
    %435 = vmatmul.mubr.f32.gmra.mxu0 %v345
    %v436 = vpop.f32.mrf.mxu0
    %v437 = vadd.f32 %v22, %v436
    %v438 = vpop.f32.mrf.mxu0
    %439 = vdwg.mxu0
    %v440 = vsel %vm63, %v422, -inf
    %441 = vmax.xlane.f32.xlu0 %v440
    %v442 = vpop.xlane.xlu0 %441
    %v443 = vsel %vm63, %v427, -inf
    %444 = vmax.xlane.f32.xlu0 %v443
    %v445 = vpop.xlane.xlu0 %444
    %v446 = vsel %vm63, %v432, -inf
    %447 = vmax.xlane.f32.xlu0 %v446
    %v448 = vpop.xlane.xlu0 %447
    %v449 = vsel %vm63, %v437, -inf
    %450 = vmax.xlane.f32.xlu0 %v449
    %v451 = vpop.xlane.xlu0 %450
    %v452 = vsub.f32 %v422, %v442
    %v453 = vsub.f32 %v427, %v445
    %v454 = vsub.f32 %v432, %v448
    %v455 = vsub.f32 %v437, %v451
    %v456 = vmul.f32 %v452, 1.442695
    %v457 = vpow.pop %v456
    %v458 = vmul.f32 %v453, 1.442695
    %v459 = vpow.pop %v458
    %v460 = vmul.f32 %v454, 1.442695
    %v461 = vpow.pop %v460
    %v462 = vmul.f32 %v455, 1.442695
    %v463 = vpow.pop %v462
    %v464 = vsel %vm63, %v457, 0.0
    %465 = vadd.xlane.f32.xlu0 %v464
    %v466 = vpop.xlane.xlu0 %465
    %v467 = vsel %vm63, %v459, 0.0
    %468 = vadd.xlane.f32.xlu0 %v467
    %v469 = vpop.xlane.xlu0 %468
    %v470 = vsel %vm63, %v461, 0.0
    %471 = vadd.xlane.f32.xlu0 %v470
    %v472 = vpop.xlane.xlu0 %471
    %v473 = vsel %vm63, %v463, 0.0
    %474 = vadd.xlane.f32.xlu0 %v473
    %v475 = vpop.xlane.xlu0 %474
    %v476 = vrcp.pop %v466
    %v477 = vrcp.pop %v469
    %v478 = vrcp.pop %v472
    %v479 = vrcp.pop %v475
    %v480 = vmul.f32 %v457, %v476
    %v481 = vmul.f32 %v459, %v477
    %v482 = vmul.f32 %v461, %v478
    %v483 = vmul.f32 %v463, %v479
    %484 = vrot.lane.b32.xlu0 %v143, 32
    %v485 = vpop.permute.xlu0 %484
    %486 = vrot.lane.b32.xlu0 %v149, 32
    %v487 = vpop.permute.xlu0 %486
    %488 = vrot.lane.b32.xlu0 %v155, 32
    %v489 = vpop.permute.xlu0 %488
    %490 = vrot.lane.b32.xlu0 %v161, 32
    %v491 = vpop.permute.xlu0 %490
    %v497 = vsel %vm63, %v480, 0
    %v500 = vsel %vm63, %v481, 0
    %v503 = vsel %vm63, %v482, 0
    %v506 = vsel %vm63, %v483, 0
    %508 = vmatprep.subr.mxu0 0.0
    %509 = vmatpush1.msra.mxu0 0.0
    %510 = vmatprep.subr.mxu0 0.0
    %511 = vmatpush1.msra.mxu0 0.0
    %512 = vmatprep.subr.mxu0 0.0
    %513 = vmatpush1.msra.mxu0 0.0
    %514 = vmatprep.subr.mxu0 0.0
    %515 = vmatpush1.msra.mxu0 0.0
    %516 = vmatprep.subr.mxu0 0.0
    %517 = vmatpush1.msra.mxu0 0.0
    %518 = vmatprep.subr.mxu0 0.0
    %519 = vmatpush1.msra.mxu0 0.0
    %520 = vmatprep.subr.mxu0 0.0
    %521 = vmatpush1.msra.mxu0 0.0
    %522 = vmatprep.subr.mxu0 0.0
    %523 = vmatpush1.msra.mxu0 0.0
    %524 = vmatprep.subr.mxu0 0.0
    %525 = vmatpush1.msra.mxu0 0.0
    %526 = vmatprep.subr.mxu0 0.0
    %527 = vmatpush1.msra.mxu0 0.0
    %528 = vmatprep.subr.mxu0 0.0
    %529 = vmatpush1.msra.mxu0 0.0
    %530 = vmatprep.subr.mxu0 0.0
    %531 = vmatpush1.msra.mxu0 0.0
    %532 = vmatprep.subr.mxu0 0.0
    %533 = vmatpush1.msra.mxu0 %v491
    %534 = vmatprep.subr.mxu0 0.0
    %535 = vmatpush1.msra.mxu0 %v489
    %536 = vmatprep.subr.mxu0 0.0
    %537 = vmatpush1.msra.mxu0 %v487
    %538 = vmatprep.subr.mxu0 0.0
    %539 = vmatpush1.msra.mxu0 %v485
    %540 = vmatprep.subr.mxu0 0.0
    %541 = vmatpush2.msra.mxu0 0.0
    %542 = vmatprep.subr.mxu0 0.0
    %543 = vmatpush2.msra.mxu0 0.0
    %544 = vmatprep.subr.mxu0 0.0
    %545 = vmatpush2.msra.mxu0 0.0
    %546 = vmatprep.subr.mxu0 0.0
    %547 = vmatpush2.msra.mxu0 0.0
    %548 = vmatprep.subr.mxu0 0.0
    %549 = vmatpush2.msra.mxu0 0.0
    %550 = vmatprep.subr.mxu0 0.0
    %551 = vmatpush2.msra.mxu0 0.0
    %552 = vmatprep.subr.mxu0 0.0
    %553 = vmatpush2.msra.mxu0 0.0
    %554 = vmatprep.subr.mxu0 0.0
    %555 = vmatpush2.msra.mxu0 0.0
    %556 = vmatprep.subr.mxu0 0.0
    %557 = vmatpush2.msra.mxu0 0.0
    %558 = vmatprep.subr.mxu0 0.0
    %559 = vmatpush2.msra.mxu0 0.0
    %560 = vmatprep.subr.mxu0 0.0
    %561 = vmatpush2.msra.mxu0 0.0
    %562 = vmatprep.subr.mxu0 0.0
    %563 = vmatpush2.msra.mxu0 0.0
    %564 = vmatprep.subr.mxu0 0.0
    %565 = vmatpush2.msra.mxu0 0.0
    %566 = vmatprep.subr.mxu0 0.0
    %567 = vmatpush2.msra.mxu0 0.0
    %568 = vmatprep.subr.mxu0 0.0
    %569 = vmatpush2.msra.mxu0 0.0
    %570 = vmatprep.subr.mxu0 0.0
    %571 = vmatpush2.msra.mxu0 0.0
    %572 = vmatprep.mubr.f32.mxu0 0.0
    %573 = vmatmul.mubr.f32.gmra.mxu0 %v497
    %v574 = vpop.f32.mrf.mxu0
    %v575 = vadd.f32 0.0, %v574
    %v576 = vpop.f32.mrf.mxu0
    %577 = vmatprep.mubr.f32.mxu0 0.0
    %578 = vmatmul.mubr.f32.gmra.mxu0 %v500
    %v579 = vpop.f32.mrf.mxu0
    %v580 = vadd.f32 0.0, %v579
    %v581 = vpop.f32.mrf.mxu0
    %582 = vmatprep.mubr.f32.mxu0 0.0
    %583 = vmatmul.mubr.f32.gmra.mxu0 %v503
    %v584 = vpop.f32.mrf.mxu0
    %v585 = vadd.f32 0.0, %v584
    %v586 = vpop.f32.mrf.mxu0
    %587 = vmatprep.mubr.f32.mxu0 0.0
    %588 = vmatmul.mubr.f32.gmra.mxu0 %v506
    %v589 = vpop.f32.mrf.mxu0
    %v590 = vadd.f32 0.0, %v589
    %v591 = vpop.f32.mrf.mxu0
    %592 = vdwg.mxu0
    %593 = vrot.lane.b32.xlu0 %v143, 64
    %v594 = vpop.permute.xlu0 %593
    %595 = vrot.lane.b32.xlu0 %v149, 64
    %v596 = vpop.permute.xlu0 %595
    %597 = vrot.lane.b32.xlu0 %v155, 64
    %v598 = vpop.permute.xlu0 %597
    %599 = vrot.lane.b32.xlu0 %v161, 64
    %v600 = vpop.permute.xlu0 %599
    %v606 = vsel %vm63, %v319, 0
    %v609 = vsel %vm63, %v320, 0
    %v612 = vsel %vm63, %v321, 0
    %v615 = vsel %vm63, %v322, 0
    %617 = vmatprep.subr.mxu0 0.0
    %618 = vmatpush1.msra.mxu0 0.0
    %619 = vmatprep.subr.mxu0 0.0
    %620 = vmatpush1.msra.mxu0 0.0
    %621 = vmatprep.subr.mxu0 0.0
    %622 = vmatpush1.msra.mxu0 0.0
    %623 = vmatprep.subr.mxu0 0.0
    %624 = vmatpush1.msra.mxu0 0.0
    %625 = vmatprep.subr.mxu0 0.0
    %626 = vmatpush1.msra.mxu0 0.0
    %627 = vmatprep.subr.mxu0 0.0
    %628 = vmatpush1.msra.mxu0 0.0
    %629 = vmatprep.subr.mxu0 0.0
    %630 = vmatpush1.msra.mxu0 0.0
    %631 = vmatprep.subr.mxu0 0.0
    %632 = vmatpush1.msra.mxu0 0.0
    %633 = vmatprep.subr.mxu0 0.0
    %634 = vmatpush1.msra.mxu0 0.0
    %635 = vmatprep.subr.mxu0 0.0
    %636 = vmatpush1.msra.mxu0 0.0
    %637 = vmatprep.subr.mxu0 0.0
    %638 = vmatpush1.msra.mxu0 0.0
    %639 = vmatprep.subr.mxu0 0.0
    %640 = vmatpush1.msra.mxu0 0.0
    %641 = vmatprep.subr.mxu0 0.0
    %642 = vmatpush1.msra.mxu0 %v600
    %643 = vmatprep.subr.mxu0 0.0
    %644 = vmatpush1.msra.mxu0 %v598
    %645 = vmatprep.subr.mxu0 0.0
    %646 = vmatpush1.msra.mxu0 %v596
    %647 = vmatprep.subr.mxu0 0.0
    %648 = vmatpush1.msra.mxu0 %v594
    %649 = vmatprep.subr.mxu0 0.0
    %650 = vmatpush2.msra.mxu0 0.0
    %651 = vmatprep.subr.mxu0 0.0
    %652 = vmatpush2.msra.mxu0 0.0
    %653 = vmatprep.subr.mxu0 0.0
    %654 = vmatpush2.msra.mxu0 0.0
    %655 = vmatprep.subr.mxu0 0.0
    %656 = vmatpush2.msra.mxu0 0.0
    %657 = vmatprep.subr.mxu0 0.0
    %658 = vmatpush2.msra.mxu0 0.0
    %659 = vmatprep.subr.mxu0 0.0
    %660 = vmatpush2.msra.mxu0 0.0
    %661 = vmatprep.subr.mxu0 0.0
    %662 = vmatpush2.msra.mxu0 0.0
    %663 = vmatprep.subr.mxu0 0.0
    %664 = vmatpush2.msra.mxu0 0.0
    %665 = vmatprep.subr.mxu0 0.0
    %666 = vmatpush2.msra.mxu0 0.0
    %667 = vmatprep.subr.mxu0 0.0
    %668 = vmatpush2.msra.mxu0 0.0
    %669 = vmatprep.subr.mxu0 0.0
    %670 = vmatpush2.msra.mxu0 0.0
    %671 = vmatprep.subr.mxu0 0.0
    %672 = vmatpush2.msra.mxu0 0.0
    %673 = vmatprep.subr.mxu0 0.0
    %674 = vmatpush2.msra.mxu0 0.0
    %675 = vmatprep.subr.mxu0 0.0
    %676 = vmatpush2.msra.mxu0 0.0
    %677 = vmatprep.subr.mxu0 0.0
    %678 = vmatpush2.msra.mxu0 0.0
    %679 = vmatprep.subr.mxu0 0.0
    %680 = vmatpush2.msra.mxu0 0.0
    %681 = vmatprep.mubr.f32.mxu0 0.0
    %682 = vmatmul.mubr.f32.gmra.mxu0 %v606
    %v683 = vpop.f32.mrf.mxu0
    %v684 = vadd.f32 %v575, %v683
    %v685 = vpop.f32.mrf.mxu0
    %686 = vmatprep.mubr.f32.mxu0 0.0
    %687 = vmatmul.mubr.f32.gmra.mxu0 %v609
    %v688 = vpop.f32.mrf.mxu0
    %v689 = vadd.f32 %v580, %v688
    %v690 = vpop.f32.mrf.mxu0
    %691 = vmatprep.mubr.f32.mxu0 0.0
    %692 = vmatmul.mubr.f32.gmra.mxu0 %v612
    %v693 = vpop.f32.mrf.mxu0
    %v694 = vadd.f32 %v585, %v693
    %v695 = vpop.f32.mrf.mxu0
    %696 = vmatprep.mubr.f32.mxu0 0.0
    %697 = vmatmul.mubr.f32.gmra.mxu0 %v615
    %v698 = vpop.f32.mrf.mxu0
    %v699 = vadd.f32 %v590, %v698
    %v700 = vpop.f32.mrf.mxu0
    %701 = vdwg.mxu0
    %702 = vrot.lane.b32.xlu0 %v143, 112
    %v703 = vpop.permute.xlu0 %702
    %704 = vrot.lane.b32.xlu0 %v149, 112
    %v705 = vpop.permute.xlu0 %704
    %706 = vrot.lane.b32.xlu0 %v155, 112
    %v707 = vpop.permute.xlu0 %706
    %708 = vrot.lane.b32.xlu0 %v161, 112
    %v709 = vpop.permute.xlu0 %708
    %710 = vrot.lane.b32.xlu0 %v143, 80
    %v711 = vpop.permute.xlu0 %710
    %712 = vrot.lane.b32.xlu0 %v149, 80
    %v713 = vpop.permute.xlu0 %712
    %714 = vrot.lane.b32.xlu0 %v155, 80
    %v715 = vpop.permute.xlu0 %714
    %716 = vrot.lane.b32.xlu0 %v161, 80
    %v717 = vpop.permute.xlu0 %716
    %v718 = vsel %vm177, %v703, 0
    %v720 = vsel %vm177, %v705, 0
    %v722 = vsel %vm177, %v707, 0
    %v724 = vsel %vm177, %v709, 0
    %v726 = vsel %vm177, %v711, 0
    %v728 = vsel %vm177, %v713, 0
    %v730 = vsel %vm177, %v715, 0
    %v732 = vsel %vm177, %v717, 0
    %734 = vmatprep.subr.mxu0 0.0
    %735 = vmatpush1.xpose.msra.mxu0 0.0
    %736 = vmatprep.subr.mxu0 0.0
    %737 = vmatpush1.xpose.msra.mxu0 0.0
    %738 = vmatprep.subr.mxu0 0.0
    %739 = vmatpush1.xpose.msra.mxu0 0.0
    %740 = vmatprep.subr.mxu0 0.0
    %741 = vmatpush1.xpose.msra.mxu0 0.0
    %742 = vmatprep.subr.mxu0 0.0
    %743 = vmatpush1.xpose.msra.mxu0 0.0
    %744 = vmatprep.subr.mxu0 0.0
    %745 = vmatpush1.xpose.msra.mxu0 0.0
    %746 = vmatprep.subr.mxu0 0.0
    %747 = vmatpush1.xpose.msra.mxu0 0.0
    %748 = vmatprep.subr.mxu0 0.0
    %749 = vmatpush1.xpose.msra.mxu0 0.0
    %750 = vmatprep.subr.mxu0 0.0
    %751 = vmatpush1.xpose.msra.mxu0 0.0
    %752 = vmatprep.subr.mxu0 0.0
    %753 = vmatpush1.xpose.msra.mxu0 0.0
    %754 = vmatprep.subr.mxu0 0.0
    %755 = vmatpush1.xpose.msra.mxu0 0.0
    %756 = vmatprep.subr.mxu0 0.0
    %757 = vmatpush1.xpose.msra.mxu0 0.0
    %758 = vmatprep.subr.mxu0 0.0
    %759 = vmatpush1.xpose.msra.mxu0 %v732
    %760 = vmatprep.subr.mxu0 0.0
    %761 = vmatpush1.xpose.msra.mxu0 %v730
    %762 = vmatprep.subr.mxu0 0.0
    %763 = vmatpush1.xpose.msra.mxu0 %v728
    %764 = vmatprep.subr.mxu0 0.0
    %765 = vmatpush1.xpose.msra.mxu0 %v726
    %766 = vmatprep.subr.mxu0 0.0
    %767 = vmatpush2.xpose.msra.mxu0 0.0
    %768 = vmatprep.subr.mxu0 0.0
    %769 = vmatpush2.xpose.msra.mxu0 0.0
    %770 = vmatprep.subr.mxu0 0.0
    %771 = vmatpush2.xpose.msra.mxu0 0.0
    %772 = vmatprep.subr.mxu0 0.0
    %773 = vmatpush2.xpose.msra.mxu0 0.0
    %774 = vmatprep.subr.mxu0 0.0
    %775 = vmatpush2.xpose.msra.mxu0 0.0
    %776 = vmatprep.subr.mxu0 0.0
    %777 = vmatpush2.xpose.msra.mxu0 0.0
    %778 = vmatprep.subr.mxu0 0.0
    %779 = vmatpush2.xpose.msra.mxu0 0.0
    %780 = vmatprep.subr.mxu0 0.0
    %781 = vmatpush2.xpose.msra.mxu0 0.0
    %782 = vmatprep.subr.mxu0 0.0
    %783 = vmatpush2.xpose.msra.mxu0 0.0
    %784 = vmatprep.subr.mxu0 0.0
    %785 = vmatpush2.xpose.msra.mxu0 0.0
    %786 = vmatprep.subr.mxu0 0.0
    %787 = vmatpush2.xpose.msra.mxu0 0.0
    %788 = vmatprep.subr.mxu0 0.0
    %789 = vmatpush2.xpose.msra.mxu0 0.0
    %790 = vmatprep.subr.mxu0 0.0
    %791 = vmatpush2.xpose.msra.mxu0 0.0
    %792 = vmatprep.subr.mxu0 0.0
    %793 = vmatpush2.xpose.msra.mxu0 0.0
    %794 = vmatprep.subr.mxu0 0.0
    %795 = vmatpush2.xpose.msra.mxu0 0.0
    %796 = vmatprep.subr.mxu0 0.0
    %797 = vmatpush2.xpose.msra.mxu0 0.0
    %798 = vmatprep.mubr.f32.mxu0 0.0
    %799 = vmatmul.mubr.f32.gmra.mxu0 %v718
    %v800 = vpop.f32.mrf.mxu0
    %v801 = vadd.f32 %v19, %v800
    %v802 = vpop.f32.mrf.mxu0
    %803 = vmatprep.mubr.f32.mxu0 0.0
    %804 = vmatmul.mubr.f32.gmra.mxu0 %v720
    %v805 = vpop.f32.mrf.mxu0
    %v806 = vadd.f32 %v20, %v805
    %v807 = vpop.f32.mrf.mxu0
    %808 = vmatprep.mubr.f32.mxu0 0.0
    %809 = vmatmul.mubr.f32.gmra.mxu0 %v722
    %v810 = vpop.f32.mrf.mxu0
    %v811 = vadd.f32 %v21, %v810
    %v812 = vpop.f32.mrf.mxu0
    %813 = vmatprep.mubr.f32.mxu0 0.0
    %814 = vmatmul.mubr.f32.gmra.mxu0 %v724
    %v815 = vpop.f32.mrf.mxu0
    %v816 = vadd.f32 %v22, %v815
    %v817 = vpop.f32.mrf.mxu0
    %818 = vdwg.mxu0
    %v819 = vsel %vm63, %v801, -inf
    %820 = vmax.xlane.f32.xlu0 %v819
    %v821 = vpop.xlane.xlu0 %820
    %v822 = vsel %vm63, %v806, -inf
    %823 = vmax.xlane.f32.xlu0 %v822
    %v824 = vpop.xlane.xlu0 %823
    %v825 = vsel %vm63, %v811, -inf
    %826 = vmax.xlane.f32.xlu0 %v825
    %v827 = vpop.xlane.xlu0 %826
    %v828 = vsel %vm63, %v816, -inf
    %829 = vmax.xlane.f32.xlu0 %v828
    %v830 = vpop.xlane.xlu0 %829
    %v831 = vsub.f32 %v801, %v821
    %v832 = vsub.f32 %v806, %v824
    %v833 = vsub.f32 %v811, %v827
    %v834 = vsub.f32 %v816, %v830
    %v835 = vmul.f32 %v831, 1.442695
    %v836 = vpow.pop %v835
    %v837 = vmul.f32 %v832, 1.442695
    %v838 = vpow.pop %v837
    %v839 = vmul.f32 %v833, 1.442695
    %v840 = vpow.pop %v839
    %v841 = vmul.f32 %v834, 1.442695
    %v842 = vpow.pop %v841
    %v843 = vsel %vm63, %v836, 0.0
    %844 = vadd.xlane.f32.xlu0 %v843
    %v845 = vpop.xlane.xlu0 %844
    %v846 = vsel %vm63, %v838, 0.0
    %847 = vadd.xlane.f32.xlu0 %v846
    %v848 = vpop.xlane.xlu0 %847
    %v849 = vsel %vm63, %v840, 0.0
    %850 = vadd.xlane.f32.xlu0 %v849
    %v851 = vpop.xlane.xlu0 %850
    %v852 = vsel %vm63, %v842, 0.0
    %853 = vadd.xlane.f32.xlu0 %v852
    %v854 = vpop.xlane.xlu0 %853
    %v855 = vrcp.pop %v845
    %v856 = vrcp.pop %v848
    %v857 = vrcp.pop %v851
    %v858 = vrcp.pop %v854
    %v859 = vmul.f32 %v836, %v855
    %v860 = vmul.f32 %v838, %v856
    %v861 = vmul.f32 %v840, %v857
    %v862 = vmul.f32 %v842, %v858
    %v864 = vsel %vm63, %v859, 0
    %v867 = vsel %vm63, %v860, 0
    %v870 = vsel %vm63, %v861, 0
    %v873 = vsel %vm63, %v862, 0
    %875 = vmatprep.subr.mxu0 0.0
    %876 = vmatpush1.msra.mxu0 0.0
    %877 = vmatprep.subr.mxu0 0.0
    %878 = vmatpush1.msra.mxu0 0.0
    %879 = vmatprep.subr.mxu0 0.0
    %880 = vmatpush1.msra.mxu0 0.0
    %881 = vmatprep.subr.mxu0 0.0
    %882 = vmatpush1.msra.mxu0 0.0
    %883 = vmatprep.subr.mxu0 0.0
    %884 = vmatpush1.msra.mxu0 0.0
    %885 = vmatprep.subr.mxu0 0.0
    %886 = vmatpush1.msra.mxu0 0.0
    %887 = vmatprep.subr.mxu0 0.0
    %888 = vmatpush1.msra.mxu0 0.0
    %889 = vmatprep.subr.mxu0 0.0
    %890 = vmatpush1.msra.mxu0 0.0
    %891 = vmatprep.subr.mxu0 0.0
    %892 = vmatpush1.msra.mxu0 0.0
    %893 = vmatprep.subr.mxu0 0.0
    %894 = vmatpush1.msra.mxu0 0.0
    %895 = vmatprep.subr.mxu0 0.0
    %896 = vmatpush1.msra.mxu0 0.0
    %897 = vmatprep.subr.mxu0 0.0
    %898 = vmatpush1.msra.mxu0 0.0
    %899 = vmatprep.subr.mxu0 0.0
    %900 = vmatpush1.msra.mxu0 %v163
    %901 = vmatprep.subr.mxu0 0.0
    %902 = vmatpush1.msra.mxu0 %v157
    %903 = vmatprep.subr.mxu0 0.0
    %904 = vmatpush1.msra.mxu0 %v151
    %905 = vmatprep.subr.mxu0 0.0
    %906 = vmatpush1.msra.mxu0 %v145
    %907 = vmatprep.subr.mxu0 0.0
    %908 = vmatpush2.msra.mxu0 0.0
    %909 = vmatprep.subr.mxu0 0.0
    %910 = vmatpush2.msra.mxu0 0.0
    %911 = vmatprep.subr.mxu0 0.0
    %912 = vmatpush2.msra.mxu0 0.0
    %913 = vmatprep.subr.mxu0 0.0
    %914 = vmatpush2.msra.mxu0 0.0
    %915 = vmatprep.subr.mxu0 0.0
    %916 = vmatpush2.msra.mxu0 0.0
    %917 = vmatprep.subr.mxu0 0.0
    %918 = vmatpush2.msra.mxu0 0.0
    %919 = vmatprep.subr.mxu0 0.0
    %920 = vmatpush2.msra.mxu0 0.0
    %921 = vmatprep.subr.mxu0 0.0
    %922 = vmatpush2.msra.mxu0 0.0
    %923 = vmatprep.subr.mxu0 0.0
    %924 = vmatpush2.msra.mxu0 0.0
    %925 = vmatprep.subr.mxu0 0.0
    %926 = vmatpush2.msra.mxu0 0.0
    %927 = vmatprep.subr.mxu0 0.0
    %928 = vmatpush2.msra.mxu0 0.0
    %929 = vmatprep.subr.mxu0 0.0
    %930 = vmatpush2.msra.mxu0 0.0
    %931 = vmatprep.subr.mxu0 0.0
    %932 = vmatpush2.msra.mxu0 0.0
    %933 = vmatprep.subr.mxu0 0.0
    %934 = vmatpush2.msra.mxu0 0.0
    %935 = vmatprep.subr.mxu0 0.0
    %936 = vmatpush2.msra.mxu0 0.0
    %937 = vmatprep.subr.mxu0 0.0
    %938 = vmatpush2.msra.mxu0 0.0
    %939 = vmatprep.mubr.f32.mxu0 0.0
    %940 = vmatmul.mubr.f32.gmra.mxu0 %v864
    %v941 = vpop.f32.mrf.mxu0
    %v942 = vadd.f32 0.0, %v941
    %v943 = vpop.f32.mrf.mxu0
    %944 = vmatprep.mubr.f32.mxu0 0.0
    %945 = vmatmul.mubr.f32.gmra.mxu0 %v867
    %v946 = vpop.f32.mrf.mxu0
    %v947 = vadd.f32 0.0, %v946
    %v948 = vpop.f32.mrf.mxu0
    %949 = vmatprep.mubr.f32.mxu0 0.0
    %950 = vmatmul.mubr.f32.gmra.mxu0 %v870
    %v951 = vpop.f32.mrf.mxu0
    %v952 = vadd.f32 0.0, %v951
    %v953 = vpop.f32.mrf.mxu0
    %954 = vmatprep.mubr.f32.mxu0 0.0
    %955 = vmatmul.mubr.f32.gmra.mxu0 %v873
    %v956 = vpop.f32.mrf.mxu0
    %v957 = vadd.f32 0.0, %v956
    %v958 = vpop.f32.mrf.mxu0
    %959 = vdwg.mxu0
    %v960 = vadd.f32 %v684, %v942
    %v961 = vadd.f32 %v689, %v947
    %v962 = vadd.f32 %v694, %v952
    %v963 = vadd.f32 %v699, %v957
    %964 = vrot.lane.b32.xlu0 %v143, 104
    %v965 = vpop.permute.xlu0 %964
    %966 = vrot.lane.b32.xlu0 %v149, 104
    %v967 = vpop.permute.xlu0 %966
    %968 = vrot.lane.b32.xlu0 %v155, 104
    %v969 = vpop.permute.xlu0 %968
    %970 = vrot.lane.b32.xlu0 %v161, 104
    %v971 = vpop.permute.xlu0 %970
    %972 = vrot.lane.b32.xlu0 %v143, 72
    %v973 = vpop.permute.xlu0 %972
    %974 = vrot.lane.b32.xlu0 %v149, 72
    %v975 = vpop.permute.xlu0 %974
    %976 = vrot.lane.b32.xlu0 %v155, 72
    %v977 = vpop.permute.xlu0 %976
    %978 = vrot.lane.b32.xlu0 %v161, 72
    %v979 = vpop.permute.xlu0 %978
    %v980 = vsel %vm177, %v965, 0
    %v982 = vsel %vm177, %v967, 0
    %v984 = vsel %vm177, %v969, 0
    %v986 = vsel %vm177, %v971, 0
    %v988 = vsel %vm177, %v973, 0
    %v990 = vsel %vm177, %v975, 0
    %v992 = vsel %vm177, %v977, 0
    %v994 = vsel %vm177, %v979, 0
    %996 = vmatprep.subr.mxu0 0.0
    %997 = vmatpush1.xpose.msra.mxu0 0.0
    %998 = vmatprep.subr.mxu0 0.0
    %999 = vmatpush1.xpose.msra.mxu0 0.0
    %1000 = vmatprep.subr.mxu0 0.0
    %1001 = vmatpush1.xpose.msra.mxu0 0.0
    %1002 = vmatprep.subr.mxu0 0.0
    %1003 = vmatpush1.xpose.msra.mxu0 0.0
    %1004 = vmatprep.subr.mxu0 0.0
    %1005 = vmatpush1.xpose.msra.mxu0 0.0
    %1006 = vmatprep.subr.mxu0 0.0
    %1007 = vmatpush1.xpose.msra.mxu0 0.0
    %1008 = vmatprep.subr.mxu0 0.0
    %1009 = vmatpush1.xpose.msra.mxu0 0.0
    %1010 = vmatprep.subr.mxu0 0.0
    %1011 = vmatpush1.xpose.msra.mxu0 0.0
    %1012 = vmatprep.subr.mxu0 0.0
    %1013 = vmatpush1.xpose.msra.mxu0 0.0
    %1014 = vmatprep.subr.mxu0 0.0
    %1015 = vmatpush1.xpose.msra.mxu0 0.0
    %1016 = vmatprep.subr.mxu0 0.0
    %1017 = vmatpush1.xpose.msra.mxu0 0.0
    %1018 = vmatprep.subr.mxu0 0.0
    %1019 = vmatpush1.xpose.msra.mxu0 0.0
    %1020 = vmatprep.subr.mxu0 0.0
    %1021 = vmatpush1.xpose.msra.mxu0 %v994
    %1022 = vmatprep.subr.mxu0 0.0
    %1023 = vmatpush1.xpose.msra.mxu0 %v992
    %1024 = vmatprep.subr.mxu0 0.0
    %1025 = vmatpush1.xpose.msra.mxu0 %v990
    %1026 = vmatprep.subr.mxu0 0.0
    %1027 = vmatpush1.xpose.msra.mxu0 %v988
    %1028 = vmatprep.subr.mxu0 0.0
    %1029 = vmatpush2.xpose.msra.mxu0 0.0
    %1030 = vmatprep.subr.mxu0 0.0
    %1031 = vmatpush2.xpose.msra.mxu0 0.0
    %1032 = vmatprep.subr.mxu0 0.0
    %1033 = vmatpush2.xpose.msra.mxu0 0.0
    %1034 = vmatprep.subr.mxu0 0.0
    %1035 = vmatpush2.xpose.msra.mxu0 0.0
    %1036 = vmatprep.subr.mxu0 0.0
    %1037 = vmatpush2.xpose.msra.mxu0 0.0
    %1038 = vmatprep.subr.mxu0 0.0
    %1039 = vmatpush2.xpose.msra.mxu0 0.0
    %1040 = vmatprep.subr.mxu0 0.0
    %1041 = vmatpush2.xpose.msra.mxu0 0.0
    %1042 = vmatprep.subr.mxu0 0.0
    %1043 = vmatpush2.xpose.msra.mxu0 0.0
    %1044 = vmatprep.subr.mxu0 0.0
    %1045 = vmatpush2.xpose.msra.mxu0 0.0
    %1046 = vmatprep.subr.mxu0 0.0
    %1047 = vmatpush2.xpose.msra.mxu0 0.0
    %1048 = vmatprep.subr.mxu0 0.0
    %1049 = vmatpush2.xpose.msra.mxu0 0.0
    %1050 = vmatprep.subr.mxu0 0.0
    %1051 = vmatpush2.xpose.msra.mxu0 0.0
    %1052 = vmatprep.subr.mxu0 0.0
    %1053 = vmatpush2.xpose.msra.mxu0 0.0
    %1054 = vmatprep.subr.mxu0 0.0
    %1055 = vmatpush2.xpose.msra.mxu0 0.0
    %1056 = vmatprep.subr.mxu0 0.0
    %1057 = vmatpush2.xpose.msra.mxu0 0.0
    %1058 = vmatprep.subr.mxu0 0.0
    %1059 = vmatpush2.xpose.msra.mxu0 0.0
    %1060 = vmatprep.mubr.f32.mxu0 0.0
    %1061 = vmatmul.mubr.f32.gmra.mxu0 %v980
    %v1062 = vpop.f32.mrf.mxu0
    %v1063 = vadd.f32 %v19, %v1062
    %v1064 = vpop.f32.mrf.mxu0
    %1065 = vmatprep.mubr.f32.mxu0 0.0
    %1066 = vmatmul.mubr.f32.gmra.mxu0 %v982
    %v1067 = vpop.f32.mrf.mxu0
    %v1068 = vadd.f32 %v20, %v1067
    %v1069 = vpop.f32.mrf.mxu0
    %1070 = vmatprep.mubr.f32.mxu0 0.0
    %1071 = vmatmul.mubr.f32.gmra.mxu0 %v984
    %v1072 = vpop.f32.mrf.mxu0
    %v1073 = vadd.f32 %v21, %v1072
    %v1074 = vpop.f32.mrf.mxu0
    %1075 = vmatprep.mubr.f32.mxu0 0.0
    %1076 = vmatmul.mubr.f32.gmra.mxu0 %v986
    %v1077 = vpop.f32.mrf.mxu0
    %v1078 = vadd.f32 %v22, %v1077
    %v1079 = vpop.f32.mrf.mxu0
    %1080 = vdwg.mxu0
    %v1081 = vsel %vm63, %v1063, -inf
    %1082 = vmax.xlane.f32.xlu0 %v1081
    %v1083 = vpop.xlane.xlu0 %1082
    %v1084 = vsel %vm63, %v1068, -inf
    %1085 = vmax.xlane.f32.xlu0 %v1084
    %v1086 = vpop.xlane.xlu0 %1085
    %v1087 = vsel %vm63, %v1073, -inf
    %1088 = vmax.xlane.f32.xlu0 %v1087
    %v1089 = vpop.xlane.xlu0 %1088
    %v1090 = vsel %vm63, %v1078, -inf
    %1091 = vmax.xlane.f32.xlu0 %v1090
    %v1092 = vpop.xlane.xlu0 %1091
    %v1093 = vsub.f32 %v1063, %v1083
    %v1094 = vsub.f32 %v1068, %v1086
    %v1095 = vsub.f32 %v1073, %v1089
    %v1096 = vsub.f32 %v1078, %v1092
    %v1097 = vmul.f32 %v1093, 1.442695
    %v1098 = vpow.pop %v1097
    %v1099 = vmul.f32 %v1094, 1.442695
    %v1100 = vpow.pop %v1099
    %v1101 = vmul.f32 %v1095, 1.442695
    %v1102 = vpow.pop %v1101
    %v1103 = vmul.f32 %v1096, 1.442695
    %v1104 = vpow.pop %v1103
    %v1105 = vsel %vm63, %v1098, 0.0
    %1106 = vadd.xlane.f32.xlu0 %v1105
    %v1107 = vpop.xlane.xlu0 %1106
    %v1108 = vsel %vm63, %v1100, 0.0
    %1109 = vadd.xlane.f32.xlu0 %v1108
    %v1110 = vpop.xlane.xlu0 %1109
    %v1111 = vsel %vm63, %v1102, 0.0
    %1112 = vadd.xlane.f32.xlu0 %v1111
    %v1113 = vpop.xlane.xlu0 %1112
    %v1114 = vsel %vm63, %v1104, 0.0
    %1115 = vadd.xlane.f32.xlu0 %v1114
    %v1116 = vpop.xlane.xlu0 %1115
    %v1117 = vrcp.pop %v1107
    %v1118 = vrcp.pop %v1110
    %v1119 = vrcp.pop %v1113
    %v1120 = vrcp.pop %v1116
    %v1121 = vmul.f32 %v1098, %v1117
    %v1122 = vmul.f32 %v1100, %v1118
    %v1123 = vmul.f32 %v1102, %v1119
    %v1124 = vmul.f32 %v1104, %v1120
    %1129 = vrot.lane.b32.xlu0 %v145, 96
    %v1130 = vpop.permute.xlu0 %1129
    %1131 = vrot.lane.b32.xlu0 %v151, 96
    %v1132 = vpop.permute.xlu0 %1131
    %1133 = vrot.lane.b32.xlu0 %v157, 96
    %v1134 = vpop.permute.xlu0 %1133
    %1135 = vrot.lane.b32.xlu0 %v163, 96
    %v1136 = vpop.permute.xlu0 %1135
    %v1142 = vsel %vm63, %v1121, 0
    %v1145 = vsel %vm63, %v1122, 0
    %v1148 = vsel %vm63, %v1123, 0
    %v1151 = vsel %vm63, %v1124, 0
    %1153 = vmatprep.subr.mxu0 0.0
    %1154 = vmatpush1.msra.mxu0 0.0
    %1155 = vmatprep.subr.mxu0 0.0
    %1156 = vmatpush1.msra.mxu0 0.0
    %1157 = vmatprep.subr.mxu0 0.0
    %1158 = vmatpush1.msra.mxu0 0.0
    %1159 = vmatprep.subr.mxu0 0.0
    %1160 = vmatpush1.msra.mxu0 0.0
    %1161 = vmatprep.subr.mxu0 0.0
    %1162 = vmatpush1.msra.mxu0 0.0
    %1163 = vmatprep.subr.mxu0 0.0
    %1164 = vmatpush1.msra.mxu0 0.0
    %1165 = vmatprep.subr.mxu0 0.0
    %1166 = vmatpush1.msra.mxu0 0.0
    %1167 = vmatprep.subr.mxu0 0.0
    %1168 = vmatpush1.msra.mxu0 0.0
    %1169 = vmatprep.subr.mxu0 0.0
    %1170 = vmatpush1.msra.mxu0 0.0
    %1171 = vmatprep.subr.mxu0 0.0
    %1172 = vmatpush1.msra.mxu0 0.0
    %1173 = vmatprep.subr.mxu0 0.0
    %1174 = vmatpush1.msra.mxu0 0.0
    %1175 = vmatprep.subr.mxu0 0.0
    %1176 = vmatpush1.msra.mxu0 0.0
    %1177 = vmatprep.subr.mxu0 0.0
    %1178 = vmatpush1.msra.mxu0 %v1136
    %1179 = vmatprep.subr.mxu0 0.0
    %1180 = vmatpush1.msra.mxu0 %v1134
    %1181 = vmatprep.subr.mxu0 0.0
    %1182 = vmatpush1.msra.mxu0 %v1132
    %1183 = vmatprep.subr.mxu0 0.0
    %1184 = vmatpush1.msra.mxu0 %v1130
    %1185 = vmatprep.subr.mxu0 0.0
    %1186 = vmatpush2.msra.mxu0 0.0
    %1187 = vmatprep.subr.mxu0 0.0
    %1188 = vmatpush2.msra.mxu0 0.0
    %1189 = vmatprep.subr.mxu0 0.0
    %1190 = vmatpush2.msra.mxu0 0.0
    %1191 = vmatprep.subr.mxu0 0.0
    %1192 = vmatpush2.msra.mxu0 0.0
    %1193 = vmatprep.subr.mxu0 0.0
    %1194 = vmatpush2.msra.mxu0 0.0
    %1195 = vmatprep.subr.mxu0 0.0
    %1196 = vmatpush2.msra.mxu0 0.0
    %1197 = vmatprep.subr.mxu0 0.0
    %1198 = vmatpush2.msra.mxu0 0.0
    %1199 = vmatprep.subr.mxu0 0.0
    %1200 = vmatpush2.msra.mxu0 0.0
    %1201 = vmatprep.subr.mxu0 0.0
    %1202 = vmatpush2.msra.mxu0 0.0
    %1203 = vmatprep.subr.mxu0 0.0
    %1204 = vmatpush2.msra.mxu0 0.0
    %1205 = vmatprep.subr.mxu0 0.0
    %1206 = vmatpush2.msra.mxu0 0.0
    %1207 = vmatprep.subr.mxu0 0.0
    %1208 = vmatpush2.msra.mxu0 0.0
    %1209 = vmatprep.subr.mxu0 0.0
    %1210 = vmatpush2.msra.mxu0 0.0
    %1211 = vmatprep.subr.mxu0 0.0
    %1212 = vmatpush2.msra.mxu0 0.0
    %1213 = vmatprep.subr.mxu0 0.0
    %1214 = vmatpush2.msra.mxu0 0.0
    %1215 = vmatprep.subr.mxu0 0.0
    %1216 = vmatpush2.msra.mxu0 0.0
    %1217 = vmatprep.mubr.f32.mxu0 0.0
    %1218 = vmatmul.mubr.f32.gmra.mxu0 %v1142
    %v1219 = vpop.f32.mrf.mxu0
    %v1220 = vadd.f32 0.0, %v1219
    %v1221 = vpop.f32.mrf.mxu0
    %1222 = vmatprep.mubr.f32.mxu0 0.0
    %1223 = vmatmul.mubr.f32.gmra.mxu0 %v1145
    %v1224 = vpop.f32.mrf.mxu0
    %v1225 = vadd.f32 0.0, %v1224
    %v1226 = vpop.f32.mrf.mxu0
    %1227 = vmatprep.mubr.f32.mxu0 0.0
    %1228 = vmatmul.mubr.f32.gmra.mxu0 %v1148
    %v1229 = vpop.f32.mrf.mxu0
    %v1230 = vadd.f32 0.0, %v1229
    %v1231 = vpop.f32.mrf.mxu0
    %1232 = vmatprep.mubr.f32.mxu0 0.0
    %1233 = vmatmul.mubr.f32.gmra.mxu0 %v1151
    %v1234 = vpop.f32.mrf.mxu0
    %v1235 = vadd.f32 0.0, %v1234
    %v1236 = vpop.f32.mrf.mxu0
    %1237 = vdwg.mxu0
    %v1238 = vadd.f32 %v960, %v1220
    %v1239 = vadd.f32 %v961, %v1225
    %v1240 = vadd.f32 %v962, %v1230
    %v1241 = vadd.f32 %v963, %v1235
    %v1242 = vlaneseq
    %v1243 = vshrl.u32 %v1242, 7
    %v1244 = vsub.s32 0, %v1243
    %v1245 = vrot.slane %v51, %v1244
    %v1246 = vadd.f32 %v1238, %v1245
    %v1247 = vadd.f32 %v1239, %v1245
    %v1248 = vadd.f32 %v1240, %v1245
    %v1249 = vadd.f32 %v1241, %v1245
    %v1250 = vadd.f32 %v1246, %v37
    %v1251 = vadd.f32 %v1247, %v38
    %v1252 = vadd.f32 %v1248, %v39
    %v1253 = vadd.f32 %v1249, %v40
    %v1254 = vld [vmem:[%s2 + $0x19d] sm:$0x1]
    %v1255 = vld [vmem:[%s2 + $0x19e] sm:$0x1]
    %v1256 = vsel %vm63, %v1250, 0.0
    %1257 = vadd.xlane.f32.xlu0 %v1256
    %v1258 = vpop.xlane.xlu0 %1257
    %v1259 = vsel %vm63, %v1251, 0.0
    %1260 = vadd.xlane.f32.xlu0 %v1259
    %v1261 = vpop.xlane.xlu0 %1260
    %v1262 = vsel %vm63, %v1252, 0.0
    %1263 = vadd.xlane.f32.xlu0 %v1262
    %v1264 = vpop.xlane.xlu0 %1263
    %v1265 = vsel %vm63, %v1253, 0.0
    %1266 = vadd.xlane.f32.xlu0 %v1265
    %v1267 = vpop.xlane.xlu0 %1266
    %v1268 = vrcp.pop 32.0
    %v1269 = vmul.f32 %v1258, %v1268
    %v1270 = vmul.f32 %v1261, %v1268
    %v1271 = vmul.f32 %v1264, %v1268
    %v1272 = vmul.f32 %v1267, %v1268
    %v1273 = vsub.f32 %v1250, %v1269
    %v1274 = vsub.f32 %v1251, %v1270
    %v1275 = vsub.f32 %v1252, %v1271
    %v1276 = vsub.f32 %v1253, %v1272
    %v1277 = vmul.f32 %v1273, %v1273
    %v1278 = vmul.f32 %v1274, %v1274
    %v1279 = vmul.f32 %v1275, %v1275
    %v1280 = vmul.f32 %v1276, %v1276
    %v1281 = vsel %vm63, %v1277, 0.0
    %1282 = vadd.xlane.f32.xlu0 %v1281
    %v1283 = vpop.xlane.xlu0 %1282
    %v1284 = vsel %vm63, %v1278, 0.0
    %1285 = vadd.xlane.f32.xlu0 %v1284
    %v1286 = vpop.xlane.xlu0 %1285
    %v1287 = vsel %vm63, %v1279, 0.0
    %1288 = vadd.xlane.f32.xlu0 %v1287
    %v1289 = vpop.xlane.xlu0 %1288
    %v1290 = vsel %vm63, %v1280, 0.0
    %1291 = vadd.xlane.f32.xlu0 %v1290
    %v1292 = vpop.xlane.xlu0 %1291
    %v1293 = vmul.f32 %v1283, %v1268
    %v1294 = vmul.f32 %v1286, %v1268
    %v1295 = vmul.f32 %v1289, %v1268
    %v1296 = vmul.f32 %v1292, %v1268
    %v1297 = vadd.f32 %v1293, 1e-05
    %v1298 = vadd.f32 %v1294, 1e-05
    %v1299 = vadd.f32 %v1295, 1e-05
    %v1300 = vadd.f32 %v1296, 1e-05
    %v1301 = vrsqrt.pop %v1297
    %v1302 = vrsqrt.pop %v1298
    %v1303 = vrsqrt.pop %v1299
    %v1304 = vrsqrt.pop %v1300
    %v1305 = vmul.f32 %v1273, %v1301
    %v1306 = vmul.f32 %v1274, %v1302
    %v1307 = vmul.f32 %v1275, %v1303
    %v1308 = vmul.f32 %v1276, %v1304
    %v1309 = vlaneseq
    %v1310 = vshrl.u32 %v1309, 7
    %v1311 = vsub.s32 0, %v1310
    %v1312 = vrot.slane %v1254, %v1311
    %v1313 = vmul.f32 %v1305, %v1312
    %v1314 = vmul.f32 %v1306, %v1312
    %v1315 = vmul.f32 %v1307, %v1312
    %v1316 = vmul.f32 %v1308, %v1312
    %v1317 = vlaneseq
    %v1318 = vshrl.u32 %v1317, 7
    %v1319 = vsub.s32 0, %v1318
    %v1320 = vrot.slane %v1255, %v1319
    %v1321 = vadd.f32 %v1313, %v1320
    %v1322 = vadd.f32 %v1314, %v1320
    %v1323 = vadd.f32 %v1315, %v1320
    %v1324 = vadd.f32 %v1316, %v1320
    %v1325 = vld [vmem:[%s2] sm:$0xff]
    %v1326 = vld [vmem:[%s2 + $0x8] sm:$0xff]
    %v1327 = vld [vmem:[%s2 + $0x10] sm:$0xff]
    %v1328 = vld [vmem:[%s2 + $0x18] sm:$0xff]
    %v1329 = vld [vmem:[%s2 + $0x19f] sm:$0x1]
    %v1330 = vlaneseq
    %v1331 = vshrl.u32 %v1330, 7
    %v1332 = vsub.s32 0, %v1331
    %v1333 = vrot.slane %v1329, %v1332
    %v1335 = vsel %vm63, %v1321, 0
    %v1338 = vsel %vm63, %v1322, 0
    %v1341 = vsel %vm63, %v1323, 0
    %v1344 = vsel %vm63, %v1324, 0
    %1346 = vmatprep.subr.mxu0 0.0
    %1347 = vmatpush1.msra.mxu0 0.0
    %1348 = vmatprep.subr.mxu0 0.0
    %1349 = vmatpush1.msra.mxu0 0.0
    %1350 = vmatprep.subr.mxu0 0.0
    %1351 = vmatpush1.msra.mxu0 0.0
    %1352 = vmatprep.subr.mxu0 0.0
    %1353 = vmatpush1.msra.mxu0 0.0
    %1354 = vmatprep.subr.mxu0 0.0
    %1355 = vmatpush1.msra.mxu0 0.0
    %1356 = vmatprep.subr.mxu0 0.0
    %1357 = vmatpush1.msra.mxu0 0.0
    %1358 = vmatprep.subr.mxu0 0.0
    %1359 = vmatpush1.msra.mxu0 0.0
    %1360 = vmatprep.subr.mxu0 0.0
    %1361 = vmatpush1.msra.mxu0 0.0
    %1362 = vmatprep.subr.mxu0 0.0
    %1363 = vmatpush1.msra.mxu0 0.0
    %1364 = vmatprep.subr.mxu0 0.0
    %1365 = vmatpush1.msra.mxu0 0.0
    %1366 = vmatprep.subr.mxu0 0.0
    %1367 = vmatpush1.msra.mxu0 0.0
    %1368 = vmatprep.subr.mxu0 0.0
    %1369 = vmatpush1.msra.mxu0 0.0
    %1370 = vmatprep.subr.mxu0 0.0
    %1371 = vmatpush1.msra.mxu0 %v1328
    %1372 = vmatprep.subr.mxu0 0.0
    %1373 = vmatpush1.msra.mxu0 %v1327
    %1374 = vmatprep.subr.mxu0 0.0
    %1375 = vmatpush1.msra.mxu0 %v1326
    %1376 = vmatprep.subr.mxu0 0.0
    %1377 = vmatpush1.msra.mxu0 %v1325
    %1378 = vmatprep.subr.mxu0 0.0
    %1379 = vmatpush2.msra.mxu0 0.0
    %1380 = vmatprep.subr.mxu0 0.0
    %1381 = vmatpush2.msra.mxu0 0.0
    %1382 = vmatprep.subr.mxu0 0.0
    %1383 = vmatpush2.msra.mxu0 0.0
    %1384 = vmatprep.subr.mxu0 0.0
    %1385 = vmatpush2.msra.mxu0 0.0
    %1386 = vmatprep.subr.mxu0 0.0
    %1387 = vmatpush2.msra.mxu0 0.0
    %1388 = vmatprep.subr.mxu0 0.0
    %1389 = vmatpush2.msra.mxu0 0.0
    %1390 = vmatprep.subr.mxu0 0.0
    %1391 = vmatpush2.msra.mxu0 0.0
    %1392 = vmatprep.subr.mxu0 0.0
    %1393 = vmatpush2.msra.mxu0 0.0
    %1394 = vmatprep.subr.mxu0 0.0
    %1395 = vmatpush2.msra.mxu0 0.0
    %1396 = vmatprep.subr.mxu0 0.0
    %1397 = vmatpush2.msra.mxu0 0.0
    %1398 = vmatprep.subr.mxu0 0.0
    %1399 = vmatpush2.msra.mxu0 0.0
    %1400 = vmatprep.subr.mxu0 0.0
    %1401 = vmatpush2.msra.mxu0 0.0
    %1402 = vmatprep.subr.mxu0 0.0
    %1403 = vmatpush2.msra.mxu0 0.0
    %1404 = vmatprep.subr.mxu0 0.0
    %1405 = vmatpush2.msra.mxu0 0.0
    %1406 = vmatprep.subr.mxu0 0.0
    %1407 = vmatpush2.msra.mxu0 0.0
    %1408 = vmatprep.subr.mxu0 0.0
    %1409 = vmatpush2.msra.mxu0 0.0
    %1410 = vmatprep.mubr.f32.mxu0 0.0
    %1411 = vmatmul.mubr.f32.gmra.mxu0 %v1335
    %v1412 = vpop.f32.mrf.mxu0
    %v1413 = vadd.f32 %v1333, %v1412
    %v1414 = vpop.f32.mrf.mxu0
    %1415 = vmatprep.mubr.f32.mxu0 0.0
    %1416 = vmatmul.mubr.f32.gmra.mxu0 %v1338
    %v1417 = vpop.f32.mrf.mxu0
    %v1418 = vadd.f32 %v1333, %v1417
    %v1419 = vpop.f32.mrf.mxu0
    %1420 = vmatprep.mubr.f32.mxu0 0.0
    %1421 = vmatmul.mubr.f32.gmra.mxu0 %v1341
    %v1422 = vpop.f32.mrf.mxu0
    %v1423 = vadd.f32 %v1333, %v1422
    %v1424 = vpop.f32.mrf.mxu0
    %1425 = vmatprep.mubr.f32.mxu0 0.0
    %1426 = vmatmul.mubr.f32.gmra.mxu0 %v1344
    %v1427 = vpop.f32.mrf.mxu0
    %v1428 = vadd.f32 %v1333, %v1427
    %v1429 = vpop.f32.mrf.mxu0
    %1430 = vdwg.mxu0
    %v1431 = vmax.f32 %v1413, 0.0
    %v1432 = vmax.f32 %v1418, 0.0
    %v1433 = vmax.f32 %v1423, 0.0
    %v1434 = vmax.f32 %v1428, 0.0
    %v1435 = vld [vmem:[%s2 + $0x20] sm:$0xff]
    %v1436 = vld [vmem:[%s2 + $0x28] sm:$0xff]
    %v1437 = vld [vmem:[%s2 + $0x30] sm:$0xff]
    %v1438 = vld [vmem:[%s2 + $0x38] sm:$0xff]
    %v1439 = vld [vmem:[%s2 + $0x40] sm:$0xff]
    %v1440 = vld [vmem:[%s2 + $0x48] sm:$0xff]
    %v1441 = vld [vmem:[%s2 + $0x50] sm:$0xff]
    %v1442 = vld [vmem:[%s2 + $0x58] sm:$0xff]
    %v1443 = vld [vmem:[%s2 + $0x1a0] sm:$0x1]
    %v1444 = vlaneseq
    %v1445 = vshrl.u32 %v1444, 7
    %v1446 = vsub.s32 0, %v1445
    %v1447 = vrot.slane %v1443, %v1446
    %vm1448 = vcmask 523264
    %v1450 = vsel %vm1448, %v1431, 0
    %v1453 = vsel %vm1448, %v1432, 0
    %v1456 = vsel %vm1448, %v1433, 0
    %v1459 = vsel %vm1448, %v1434, 0
    %1461 = vmatprep.subr.mxu0 0.0
    %1462 = vmatpush1.msra.mxu0 0.0
    %1463 = vmatprep.subr.mxu0 0.0
    %1464 = vmatpush1.msra.mxu0 0.0
    %1465 = vmatprep.subr.mxu0 0.0
    %1466 = vmatpush1.msra.mxu0 0.0
    %1467 = vmatprep.subr.mxu0 0.0
    %1468 = vmatpush1.msra.mxu0 0.0
    %1469 = vmatprep.subr.mxu0 0.0
    %1470 = vmatpush1.msra.mxu0 0.0
    %1471 = vmatprep.subr.mxu0 0.0
    %1472 = vmatpush1.msra.mxu0 0.0
    %1473 = vmatprep.subr.mxu0 0.0
    %1474 = vmatpush1.msra.mxu0 0.0
    %1475 = vmatprep.subr.mxu0 0.0
    %1476 = vmatpush1.msra.mxu0 0.0
    %1477 = vmatprep.subr.mxu0 0.0
    %1478 = vmatpush1.msra.mxu0 %v1442
    %1479 = vmatprep.subr.mxu0 0.0
    %1480 = vmatpush1.msra.mxu0 %v1441
    %1481 = vmatprep.subr.mxu0 0.0
    %1482 = vmatpush1.msra.mxu0 %v1440
    %1483 = vmatprep.subr.mxu0 0.0
    %1484 = vmatpush1.msra.mxu0 %v1439
    %1485 = vmatprep.subr.mxu0 0.0
    %1486 = vmatpush1.msra.mxu0 %v1438
    %1487 = vmatprep.subr.mxu0 0.0
    %1488 = vmatpush1.msra.mxu0 %v1437
    %1489 = vmatprep.subr.mxu0 0.0
    %1490 = vmatpush1.msra.mxu0 %v1436
    %1491 = vmatprep.subr.mxu0 0.0
    %1492 = vmatpush1.msra.mxu0 %v1435
    %1493 = vmatprep.subr.mxu0 0.0
    %1494 = vmatpush2.msra.mxu0 0.0
    %1495 = vmatprep.subr.mxu0 0.0
    %1496 = vmatpush2.msra.mxu0 0.0
    %1497 = vmatprep.subr.mxu0 0.0
    %1498 = vmatpush2.msra.mxu0 0.0
    %1499 = vmatprep.subr.mxu0 0.0
    %1500 = vmatpush2.msra.mxu0 0.0
    %1501 = vmatprep.subr.mxu0 0.0
    %1502 = vmatpush2.msra.mxu0 0.0
    %1503 = vmatprep.subr.mxu0 0.0
    %1504 = vmatpush2.msra.mxu0 0.0
    %1505 = vmatprep.subr.mxu0 0.0
    %1506 = vmatpush2.msra.mxu0 0.0
    %1507 = vmatprep.subr.mxu0 0.0
    %1508 = vmatpush2.msra.mxu0 0.0
    %1509 = vmatprep.subr.mxu0 0.0
    %1510 = vmatpush2.msra.mxu0 0.0
    %1511 = vmatprep.subr.mxu0 0.0
    %1512 = vmatpush2.msra.mxu0 0.0
    %1513 = vmatprep.subr.mxu0 0.0
    %1514 = vmatpush2.msra.mxu0 0.0
    %1515 = vmatprep.subr.mxu0 0.0
    %1516 = vmatpush2.msra.mxu0 0.0
    %1517 = vmatprep.subr.mxu0 0.0
    %1518 = vmatpush2.msra.mxu0 0.0
    %1519 = vmatprep.subr.mxu0 0.0
    %1520 = vmatpush2.msra.mxu0 0.0
    %1521 = vmatprep.subr.mxu0 0.0
    %1522 = vmatpush2.msra.mxu0 0.0
    %1523 = vmatprep.subr.mxu0 0.0
    %1524 = vmatpush2.msra.mxu0 0.0
    %1525 = vmatprep.mubr.f32.mxu0 0.0
    %1526 = vmatmul.mubr.f32.gmra.mxu0 %v1450
    %v1527 = vpop.f32.mrf.mxu0
    %v1528 = vadd.f32 %v1447, %v1527
    %v1529 = vpop.f32.mrf.mxu0
    %1530 = vmatprep.mubr.f32.mxu0 0.0
    %1531 = vmatmul.mubr.f32.gmra.mxu0 %v1453
    %v1532 = vpop.f32.mrf.mxu0
    %v1533 = vadd.f32 %v1447, %v1532
    %v1534 = vpop.f32.mrf.mxu0
    %1535 = vmatprep.mubr.f32.mxu0 0.0
    %1536 = vmatmul.mubr.f32.gmra.mxu0 %v1456
    %v1537 = vpop.f32.mrf.mxu0
    %v1538 = vadd.f32 %v1447, %v1537
    %v1539 = vpop.f32.mrf.mxu0
    %1540 = vmatprep.mubr.f32.mxu0 0.0
    %1541 = vmatmul.mubr.f32.gmra.mxu0 %v1459
    %v1542 = vpop.f32.mrf.mxu0
    %v1543 = vadd.f32 %v1447, %v1542
    %v1544 = vpop.f32.mrf.mxu0
    %1545 = vdwg.mxu0
    %v1546 = vadd.f32 %v1528, %v1321
    %v1547 = vadd.f32 %v1533, %v1322
    %v1548 = vadd.f32 %v1538, %v1323
    %v1549 = vadd.f32 %v1543, %v1324
    %v1550 = vld [vmem:[%s2 + $0x1a1] sm:$0x1]
    %v1551 = vld [vmem:[%s2 + $0x1a2] sm:$0x1]
    %v1552 = vsel %vm63, %v1546, 0.0
    %1553 = vadd.xlane.f32.xlu0 %v1552
    %v1554 = vpop.xlane.xlu0 %1553
    %v1555 = vsel %vm63, %v1547, 0.0
    %1556 = vadd.xlane.f32.xlu0 %v1555
    %v1557 = vpop.xlane.xlu0 %1556
    %v1558 = vsel %vm63, %v1548, 0.0
    %1559 = vadd.xlane.f32.xlu0 %v1558
    %v1560 = vpop.xlane.xlu0 %1559
    %v1561 = vsel %vm63, %v1549, 0.0
    %1562 = vadd.xlane.f32.xlu0 %v1561
    %v1563 = vpop.xlane.xlu0 %1562
    %v1564 = vmul.f32 %v1554, %v1268
    %v1565 = vmul.f32 %v1557, %v1268
    %v1566 = vmul.f32 %v1560, %v1268
    %v1567 = vmul.f32 %v1563, %v1268
    %v1568 = vsub.f32 %v1546, %v1564
    %v1569 = vsub.f32 %v1547, %v1565
    %v1570 = vsub.f32 %v1548, %v1566
    %v1571 = vsub.f32 %v1549, %v1567
    %v1572 = vmul.f32 %v1568, %v1568
    %v1573 = vmul.f32 %v1569, %v1569
    %v1574 = vmul.f32 %v1570, %v1570
    %v1575 = vmul.f32 %v1571, %v1571
    %v1576 = vsel %vm63, %v1572, 0.0
    %1577 = vadd.xlane.f32.xlu0 %v1576
    %v1578 = vpop.xlane.xlu0 %1577
    %v1579 = vsel %vm63, %v1573, 0.0
    %1580 = vadd.xlane.f32.xlu0 %v1579
    %v1581 = vpop.xlane.xlu0 %1580
    %v1582 = vsel %vm63, %v1574, 0.0
    %1583 = vadd.xlane.f32.xlu0 %v1582
    %v1584 = vpop.xlane.xlu0 %1583
    %v1585 = vsel %vm63, %v1575, 0.0
    %1586 = vadd.xlane.f32.xlu0 %v1585
    %v1587 = vpop.xlane.xlu0 %1586
    %v1588 = vmul.f32 %v1578, %v1268
    %v1589 = vmul.f32 %v1581, %v1268
    %v1590 = vmul.f32 %v1584, %v1268
    %v1591 = vmul.f32 %v1587, %v1268
    %v1592 = vadd.f32 %v1588, 1e-05
    %v1593 = vadd.f32 %v1589, 1e-05
    %v1594 = vadd.f32 %v1590, 1e-05
    %v1595 = vadd.f32 %v1591, 1e-05
    %v1596 = vrsqrt.pop %v1592
    %v1597 = vrsqrt.pop %v1593
    %v1598 = vrsqrt.pop %v1594
    %v1599 = vrsqrt.pop %v1595
    %v1600 = vmul.f32 %v1568, %v1596
    %v1601 = vmul.f32 %v1569, %v1597
    %v1602 = vmul.f32 %v1570, %v1598
    %v1603 = vmul.f32 %v1571, %v1599
    %v1604 = vlaneseq
    %v1605 = vshrl.u32 %v1604, 7
    %v1606 = vsub.s32 0, %v1605
    %v1607 = vrot.slane %v1550, %v1606
    %v1608 = vmul.f32 %v1600, %v1607
    %v1609 = vmul.f32 %v1601, %v1607
    %v1610 = vmul.f32 %v1602, %v1607
    %v1611 = vmul.f32 %v1603, %v1607
    %v1612 = vlaneseq
    %v1613 = vshrl.u32 %v1612, 7
    %v1614 = vsub.s32 0, %v1613
    %v1615 = vrot.slane %v1551, %v1614
    %v1616 = vadd.f32 %v1608, %v1615
    %v1617 = vadd.f32 %v1609, %v1615
    %v1618 = vadd.f32 %v1610, %v1615
    %v1619 = vadd.f32 %v1611, %v1615
    %v1620 = vld [vmem:[%s1 + $0x40] sm:$0xff]
    %v1621 = vld [vmem:[%s1 + $0x48] sm:$0xff]
    %v1622 = vld [vmem:[%s1 + $0x50] sm:$0xff]
    %v1623 = vld [vmem:[%s1 + $0x58] sm:$0xff]
    %v1624 = vld [vmem:[%s1 + $0x60] sm:$0xff]
    %v1625 = vld [vmem:[%s1 + $0x68] sm:$0xff]
    %v1626 = vld [vmem:[%s1 + $0x70] sm:$0xff]
    %v1627 = vld [vmem:[%s1 + $0x78] sm:$0xff]
    %s1628 = scalar_lea.vmem %s1, 193
    %v1629 = vld [vmem:[%s1628] ss:$8 sm:$0x3]
    %v1630 = vld [vmem:[%s2 + $0x1a3] sm:$0x1]
    %v1632 = vlaneseq
    %v1633 = vshrl.u32 %v1632, 7
    %v1634 = vsub.s32 0, %v1633
    %v1635 = vrot.slane %v1629, %v1634
    %v1636 = vlaneseq
    %v1637 = vshrl.u32 %v1636, 7
    %v1638 = vsub.s32 1, %v1637
    %v1639 = vrot.slane %v1629, %v1638
    %v1643 = vsel %vm63, %v1616, 0
    %v1646 = vsel %vm63, %v1617, 0
    %v1649 = vsel %vm63, %v1618, 0
    %v1652 = vsel %vm63, %v1619, 0
    %1654 = vmatprep.subr.mxu0 0.0
    %1655 = vmatpush1.msra.mxu0 0.0
    %1656 = vmatprep.subr.mxu0 0.0
    %1657 = vmatpush1.msra.mxu0 0.0
    %1658 = vmatprep.subr.mxu0 0.0
    %1659 = vmatpush1.msra.mxu0 0.0
    %1660 = vmatprep.subr.mxu0 0.0
    %1661 = vmatpush1.msra.mxu0 0.0
    %1662 = vmatprep.subr.mxu0 0.0
    %1663 = vmatpush1.msra.mxu0 0.0
    %1664 = vmatprep.subr.mxu0 0.0
    %1665 = vmatpush1.msra.mxu0 0.0
    %1666 = vmatprep.subr.mxu0 0.0
    %1667 = vmatpush1.msra.mxu0 0.0
    %1668 = vmatprep.subr.mxu0 0.0
    %1669 = vmatpush1.msra.mxu0 0.0
    %1670 = vmatprep.subr.mxu0 0.0
    %1671 = vmatpush1.msra.mxu0 0.0
    %1672 = vmatprep.subr.mxu0 0.0
    %1673 = vmatpush1.msra.mxu0 0.0
    %1674 = vmatprep.subr.mxu0 0.0
    %1675 = vmatpush1.msra.mxu0 0.0
    %1676 = vmatprep.subr.mxu0 0.0
    %1677 = vmatpush1.msra.mxu0 0.0
    %1678 = vmatprep.subr.mxu0 %v1627
    %1679 = vmatpush1.msra.mxu0 %v1626
    %1680 = vmatprep.subr.mxu0 %v1625
    %1681 = vmatpush1.msra.mxu0 %v1624
    %1682 = vmatprep.subr.mxu0 %v1623
    %1683 = vmatpush1.msra.mxu0 %v1622
    %1684 = vmatprep.subr.mxu0 %v1621
    %1685 = vmatpush1.msra.mxu0 %v1620
    %1686 = vmatprep.subr.mxu0 0.0
    %1687 = vmatpush2.msra.mxu0 0.0
    %1688 = vmatprep.subr.mxu0 0.0
    %1689 = vmatpush2.msra.mxu0 0.0
    %1690 = vmatprep.subr.mxu0 0.0
    %1691 = vmatpush2.msra.mxu0 0.0
    %1692 = vmatprep.subr.mxu0 0.0
    %1693 = vmatpush2.msra.mxu0 0.0
    %1694 = vmatprep.subr.mxu0 0.0
    %1695 = vmatpush2.msra.mxu0 0.0
    %1696 = vmatprep.subr.mxu0 0.0
    %1697 = vmatpush2.msra.mxu0 0.0
    %1698 = vmatprep.subr.mxu0 0.0
    %1699 = vmatpush2.msra.mxu0 0.0
    %1700 = vmatprep.subr.mxu0 0.0
    %1701 = vmatpush2.msra.mxu0 0.0
    %1702 = vmatprep.subr.mxu0 0.0
    %1703 = vmatpush2.msra.mxu0 0.0
    %1704 = vmatprep.subr.mxu0 0.0
    %1705 = vmatpush2.msra.mxu0 0.0
    %1706 = vmatprep.subr.mxu0 0.0
    %1707 = vmatpush2.msra.mxu0 0.0
    %1708 = vmatprep.subr.mxu0 0.0
    %1709 = vmatpush2.msra.mxu0 0.0
    %1710 = vmatprep.subr.mxu0 0.0
    %1711 = vmatpush2.msra.mxu0 0.0
    %1712 = vmatprep.subr.mxu0 0.0
    %1713 = vmatpush2.msra.mxu0 0.0
    %1714 = vmatprep.subr.mxu0 0.0
    %1715 = vmatpush2.msra.mxu0 0.0
    %1716 = vmatprep.subr.mxu0 0.0
    %1717 = vmatpush2.msra.mxu0 0.0
    %1718 = vmatprep.mubr.f32.mxu0 0.0
    %1719 = vmatmul.mubr.f32.gmra.mxu0 %v1643
    %v1720 = vpop.f32.mrf.mxu0
    %v1721 = vadd.f32 %v1635, %v1720
    %v1722 = vpop.f32.mrf.mxu0
    %v1723 = vadd.f32 %v1639, %v1722
    %1724 = vmatprep.mubr.f32.mxu0 0.0
    %1725 = vmatmul.mubr.f32.gmra.mxu0 %v1646
    %v1726 = vpop.f32.mrf.mxu0
    %v1727 = vadd.f32 %v1635, %v1726
    %v1728 = vpop.f32.mrf.mxu0
    %v1729 = vadd.f32 %v1639, %v1728
    %1730 = vmatprep.mubr.f32.mxu0 0.0
    %1731 = vmatmul.mubr.f32.gmra.mxu0 %v1649
    %v1732 = vpop.f32.mrf.mxu0
    %v1733 = vadd.f32 %v1635, %v1732
    %v1734 = vpop.f32.mrf.mxu0
    %v1735 = vadd.f32 %v1639, %v1734
    %1736 = vmatprep.mubr.f32.mxu0 0.0
    %1737 = vmatmul.mubr.f32.gmra.mxu0 %v1652
    %v1738 = vpop.f32.mrf.mxu0
    %v1739 = vadd.f32 %v1635, %v1738
    %v1740 = vpop.f32.mrf.mxu0
    %v1741 = vadd.f32 %v1639, %v1740
    %1742 = vdwg.mxu0
    %1747 = vrot.lane.b32.xlu0 %v1721, 96
    %v1748 = vpop.permute.xlu0 %1747
    %1749 = vrot.lane.b32.xlu0 %v1727, 96
    %v1750 = vpop.permute.xlu0 %1749
    %1751 = vrot.lane.b32.xlu0 %v1733, 96
    %v1752 = vpop.permute.xlu0 %1751
    %1753 = vrot.lane.b32.xlu0 %v1739, 96
    %v1754 = vpop.permute.xlu0 %1753
    %v1755 = vsel %vm177, %v1721, 0
    %v1757 = vsel %vm177, %v1727, 0
    %v1759 = vsel %vm177, %v1733, 0
    %v1761 = vsel %vm177, %v1739, 0
    %v1763 = vsel %vm177, %v1748, 0
    %v1765 = vsel %vm177, %v1750, 0
    %v1767 = vsel %vm177, %v1752, 0
    %v1769 = vsel %vm177, %v1754, 0
    %1771 = vmatprep.subr.mxu0 0.0
    %1772 = vmatpush1.xpose.msra.mxu0 0.0
    %1773 = vmatprep.subr.mxu0 0.0
    %1774 = vmatpush1.xpose.msra.mxu0 0.0
    %1775 = vmatprep.subr.mxu0 0.0
    %1776 = vmatpush1.xpose.msra.mxu0 0.0
    %1777 = vmatprep.subr.mxu0 0.0
    %1778 = vmatpush1.xpose.msra.mxu0 0.0
    %1779 = vmatprep.subr.mxu0 0.0
    %1780 = vmatpush1.xpose.msra.mxu0 0.0
    %1781 = vmatprep.subr.mxu0 0.0
    %1782 = vmatpush1.xpose.msra.mxu0 0.0
    %1783 = vmatprep.subr.mxu0 0.0
    %1784 = vmatpush1.xpose.msra.mxu0 0.0
    %1785 = vmatprep.subr.mxu0 0.0
    %1786 = vmatpush1.xpose.msra.mxu0 0.0
    %1787 = vmatprep.subr.mxu0 0.0
    %1788 = vmatpush1.xpose.msra.mxu0 0.0
    %1789 = vmatprep.subr.mxu0 0.0
    %1790 = vmatpush1.xpose.msra.mxu0 0.0
    %1791 = vmatprep.subr.mxu0 0.0
    %1792 = vmatpush1.xpose.msra.mxu0 0.0
    %1793 = vmatprep.subr.mxu0 0.0
    %1794 = vmatpush1.xpose.msra.mxu0 0.0
    %1795 = vmatprep.subr.mxu0 0.0
    %1796 = vmatpush1.xpose.msra.mxu0 %v1769
    %1797 = vmatprep.subr.mxu0 0.0
    %1798 = vmatpush1.xpose.msra.mxu0 %v1767
    %1799 = vmatprep.subr.mxu0 0.0
    %1800 = vmatpush1.xpose.msra.mxu0 %v1765
    %1801 = vmatprep.subr.mxu0 0.0
    %1802 = vmatpush1.xpose.msra.mxu0 %v1763
    %1803 = vmatprep.subr.mxu0 0.0
    %1804 = vmatpush2.xpose.msra.mxu0 0.0
    %1805 = vmatprep.subr.mxu0 0.0
    %1806 = vmatpush2.xpose.msra.mxu0 0.0
    %1807 = vmatprep.subr.mxu0 0.0
    %1808 = vmatpush2.xpose.msra.mxu0 0.0
    %1809 = vmatprep.subr.mxu0 0.0
    %1810 = vmatpush2.xpose.msra.mxu0 0.0
    %1811 = vmatprep.subr.mxu0 0.0
    %1812 = vmatpush2.xpose.msra.mxu0 0.0
    %1813 = vmatprep.subr.mxu0 0.0
    %1814 = vmatpush2.xpose.msra.mxu0 0.0
    %1815 = vmatprep.subr.mxu0 0.0
    %1816 = vmatpush2.xpose.msra.mxu0 0.0
    %1817 = vmatprep.subr.mxu0 0.0
    %1818 = vmatpush2.xpose.msra.mxu0 0.0
    %1819 = vmatprep.subr.mxu0 0.0
    %1820 = vmatpush2.xpose.msra.mxu0 0.0
    %1821 = vmatprep.subr.mxu0 0.0
    %1822 = vmatpush2.xpose.msra.mxu0 0.0
    %1823 = vmatprep.subr.mxu0 0.0
    %1824 = vmatpush2.xpose.msra.mxu0 0.0
    %1825 = vmatprep.subr.mxu0 0.0
    %1826 = vmatpush2.xpose.msra.mxu0 0.0
    %1827 = vmatprep.subr.mxu0 0.0
    %1828 = vmatpush2.xpose.msra.mxu0 0.0
    %1829 = vmatprep.subr.mxu0 0.0
    %1830 = vmatpush2.xpose.msra.mxu0 0.0
    %1831 = vmatprep.subr.mxu0 0.0
    %1832 = vmatpush2.xpose.msra.mxu0 0.0
    %1833 = vmatprep.subr.mxu0 0.0
    %1834 = vmatpush2.xpose.msra.mxu0 0.0
    %1835 = vmatprep.mubr.f32.mxu0 0.0
    %1836 = vmatmul.mubr.f32.gmra.mxu0 %v1755
    %v1837 = vpop.f32.mrf.mxu0
    %v1838 = vadd.f32 %v19, %v1837
    %v1839 = vpop.f32.mrf.mxu0
    %1840 = vmatprep.mubr.f32.mxu0 0.0
    %1841 = vmatmul.mubr.f32.gmra.mxu0 %v1757
    %v1842 = vpop.f32.mrf.mxu0
    %v1843 = vadd.f32 %v20, %v1842
    %v1844 = vpop.f32.mrf.mxu0
    %1845 = vmatprep.mubr.f32.mxu0 0.0
    %1846 = vmatmul.mubr.f32.gmra.mxu0 %v1759
    %v1847 = vpop.f32.mrf.mxu0
    %v1848 = vadd.f32 %v21, %v1847
    %v1849 = vpop.f32.mrf.mxu0
    %1850 = vmatprep.mubr.f32.mxu0 0.0
    %1851 = vmatmul.mubr.f32.gmra.mxu0 %v1761
    %v1852 = vpop.f32.mrf.mxu0
    %v1853 = vadd.f32 %v22, %v1852
    %v1854 = vpop.f32.mrf.mxu0
    %1855 = vdwg.mxu0
    %v1856 = vsel %vm63, %v1838, -inf
    %1857 = vmax.xlane.f32.xlu0 %v1856
    %v1858 = vpop.xlane.xlu0 %1857
    %v1859 = vsel %vm63, %v1843, -inf
    %1860 = vmax.xlane.f32.xlu0 %v1859
    %v1861 = vpop.xlane.xlu0 %1860
    %v1862 = vsel %vm63, %v1848, -inf
    %1863 = vmax.xlane.f32.xlu0 %v1862
    %v1864 = vpop.xlane.xlu0 %1863
    %v1865 = vsel %vm63, %v1853, -inf
    %1866 = vmax.xlane.f32.xlu0 %v1865
    %v1867 = vpop.xlane.xlu0 %1866
    %v1868 = vsub.f32 %v1838, %v1858
    %v1869 = vsub.f32 %v1843, %v1861
    %v1870 = vsub.f32 %v1848, %v1864
    %v1871 = vsub.f32 %v1853, %v1867
    %v1872 = vmul.f32 %v1868, 1.442695
    %v1873 = vpow.pop %v1872
    %v1874 = vmul.f32 %v1869, 1.442695
    %v1875 = vpow.pop %v1874
    %v1876 = vmul.f32 %v1870, 1.442695
    %v1877 = vpow.pop %v1876
    %v1878 = vmul.f32 %v1871, 1.442695
    %v1879 = vpow.pop %v1878
    %v1880 = vsel %vm63, %v1873, 0.0
    %1881 = vadd.xlane.f32.xlu0 %v1880
    %v1882 = vpop.xlane.xlu0 %1881
    %v1883 = vsel %vm63, %v1875, 0.0
    %1884 = vadd.xlane.f32.xlu0 %v1883
    %v1885 = vpop.xlane.xlu0 %1884
    %v1886 = vsel %vm63, %v1877, 0.0
    %1887 = vadd.xlane.f32.xlu0 %v1886
    %v1888 = vpop.xlane.xlu0 %1887
    %v1889 = vsel %vm63, %v1879, 0.0
    %1890 = vadd.xlane.f32.xlu0 %v1889
    %v1891 = vpop.xlane.xlu0 %1890
    %v1892 = vrcp.pop %v1882
    %v1893 = vrcp.pop %v1885
    %v1894 = vrcp.pop %v1888
    %v1895 = vrcp.pop %v1891
    %v1896 = vmul.f32 %v1873, %v1892
    %v1897 = vmul.f32 %v1875, %v1893
    %v1898 = vmul.f32 %v1877, %v1894
    %v1899 = vmul.f32 %v1879, %v1895
    %1900 = vrot.lane.b32.xlu0 %v1721, 120
    %v1901 = vpop.permute.xlu0 %1900
    %1902 = vrot.lane.b32.xlu0 %v1727, 120
    %v1903 = vpop.permute.xlu0 %1902
    %1904 = vrot.lane.b32.xlu0 %v1733, 120
    %v1905 = vpop.permute.xlu0 %1904
    %1906 = vrot.lane.b32.xlu0 %v1739, 120
    %v1907 = vpop.permute.xlu0 %1906
    %1908 = vrot.lane.b32.xlu0 %v1721, 88
    %v1909 = vpop.permute.xlu0 %1908
    %1910 = vrot.lane.b32.xlu0 %v1727, 88
    %v1911 = vpop.permute.xlu0 %1910
    %1912 = vrot.lane.b32.xlu0 %v1733, 88
    %v1913 = vpop.permute.xlu0 %1912
    %1914 = vrot.lane.b32.xlu0 %v1739, 88
    %v1915 = vpop.permute.xlu0 %1914
    %v1916 = vsel %vm177, %v1901, 0
    %v1918 = vsel %vm177, %v1903, 0
    %v1920 = vsel %vm177, %v1905, 0
    %v1922 = vsel %vm177, %v1907, 0
    %v1924 = vsel %vm177, %v1909, 0
    %v1926 = vsel %vm177, %v1911, 0
    %v1928 = vsel %vm177, %v1913, 0
    %v1930 = vsel %vm177, %v1915, 0
    %1932 = vmatprep.subr.mxu0 0.0
    %1933 = vmatpush1.xpose.msra.mxu0 0.0
    %1934 = vmatprep.subr.mxu0 0.0
    %1935 = vmatpush1.xpose.msra.mxu0 0.0
    %1936 = vmatprep.subr.mxu0 0.0
    %1937 = vmatpush1.xpose.msra.mxu0 0.0
    %1938 = vmatprep.subr.mxu0 0.0
    %1939 = vmatpush1.xpose.msra.mxu0 0.0
    %1940 = vmatprep.subr.mxu0 0.0
    %1941 = vmatpush1.xpose.msra.mxu0 0.0
    %1942 = vmatprep.subr.mxu0 0.0
    %1943 = vmatpush1.xpose.msra.mxu0 0.0
    %1944 = vmatprep.subr.mxu0 0.0
    %1945 = vmatpush1.xpose.msra.mxu0 0.0
    %1946 = vmatprep.subr.mxu0 0.0
    %1947 = vmatpush1.xpose.msra.mxu0 0.0
    %1948 = vmatprep.subr.mxu0 0.0
    %1949 = vmatpush1.xpose.msra.mxu0 0.0
    %1950 = vmatprep.subr.mxu0 0.0
    %1951 = vmatpush1.xpose.msra.mxu0 0.0
    %1952 = vmatprep.subr.mxu0 0.0
    %1953 = vmatpush1.xpose.msra.mxu0 0.0
    %1954 = vmatprep.subr.mxu0 0.0
    %1955 = vmatpush1.xpose.msra.mxu0 0.0
    %1956 = vmatprep.subr.mxu0 0.0
    %1957 = vmatpush1.xpose.msra.mxu0 %v1930
    %1958 = vmatprep.subr.mxu0 0.0
    %1959 = vmatpush1.xpose.msra.mxu0 %v1928
    %1960 = vmatprep.subr.mxu0 0.0
    %1961 = vmatpush1.xpose.msra.mxu0 %v1926
    %1962 = vmatprep.subr.mxu0 0.0
    %1963 = vmatpush1.xpose.msra.mxu0 %v1924
    %1964 = vmatprep.subr.mxu0 0.0
    %1965 = vmatpush2.xpose.msra.mxu0 0.0
    %1966 = vmatprep.subr.mxu0 0.0
    %1967 = vmatpush2.xpose.msra.mxu0 0.0
    %1968 = vmatprep.subr.mxu0 0.0
    %1969 = vmatpush2.xpose.msra.mxu0 0.0
    %1970 = vmatprep.subr.mxu0 0.0
    %1971 = vmatpush2.xpose.msra.mxu0 0.0
    %1972 = vmatprep.subr.mxu0 0.0
    %1973 = vmatpush2.xpose.msra.mxu0 0.0
    %1974 = vmatprep.subr.mxu0 0.0
    %1975 = vmatpush2.xpose.msra.mxu0 0.0
    %1976 = vmatprep.subr.mxu0 0.0
    %1977 = vmatpush2.xpose.msra.mxu0 0.0
    %1978 = vmatprep.subr.mxu0 0.0
    %1979 = vmatpush2.xpose.msra.mxu0 0.0
    %1980 = vmatprep.subr.mxu0 0.0
    %1981 = vmatpush2.xpose.msra.mxu0 0.0
    %1982 = vmatprep.subr.mxu0 0.0
    %1983 = vmatpush2.xpose.msra.mxu0 0.0
    %1984 = vmatprep.subr.mxu0 0.0
    %1985 = vmatpush2.xpose.msra.mxu0 0.0
    %1986 = vmatprep.subr.mxu0 0.0
    %1987 = vmatpush2.xpose.msra.mxu0 0.0
    %1988 = vmatprep.subr.mxu0 0.0
    %1989 = vmatpush2.xpose.msra.mxu0 0.0
    %1990 = vmatprep.subr.mxu0 0.0
    %1991 = vmatpush2.xpose.msra.mxu0 0.0
    %1992 = vmatprep.subr.mxu0 0.0
    %1993 = vmatpush2.xpose.msra.mxu0 0.0
    %1994 = vmatprep.subr.mxu0 0.0
    %1995 = vmatpush2.xpose.msra.mxu0 0.0
    %1996 = vmatprep.mubr.f32.mxu0 0.0
    %1997 = vmatmul.mubr.f32.gmra.mxu0 %v1916
    %v1998 = vpop.f32.mrf.mxu0
    %v1999 = vadd.f32 %v19, %v1998
    %v2000 = vpop.f32.mrf.mxu0
    %2001 = vmatprep.mubr.f32.mxu0 0.0
    %2002 = vmatmul.mubr.f32.gmra.mxu0 %v1918
    %v2003 = vpop.f32.mrf.mxu0
    %v2004 = vadd.f32 %v20, %v2003
    %v2005 = vpop.f32.mrf.mxu0
    %2006 = vmatprep.mubr.f32.mxu0 0.0
    %2007 = vmatmul.mubr.f32.gmra.mxu0 %v1920
    %v2008 = vpop.f32.mrf.mxu0
    %v2009 = vadd.f32 %v21, %v2008
    %v2010 = vpop.f32.mrf.mxu0
    %2011 = vmatprep.mubr.f32.mxu0 0.0
    %2012 = vmatmul.mubr.f32.gmra.mxu0 %v1922
    %v2013 = vpop.f32.mrf.mxu0
    %v2014 = vadd.f32 %v22, %v2013
    %v2015 = vpop.f32.mrf.mxu0
    %2016 = vdwg.mxu0
    %v2017 = vsel %vm63, %v1999, -inf
    %2018 = vmax.xlane.f32.xlu0 %v2017
    %v2019 = vpop.xlane.xlu0 %2018
    %v2020 = vsel %vm63, %v2004, -inf
    %2021 = vmax.xlane.f32.xlu0 %v2020
    %v2022 = vpop.xlane.xlu0 %2021
    %v2023 = vsel %vm63, %v2009, -inf
    %2024 = vmax.xlane.f32.xlu0 %v2023
    %v2025 = vpop.xlane.xlu0 %2024
    %v2026 = vsel %vm63, %v2014, -inf
    %2027 = vmax.xlane.f32.xlu0 %v2026
    %v2028 = vpop.xlane.xlu0 %2027
    %v2029 = vsub.f32 %v1999, %v2019
    %v2030 = vsub.f32 %v2004, %v2022
    %v2031 = vsub.f32 %v2009, %v2025
    %v2032 = vsub.f32 %v2014, %v2028
    %v2033 = vmul.f32 %v2029, 1.442695
    %v2034 = vpow.pop %v2033
    %v2035 = vmul.f32 %v2030, 1.442695
    %v2036 = vpow.pop %v2035
    %v2037 = vmul.f32 %v2031, 1.442695
    %v2038 = vpow.pop %v2037
    %v2039 = vmul.f32 %v2032, 1.442695
    %v2040 = vpow.pop %v2039
    %v2041 = vsel %vm63, %v2034, 0.0
    %2042 = vadd.xlane.f32.xlu0 %v2041
    %v2043 = vpop.xlane.xlu0 %2042
    %v2044 = vsel %vm63, %v2036, 0.0
    %2045 = vadd.xlane.f32.xlu0 %v2044
    %v2046 = vpop.xlane.xlu0 %2045
    %v2047 = vsel %vm63, %v2038, 0.0
    %2048 = vadd.xlane.f32.xlu0 %v2047
    %v2049 = vpop.xlane.xlu0 %2048
    %v2050 = vsel %vm63, %v2040, 0.0
    %2051 = vadd.xlane.f32.xlu0 %v2050
    %v2052 = vpop.xlane.xlu0 %2051
    %v2053 = vrcp.pop %v2043
    %v2054 = vrcp.pop %v2046
    %v2055 = vrcp.pop %v2049
    %v2056 = vrcp.pop %v2052
    %v2057 = vmul.f32 %v2034, %v2053
    %v2058 = vmul.f32 %v2036, %v2054
    %v2059 = vmul.f32 %v2038, %v2055
    %v2060 = vmul.f32 %v2040, %v2056
    %2061 = vrot.lane.b32.xlu0 %v1721, 32
    %v2062 = vpop.permute.xlu0 %2061
    %2063 = vrot.lane.b32.xlu0 %v1727, 32
    %v2064 = vpop.permute.xlu0 %2063
    %2065 = vrot.lane.b32.xlu0 %v1733, 32
    %v2066 = vpop.permute.xlu0 %2065
    %2067 = vrot.lane.b32.xlu0 %v1739, 32
    %v2068 = vpop.permute.xlu0 %2067
    %v2074 = vsel %vm63, %v2057, 0
    %v2077 = vsel %vm63, %v2058, 0
    %v2080 = vsel %vm63, %v2059, 0
    %v2083 = vsel %vm63, %v2060, 0
    %2085 = vmatprep.subr.mxu0 0.0
    %2086 = vmatpush1.msra.mxu0 0.0
    %2087 = vmatprep.subr.mxu0 0.0
    %2088 = vmatpush1.msra.mxu0 0.0
    %2089 = vmatprep.subr.mxu0 0.0
    %2090 = vmatpush1.msra.mxu0 0.0
    %2091 = vmatprep.subr.mxu0 0.0
    %2092 = vmatpush1.msra.mxu0 0.0
    %2093 = vmatprep.subr.mxu0 0.0
    %2094 = vmatpush1.msra.mxu0 0.0
    %2095 = vmatprep.subr.mxu0 0.0
    %2096 = vmatpush1.msra.mxu0 0.0
    %2097 = vmatprep.subr.mxu0 0.0
    %2098 = vmatpush1.msra.mxu0 0.0
    %2099 = vmatprep.subr.mxu0 0.0
    %2100 = vmatpush1.msra.mxu0 0.0
    %2101 = vmatprep.subr.mxu0 0.0
    %2102 = vmatpush1.msra.mxu0 0.0
    %2103 = vmatprep.subr.mxu0 0.0
    %2104 = vmatpush1.msra.mxu0 0.0
    %2105 = vmatprep.subr.mxu0 0.0
    %2106 = vmatpush1.msra.mxu0 0.0
    %2107 = vmatprep.subr.mxu0 0.0
    %2108 = vmatpush1.msra.mxu0 0.0
    %2109 = vmatprep.subr.mxu0 0.0
    %2110 = vmatpush1.msra.mxu0 %v2068
    %2111 = vmatprep.subr.mxu0 0.0
    %2112 = vmatpush1.msra.mxu0 %v2066
    %2113 = vmatprep.subr.mxu0 0.0
    %2114 = vmatpush1.msra.mxu0 %v2064
    %2115 = vmatprep.subr.mxu0 0.0
    %2116 = vmatpush1.msra.mxu0 %v2062
    %2117 = vmatprep.subr.mxu0 0.0
    %2118 = vmatpush2.msra.mxu0 0.0
    %2119 = vmatprep.subr.mxu0 0.0
    %2120 = vmatpush2.msra.mxu0 0.0
    %2121 = vmatprep.subr.mxu0 0.0
    %2122 = vmatpush2.msra.mxu0 0.0
    %2123 = vmatprep.subr.mxu0 0.0
    %2124 = vmatpush2.msra.mxu0 0.0
    %2125 = vmatprep.subr.mxu0 0.0
    %2126 = vmatpush2.msra.mxu0 0.0
    %2127 = vmatprep.subr.mxu0 0.0
    %2128 = vmatpush2.msra.mxu0 0.0
    %2129 = vmatprep.subr.mxu0 0.0
    %2130 = vmatpush2.msra.mxu0 0.0
    %2131 = vmatprep.subr.mxu0 0.0
    %2132 = vmatpush2.msra.mxu0 0.0
    %2133 = vmatprep.subr.mxu0 0.0
    %2134 = vmatpush2.msra.mxu0 0.0
    %2135 = vmatprep.subr.mxu0 0.0
    %2136 = vmatpush2.msra.mxu0 0.0
    %2137 = vmatprep.subr.mxu0 0.0
    %2138 = vmatpush2.msra.mxu0 0.0
    %2139 = vmatprep.subr.mxu0 0.0
    %2140 = vmatpush2.msra.mxu0 0.0
    %2141 = vmatprep.subr.mxu0 0.0
    %2142 = vmatpush2.msra.mxu0 0.0
    %2143 = vmatprep.subr.mxu0 0.0
    %2144 = vmatpush2.msra.mxu0 0.0
    %2145 = vmatprep.subr.mxu0 0.0
    %2146 = vmatpush2.msra.mxu0 0.0
    %2147 = vmatprep.subr.mxu0 0.0
    %2148 = vmatpush2.msra.mxu0 0.0
    %2149 = vmatprep.mubr.f32.mxu0 0.0
    %2150 = vmatmul.mubr.f32.gmra.mxu0 %v2074
    %v2151 = vpop.f32.mrf.mxu0
    %v2152 = vadd.f32 0.0, %v2151
    %v2153 = vpop.f32.mrf.mxu0
    %2154 = vmatprep.mubr.f32.mxu0 0.0
    %2155 = vmatmul.mubr.f32.gmra.mxu0 %v2077
    %v2156 = vpop.f32.mrf.mxu0
    %v2157 = vadd.f32 0.0, %v2156
    %v2158 = vpop.f32.mrf.mxu0
    %2159 = vmatprep.mubr.f32.mxu0 0.0
    %2160 = vmatmul.mubr.f32.gmra.mxu0 %v2080
    %v2161 = vpop.f32.mrf.mxu0
    %v2162 = vadd.f32 0.0, %v2161
    %v2163 = vpop.f32.mrf.mxu0
    %2164 = vmatprep.mubr.f32.mxu0 0.0
    %2165 = vmatmul.mubr.f32.gmra.mxu0 %v2083
    %v2166 = vpop.f32.mrf.mxu0
    %v2167 = vadd.f32 0.0, %v2166
    %v2168 = vpop.f32.mrf.mxu0
    %2169 = vdwg.mxu0
    %2170 = vrot.lane.b32.xlu0 %v1721, 64
    %v2171 = vpop.permute.xlu0 %2170
    %2172 = vrot.lane.b32.xlu0 %v1727, 64
    %v2173 = vpop.permute.xlu0 %2172
    %2174 = vrot.lane.b32.xlu0 %v1733, 64
    %v2175 = vpop.permute.xlu0 %2174
    %2176 = vrot.lane.b32.xlu0 %v1739, 64
    %v2177 = vpop.permute.xlu0 %2176
    %v2183 = vsel %vm63, %v1896, 0
    %v2186 = vsel %vm63, %v1897, 0
    %v2189 = vsel %vm63, %v1898, 0
    %v2192 = vsel %vm63, %v1899, 0
    %2194 = vmatprep.subr.mxu0 0.0
    %2195 = vmatpush1.msra.mxu0 0.0
    %2196 = vmatprep.subr.mxu0 0.0
    %2197 = vmatpush1.msra.mxu0 0.0
    %2198 = vmatprep.subr.mxu0 0.0
    %2199 = vmatpush1.msra.mxu0 0.0
    %2200 = vmatprep.subr.mxu0 0.0
    %2201 = vmatpush1.msra.mxu0 0.0
    %2202 = vmatprep.subr.mxu0 0.0
    %2203 = vmatpush1.msra.mxu0 0.0
    %2204 = vmatprep.subr.mxu0 0.0
    %2205 = vmatpush1.msra.mxu0 0.0
    %2206 = vmatprep.subr.mxu0 0.0
    %2207 = vmatpush1.msra.mxu0 0.0
    %2208 = vmatprep.subr.mxu0 0.0
    %2209 = vmatpush1.msra.mxu0 0.0
    %2210 = vmatprep.subr.mxu0 0.0
    %2211 = vmatpush1.msra.mxu0 0.0
    %2212 = vmatprep.subr.mxu0 0.0
    %2213 = vmatpush1.msra.mxu0 0.0
    %2214 = vmatprep.subr.mxu0 0.0
    %2215 = vmatpush1.msra.mxu0 0.0
    %2216 = vmatprep.subr.mxu0 0.0
    %2217 = vmatpush1.msra.mxu0 0.0
    %2218 = vmatprep.subr.mxu0 0.0
    %2219 = vmatpush1.msra.mxu0 %v2177
    %2220 = vmatprep.subr.mxu0 0.0
    %2221 = vmatpush1.msra.mxu0 %v2175
    %2222 = vmatprep.subr.mxu0 0.0
    %2223 = vmatpush1.msra.mxu0 %v2173
    %2224 = vmatprep.subr.mxu0 0.0
    %2225 = vmatpush1.msra.mxu0 %v2171
    %2226 = vmatprep.subr.mxu0 0.0
    %2227 = vmatpush2.msra.mxu0 0.0
    %2228 = vmatprep.subr.mxu0 0.0
    %2229 = vmatpush2.msra.mxu0 0.0
    %2230 = vmatprep.subr.mxu0 0.0
    %2231 = vmatpush2.msra.mxu0 0.0
    %2232 = vmatprep.subr.mxu0 0.0
    %2233 = vmatpush2.msra.mxu0 0.0
    %2234 = vmatprep.subr.mxu0 0.0
    %2235 = vmatpush2.msra.mxu0 0.0
    %2236 = vmatprep.subr.mxu0 0.0
    %2237 = vmatpush2.msra.mxu0 0.0
    %2238 = vmatprep.subr.mxu0 0.0
    %2239 = vmatpush2.msra.mxu0 0.0
    %2240 = vmatprep.subr.mxu0 0.0
    %2241 = vmatpush2.msra.mxu0 0.0
    %2242 = vmatprep.subr.mxu0 0.0
    %2243 = vmatpush2.msra.mxu0 0.0
    %2244 = vmatprep.subr.mxu0 0.0
    %2245 = vmatpush2.msra.mxu0 0.0
    %2246 = vmatprep.subr.mxu0 0.0
    %2247 = vmatpush2.msra.mxu0 0.0
    %2248 = vmatprep.subr.mxu0 0.0
    %2249 = vmatpush2.msra.mxu0 0.0
    %2250 = vmatprep.subr.mxu0 0.0
    %2251 = vmatpush2.msra.mxu0 0.0
    %2252 = vmatprep.subr.mxu0 0.0
    %2253 = vmatpush2.msra.mxu0 0.0
    %2254 = vmatprep.subr.mxu0 0.0
    %2255 = vmatpush2.msra.mxu0 0.0
    %2256 = vmatprep.subr.mxu0 0.0
    %2257 = vmatpush2.msra.mxu0 0.0
    %2258 = vmatprep.mubr.f32.mxu0 0.0
    %2259 = vmatmul.mubr.f32.gmra.mxu0 %v2183
    %v2260 = vpop.f32.mrf.mxu0
    %v2261 = vadd.f32 %v2152, %v2260
    %v2262 = vpop.f32.mrf.mxu0
    %2263 = vmatprep.mubr.f32.mxu0 0.0
    %2264 = vmatmul.mubr.f32.gmra.mxu0 %v2186
    %v2265 = vpop.f32.mrf.mxu0
    %v2266 = vadd.f32 %v2157, %v2265
    %v2267 = vpop.f32.mrf.mxu0
    %2268 = vmatprep.mubr.f32.mxu0 0.0
    %2269 = vmatmul.mubr.f32.gmra.mxu0 %v2189
    %v2270 = vpop.f32.mrf.mxu0
    %v2271 = vadd.f32 %v2162, %v2270
    %v2272 = vpop.f32.mrf.mxu0
    %2273 = vmatprep.mubr.f32.mxu0 0.0
    %2274 = vmatmul.mubr.f32.gmra.mxu0 %v2192
    %v2275 = vpop.f32.mrf.mxu0
    %v2276 = vadd.f32 %v2167, %v2275
    %v2277 = vpop.f32.mrf.mxu0
    %2278 = vdwg.mxu0
    %2279 = vrot.lane.b32.xlu0 %v1721, 112
    %v2280 = vpop.permute.xlu0 %2279
    %2281 = vrot.lane.b32.xlu0 %v1727, 112
    %v2282 = vpop.permute.xlu0 %2281
    %2283 = vrot.lane.b32.xlu0 %v1733, 112
    %v2284 = vpop.permute.xlu0 %2283
    %2285 = vrot.lane.b32.xlu0 %v1739, 112
    %v2286 = vpop.permute.xlu0 %2285
    %2287 = vrot.lane.b32.xlu0 %v1721, 80
    %v2288 = vpop.permute.xlu0 %2287
    %2289 = vrot.lane.b32.xlu0 %v1727, 80
    %v2290 = vpop.permute.xlu0 %2289
    %2291 = vrot.lane.b32.xlu0 %v1733, 80
    %v2292 = vpop.permute.xlu0 %2291
    %2293 = vrot.lane.b32.xlu0 %v1739, 80
    %v2294 = vpop.permute.xlu0 %2293
    %v2295 = vsel %vm177, %v2280, 0
    %v2297 = vsel %vm177, %v2282, 0
    %v2299 = vsel %vm177, %v2284, 0
    %v2301 = vsel %vm177, %v2286, 0
    %v2303 = vsel %vm177, %v2288, 0
    %v2305 = vsel %vm177, %v2290, 0
    %v2307 = vsel %vm177, %v2292, 0
    %v2309 = vsel %vm177, %v2294, 0
    %2311 = vmatprep.subr.mxu0 0.0
    %2312 = vmatpush1.xpose.msra.mxu0 0.0
    %2313 = vmatprep.subr.mxu0 0.0
    %2314 = vmatpush1.xpose.msra.mxu0 0.0
    %2315 = vmatprep.subr.mxu0 0.0
    %2316 = vmatpush1.xpose.msra.mxu0 0.0
    %2317 = vmatprep.subr.mxu0 0.0
    %2318 = vmatpush1.xpose.msra.mxu0 0.0
    %2319 = vmatprep.subr.mxu0 0.0
    %2320 = vmatpush1.xpose.msra.mxu0 0.0
    %2321 = vmatprep.subr.mxu0 0.0
    %2322 = vmatpush1.xpose.msra.mxu0 0.0
    %2323 = vmatprep.subr.mxu0 0.0
    %2324 = vmatpush1.xpose.msra.mxu0 0.0
    %2325 = vmatprep.subr.mxu0 0.0
    %2326 = vmatpush1.xpose.msra.mxu0 0.0
    %2327 = vmatprep.subr.mxu0 0.0
    %2328 = vmatpush1.xpose.msra.mxu0 0.0
    %2329 = vmatprep.subr.mxu0 0.0
    %2330 = vmatpush1.xpose.msra.mxu0 0.0
    %2331 = vmatprep.subr.mxu0 0.0
    %2332 = vmatpush1.xpose.msra.mxu0 0.0
    %2333 = vmatprep.subr.mxu0 0.0
    %2334 = vmatpush1.xpose.msra.mxu0 0.0
    %2335 = vmatprep.subr.mxu0 0.0
    %2336 = vmatpush1.xpose.msra.mxu0 %v2309
    %2337 = vmatprep.subr.mxu0 0.0
    %2338 = vmatpush1.xpose.msra.mxu0 %v2307
    %2339 = vmatprep.subr.mxu0 0.0
    %2340 = vmatpush1.xpose.msra.mxu0 %v2305
    %2341 = vmatprep.subr.mxu0 0.0
    %2342 = vmatpush1.xpose.msra.mxu0 %v2303
    %2343 = vmatprep.subr.mxu0 0.0
    %2344 = vmatpush2.xpose.msra.mxu0 0.0
    %2345 = vmatprep.subr.mxu0 0.0
    %2346 = vmatpush2.xpose.msra.mxu0 0.0
    %2347 = vmatprep.subr.mxu0 0.0
    %2348 = vmatpush2.xpose.msra.mxu0 0.0
    %2349 = vmatprep.subr.mxu0 0.0
    %2350 = vmatpush2.xpose.msra.mxu0 0.0
    %2351 = vmatprep.subr.mxu0 0.0
    %2352 = vmatpush2.xpose.msra.mxu0 0.0
    %2353 = vmatprep.subr.mxu0 0.0
    %2354 = vmatpush2.xpose.msra.mxu0 0.0
    %2355 = vmatprep.subr.mxu0 0.0
    %2356 = vmatpush2.xpose.msra.mxu0 0.0
    %2357 = vmatprep.subr.mxu0 0.0
    %2358 = vmatpush2.xpose.msra.mxu0 0.0
    %2359 = vmatprep.subr.mxu0 0.0
    %2360 = vmatpush2.xpose.msra.mxu0 0.0
    %2361 = vmatprep.subr.mxu0 0.0
    %2362 = vmatpush2.xpose.msra.mxu0 0.0
    %2363 = vmatprep.subr.mxu0 0.0
    %2364 = vmatpush2.xpose.msra.mxu0 0.0
    %2365 = vmatprep.subr.mxu0 0.0
    %2366 = vmatpush2.xpose.msra.mxu0 0.0
    %2367 = vmatprep.subr.mxu0 0.0
    %2368 = vmatpush2.xpose.msra.mxu0 0.0
    %2369 = vmatprep.subr.mxu0 0.0
    %2370 = vmatpush2.xpose.msra.mxu0 0.0
    %2371 = vmatprep.subr.mxu0 0.0
    %2372 = vmatpush2.xpose.msra.mxu0 0.0
    %2373 = vmatprep.subr.mxu0 0.0
    %2374 = vmatpush2.xpose.msra.mxu0 0.0
    %2375 = vmatprep.mubr.f32.mxu0 0.0
    %2376 = vmatmul.mubr.f32.gmra.mxu0 %v2295
    %v2377 = vpop.f32.mrf.mxu0
    %v2378 = vadd.f32 %v19, %v2377
    %v2379 = vpop.f32.mrf.mxu0
    %2380 = vmatprep.mubr.f32.mxu0 0.0
    %2381 = vmatmul.mubr.f32.gmra.mxu0 %v2297
    %v2382 = vpop.f32.mrf.mxu0
    %v2383 = vadd.f32 %v20, %v2382
    %v2384 = vpop.f32.mrf.mxu0
    %2385 = vmatprep.mubr.f32.mxu0 0.0
    %2386 = vmatmul.mubr.f32.gmra.mxu0 %v2299
    %v2387 = vpop.f32.mrf.mxu0
    %v2388 = vadd.f32 %v21, %v2387
    %v2389 = vpop.f32.mrf.mxu0
    %2390 = vmatprep.mubr.f32.mxu0 0.0
    %2391 = vmatmul.mubr.f32.gmra.mxu0 %v2301
    %v2392 = vpop.f32.mrf.mxu0
    %v2393 = vadd.f32 %v22, %v2392
    %v2394 = vpop.f32.mrf.mxu0
    %2395 = vdwg.mxu0
    %v2396 = vsel %vm63, %v2378, -inf
    %2397 = vmax.xlane.f32.xlu0 %v2396
    %v2398 = vpop.xlane.xlu0 %2397
    %v2399 = vsel %vm63, %v2383, -inf
    %2400 = vmax.xlane.f32.xlu0 %v2399
    %v2401 = vpop.xlane.xlu0 %2400
    %v2402 = vsel %vm63, %v2388, -inf
    %2403 = vmax.xlane.f32.xlu0 %v2402
    %v2404 = vpop.xlane.xlu0 %2403
    %v2405 = vsel %vm63, %v2393, -inf
    %2406 = vmax.xlane.f32.xlu0 %v2405
    %v2407 = vpop.xlane.xlu0 %2406
    %v2408 = vsub.f32 %v2378, %v2398
    %v2409 = vsub.f32 %v2383, %v2401
    %v2410 = vsub.f32 %v2388, %v2404
    %v2411 = vsub.f32 %v2393, %v2407
    %v2412 = vmul.f32 %v2408, 1.442695
    %v2413 = vpow.pop %v2412
    %v2414 = vmul.f32 %v2409, 1.442695
    %v2415 = vpow.pop %v2414
    %v2416 = vmul.f32 %v2410, 1.442695
    %v2417 = vpow.pop %v2416
    %v2418 = vmul.f32 %v2411, 1.442695
    %v2419 = vpow.pop %v2418
    %v2420 = vsel %vm63, %v2413, 0.0
    %2421 = vadd.xlane.f32.xlu0 %v2420
    %v2422 = vpop.xlane.xlu0 %2421
    %v2423 = vsel %vm63, %v2415, 0.0
    %2424 = vadd.xlane.f32.xlu0 %v2423
    %v2425 = vpop.xlane.xlu0 %2424
    %v2426 = vsel %vm63, %v2417, 0.0
    %2427 = vadd.xlane.f32.xlu0 %v2426
    %v2428 = vpop.xlane.xlu0 %2427
    %v2429 = vsel %vm63, %v2419, 0.0
    %2430 = vadd.xlane.f32.xlu0 %v2429
    %v2431 = vpop.xlane.xlu0 %2430
    %v2432 = vrcp.pop %v2422
    %v2433 = vrcp.pop %v2425
    %v2434 = vrcp.pop %v2428
    %v2435 = vrcp.pop %v2431
    %v2436 = vmul.f32 %v2413, %v2432
    %v2437 = vmul.f32 %v2415, %v2433
    %v2438 = vmul.f32 %v2417, %v2434
    %v2439 = vmul.f32 %v2419, %v2435
    %v2441 = vsel %vm63, %v2436, 0
    %v2444 = vsel %vm63, %v2437, 0
    %v2447 = vsel %vm63, %v2438, 0
    %v2450 = vsel %vm63, %v2439, 0
    %2452 = vmatprep.subr.mxu0 0.0
    %2453 = vmatpush1.msra.mxu0 0.0
    %2454 = vmatprep.subr.mxu0 0.0
    %2455 = vmatpush1.msra.mxu0 0.0
    %2456 = vmatprep.subr.mxu0 0.0
    %2457 = vmatpush1.msra.mxu0 0.0
    %2458 = vmatprep.subr.mxu0 0.0
    %2459 = vmatpush1.msra.mxu0 0.0
    %2460 = vmatprep.subr.mxu0 0.0
    %2461 = vmatpush1.msra.mxu0 0.0
    %2462 = vmatprep.subr.mxu0 0.0
    %2463 = vmatpush1.msra.mxu0 0.0
    %2464 = vmatprep.subr.mxu0 0.0
    %2465 = vmatpush1.msra.mxu0 0.0
    %2466 = vmatprep.subr.mxu0 0.0
    %2467 = vmatpush1.msra.mxu0 0.0
    %2468 = vmatprep.subr.mxu0 0.0
    %2469 = vmatpush1.msra.mxu0 0.0
    %2470 = vmatprep.subr.mxu0 0.0
    %2471 = vmatpush1.msra.mxu0 0.0
    %2472 = vmatprep.subr.mxu0 0.0
    %2473 = vmatpush1.msra.mxu0 0.0
    %2474 = vmatprep.subr.mxu0 0.0
    %2475 = vmatpush1.msra.mxu0 0.0
    %2476 = vmatprep.subr.mxu0 0.0
    %2477 = vmatpush1.msra.mxu0 %v1741
    %2478 = vmatprep.subr.mxu0 0.0
    %2479 = vmatpush1.msra.mxu0 %v1735
    %2480 = vmatprep.subr.mxu0 0.0
    %2481 = vmatpush1.msra.mxu0 %v1729
    %2482 = vmatprep.subr.mxu0 0.0
    %2483 = vmatpush1.msra.mxu0 %v1723
    %2484 = vmatprep.subr.mxu0 0.0
    %2485 = vmatpush2.msra.mxu0 0.0
    %2486 = vmatprep.subr.mxu0 0.0
    %2487 = vmatpush2.msra.mxu0 0.0
    %2488 = vmatprep.subr.mxu0 0.0
    %2489 = vmatpush2.msra.mxu0 0.0
    %2490 = vmatprep.subr.mxu0 0.0
    %2491 = vmatpush2.msra.mxu0 0.0
    %2492 = vmatprep.subr.mxu0 0.0
    %2493 = vmatpush2.msra.mxu0 0.0
    %2494 = vmatprep.subr.mxu0 0.0
    %2495 = vmatpush2.msra.mxu0 0.0
    %2496 = vmatprep.subr.mxu0 0.0
    %2497 = vmatpush2.msra.mxu0 0.0
    %2498 = vmatprep.subr.mxu0 0.0
    %2499 = vmatpush2.msra.mxu0 0.0
    %2500 = vmatprep.subr.mxu0 0.0
    %2501 = vmatpush2.msra.mxu0 0.0
    %2502 = vmatprep.subr.mxu0 0.0
    %2503 = vmatpush2.msra.mxu0 0.0
    %2504 = vmatprep.subr.mxu0 0.0
    %2505 = vmatpush2.msra.mxu0 0.0
    %2506 = vmatprep.subr.mxu0 0.0
    %2507 = vmatpush2.msra.mxu0 0.0
    %2508 = vmatprep.subr.mxu0 0.0
    %2509 = vmatpush2.msra.mxu0 0.0
    %2510 = vmatprep.subr.mxu0 0.0
    %2511 = vmatpush2.msra.mxu0 0.0
    %2512 = vmatprep.subr.mxu0 0.0
    %2513 = vmatpush2.msra.mxu0 0.0
    %2514 = vmatprep.subr.mxu0 0.0
    %2515 = vmatpush2.msra.mxu0 0.0
    %2516 = vmatprep.mubr.f32.mxu0 0.0
    %2517 = vmatmul.mubr.f32.gmra.mxu0 %v2441
    %v2518 = vpop.f32.mrf.mxu0
    %v2519 = vadd.f32 0.0, %v2518
    %v2520 = vpop.f32.mrf.mxu0
    %2521 = vmatprep.mubr.f32.mxu0 0.0
    %2522 = vmatmul.mubr.f32.gmra.mxu0 %v2444
    %v2523 = vpop.f32.mrf.mxu0
    %v2524 = vadd.f32 0.0, %v2523
    %v2525 = vpop.f32.mrf.mxu0
    %2526 = vmatprep.mubr.f32.mxu0 0.0
    %2527 = vmatmul.mubr.f32.gmra.mxu0 %v2447
    %v2528 = vpop.f32.mrf.mxu0
    %v2529 = vadd.f32 0.0, %v2528
    %v2530 = vpop.f32.mrf.mxu0
    %2531 = vmatprep.mubr.f32.mxu0 0.0
    %2532 = vmatmul.mubr.f32.gmra.mxu0 %v2450
    %v2533 = vpop.f32.mrf.mxu0
    %v2534 = vadd.f32 0.0, %v2533
    %v2535 = vpop.f32.mrf.mxu0
    %2536 = vdwg.mxu0
    %v2537 = vadd.f32 %v2261, %v2519
    %v2538 = vadd.f32 %v2266, %v2524
    %v2539 = vadd.f32 %v2271, %v2529
    %v2540 = vadd.f32 %v2276, %v2534
    %2541 = vrot.lane.b32.xlu0 %v1721, 104
    %v2542 = vpop.permute.xlu0 %2541
    %2543 = vrot.lane.b32.xlu0 %v1727, 104
    %v2544 = vpop.permute.xlu0 %2543
    %2545 = vrot.lane.b32.xlu0 %v1733, 104
    %v2546 = vpop.permute.xlu0 %2545
    %2547 = vrot.lane.b32.xlu0 %v1739, 104
    %v2548 = vpop.permute.xlu0 %2547
    %2549 = vrot.lane.b32.xlu0 %v1721, 72
    %v2550 = vpop.permute.xlu0 %2549
    %2551 = vrot.lane.b32.xlu0 %v1727, 72
    %v2552 = vpop.permute.xlu0 %2551
    %2553 = vrot.lane.b32.xlu0 %v1733, 72
    %v2554 = vpop.permute.xlu0 %2553
    %2555 = vrot.lane.b32.xlu0 %v1739, 72
    %v2556 = vpop.permute.xlu0 %2555
    %v2557 = vsel %vm177, %v2542, 0
    %v2559 = vsel %vm177, %v2544, 0
    %v2561 = vsel %vm177, %v2546, 0
    %v2563 = vsel %vm177, %v2548, 0
    %v2565 = vsel %vm177, %v2550, 0
    %v2567 = vsel %vm177, %v2552, 0
    %v2569 = vsel %vm177, %v2554, 0
    %v2571 = vsel %vm177, %v2556, 0
    %2573 = vmatprep.subr.mxu0 0.0
    %2574 = vmatpush1.xpose.msra.mxu0 0.0
    %2575 = vmatprep.subr.mxu0 0.0
    %2576 = vmatpush1.xpose.msra.mxu0 0.0
    %2577 = vmatprep.subr.mxu0 0.0
    %2578 = vmatpush1.xpose.msra.mxu0 0.0
    %2579 = vmatprep.subr.mxu0 0.0
    %2580 = vmatpush1.xpose.msra.mxu0 0.0
    %2581 = vmatprep.subr.mxu0 0.0
    %2582 = vmatpush1.xpose.msra.mxu0 0.0
    %2583 = vmatprep.subr.mxu0 0.0
    %2584 = vmatpush1.xpose.msra.mxu0 0.0
    %2585 = vmatprep.subr.mxu0 0.0
    %2586 = vmatpush1.xpose.msra.mxu0 0.0
    %2587 = vmatprep.subr.mxu0 0.0
    %2588 = vmatpush1.xpose.msra.mxu0 0.0
    %2589 = vmatprep.subr.mxu0 0.0
    %2590 = vmatpush1.xpose.msra.mxu0 0.0
    %2591 = vmatprep.subr.mxu0 0.0
    %2592 = vmatpush1.xpose.msra.mxu0 0.0
    %2593 = vmatprep.subr.mxu0 0.0
    %2594 = vmatpush1.xpose.msra.mxu0 0.0
    %2595 = vmatprep.subr.mxu0 0.0
    %2596 = vmatpush1.xpose.msra.mxu0 0.0
    %2597 = vmatprep.subr.mxu0 0.0
    %2598 = vmatpush1.xpose.msra.mxu0 %v2571
    %2599 = vmatprep.subr.mxu0 0.0
    %2600 = vmatpush1.xpose.msra.mxu0 %v2569
    %2601 = vmatprep.subr.mxu0 0.0
    %2602 = vmatpush1.xpose.msra.mxu0 %v2567
    %2603 = vmatprep.subr.mxu0 0.0
    %2604 = vmatpush1.xpose.msra.mxu0 %v2565
    %2605 = vmatprep.subr.mxu0 0.0
    %2606 = vmatpush2.xpose.msra.mxu0 0.0
    %2607 = vmatprep.subr.mxu0 0.0
    %2608 = vmatpush2.xpose.msra.mxu0 0.0
    %2609 = vmatprep.subr.mxu0 0.0
    %2610 = vmatpush2.xpose.msra.mxu0 0.0
    %2611 = vmatprep.subr.mxu0 0.0
    %2612 = vmatpush2.xpose.msra.mxu0 0.0
    %2613 = vmatprep.subr.mxu0 0.0
    %2614 = vmatpush2.xpose.msra.mxu0 0.0
    %2615 = vmatprep.subr.mxu0 0.0
    %2616 = vmatpush2.xpose.msra.mxu0 0.0
    %2617 = vmatprep.subr.mxu0 0.0
    %2618 = vmatpush2.xpose.msra.mxu0 0.0
    %2619 = vmatprep.subr.mxu0 0.0
    %2620 = vmatpush2.xpose.msra.mxu0 0.0
    %2621 = vmatprep.subr.mxu0 0.0
    %2622 = vmatpush2.xpose.msra.mxu0 0.0
    %2623 = vmatprep.subr.mxu0 0.0
    %2624 = vmatpush2.xpose.msra.mxu0 0.0
    %2625 = vmatprep.subr.mxu0 0.0
    %2626 = vmatpush2.xpose.msra.mxu0 0.0
    %2627 = vmatprep.subr.mxu0 0.0
    %2628 = vmatpush2.xpose.msra.mxu0 0.0
    %2629 = vmatprep.subr.mxu0 0.0
    %2630 = vmatpush2.xpose.msra.mxu0 0.0
    %2631 = vmatprep.subr.mxu0 0.0
    %2632 = vmatpush2.xpose.msra.mxu0 0.0
    %2633 = vmatprep.subr.mxu0 0.0
    %2634 = vmatpush2.xpose.msra.mxu0 0.0
    %2635 = vmatprep.subr.mxu0 0.0
    %2636 = vmatpush2.xpose.msra.mxu0 0.0
    %2637 = vmatprep.mubr.f32.mxu0 0.0
    %2638 = vmatmul.mubr.f32.gmra.mxu0 %v2557
    %v2639 = vpop.f32.mrf.mxu0
    %v2640 = vadd.f32 %v19, %v2639
    %v2641 = vpop.f32.mrf.mxu0
    %2642 = vmatprep.mubr.f32.mxu0 0.0
    %2643 = vmatmul.mubr.f32.gmra.mxu0 %v2559
    %v2644 = vpop.f32.mrf.mxu0
    %v2645 = vadd.f32 %v20, %v2644
    %v2646 = vpop.f32.mrf.mxu0
    %2647 = vmatprep.mubr.f32.mxu0 0.0
    %2648 = vmatmul.mubr.f32.gmra.mxu0 %v2561
    %v2649 = vpop.f32.mrf.mxu0
    %v2650 = vadd.f32 %v21, %v2649
    %v2651 = vpop.f32.mrf.mxu0
    %2652 = vmatprep.mubr.f32.mxu0 0.0
    %2653 = vmatmul.mubr.f32.gmra.mxu0 %v2563
    %v2654 = vpop.f32.mrf.mxu0
    %v2655 = vadd.f32 %v22, %v2654
    %v2656 = vpop.f32.mrf.mxu0
    %2657 = vdwg.mxu0
    %v2658 = vsel %vm63, %v2640, -inf
    %2659 = vmax.xlane.f32.xlu0 %v2658
    %v2660 = vpop.xlane.xlu0 %2659
    %v2661 = vsel %vm63, %v2645, -inf
    %2662 = vmax.xlane.f32.xlu0 %v2661
    %v2663 = vpop.xlane.xlu0 %2662
    %v2664 = vsel %vm63, %v2650, -inf
    %2665 = vmax.xlane.f32.xlu0 %v2664
    %v2666 = vpop.xlane.xlu0 %2665
    %v2667 = vsel %vm63, %v2655, -inf
    %2668 = vmax.xlane.f32.xlu0 %v2667
    %v2669 = vpop.xlane.xlu0 %2668
    %v2670 = vsub.f32 %v2640, %v2660
    %v2671 = vsub.f32 %v2645, %v2663
    %v2672 = vsub.f32 %v2650, %v2666
    %v2673 = vsub.f32 %v2655, %v2669
    %v2674 = vmul.f32 %v2670, 1.442695
    %v2675 = vpow.pop %v2674
    %v2676 = vmul.f32 %v2671, 1.442695
    %v2677 = vpow.pop %v2676
    %v2678 = vmul.f32 %v2672, 1.442695
    %v2679 = vpow.pop %v2678
    %v2680 = vmul.f32 %v2673, 1.442695
    %v2681 = vpow.pop %v2680
    %v2682 = vsel %vm63, %v2675, 0.0
    %2683 = vadd.xlane.f32.xlu0 %v2682
    %v2684 = vpop.xlane.xlu0 %2683
    %v2685 = vsel %vm63, %v2677, 0.0
    %2686 = vadd.xlane.f32.xlu0 %v2685
    %v2687 = vpop.xlane.xlu0 %2686
    %v2688 = vsel %vm63, %v2679, 0.0
    %2689 = vadd.xlane.f32.xlu0 %v2688
    %v2690 = vpop.xlane.xlu0 %2689
    %v2691 = vsel %vm63, %v2681, 0.0
    %2692 = vadd.xlane.f32.xlu0 %v2691
    %v2693 = vpop.xlane.xlu0 %2692
    %v2694 = vrcp.pop %v2684
    %v2695 = vrcp.pop %v2687
    %v2696 = vrcp.pop %v2690
    %v2697 = vrcp.pop %v2693
    %v2698 = vmul.f32 %v2675, %v2694
    %v2699 = vmul.f32 %v2677, %v2695
    %v2700 = vmul.f32 %v2679, %v2696
    %v2701 = vmul.f32 %v2681, %v2697
    %2706 = vrot.lane.b32.xlu0 %v1723, 96
    %v2707 = vpop.permute.xlu0 %2706
    %2708 = vrot.lane.b32.xlu0 %v1729, 96
    %v2709 = vpop.permute.xlu0 %2708
    %2710 = vrot.lane.b32.xlu0 %v1735, 96
    %v2711 = vpop.permute.xlu0 %2710
    %2712 = vrot.lane.b32.xlu0 %v1741, 96
    %v2713 = vpop.permute.xlu0 %2712
    %v2719 = vsel %vm63, %v2698, 0
    %v2722 = vsel %vm63, %v2699, 0
    %v2725 = vsel %vm63, %v2700, 0
    %v2728 = vsel %vm63, %v2701, 0
    %2730 = vmatprep.subr.mxu0 0.0
    %2731 = vmatpush1.msra.mxu0 0.0
    %2732 = vmatprep.subr.mxu0 0.0
    %2733 = vmatpush1.msra.mxu0 0.0
    %2734 = vmatprep.subr.mxu0 0.0
    %2735 = vmatpush1.msra.mxu0 0.0
    %2736 = vmatprep.subr.mxu0 0.0
    %2737 = vmatpush1.msra.mxu0 0.0
    %2738 = vmatprep.subr.mxu0 0.0
    %2739 = vmatpush1.msra.mxu0 0.0
    %2740 = vmatprep.subr.mxu0 0.0
    %2741 = vmatpush1.msra.mxu0 0.0
    %2742 = vmatprep.subr.mxu0 0.0
    %2743 = vmatpush1.msra.mxu0 0.0
    %2744 = vmatprep.subr.mxu0 0.0
    %2745 = vmatpush1.msra.mxu0 0.0
    %2746 = vmatprep.subr.mxu0 0.0
    %2747 = vmatpush1.msra.mxu0 0.0
    %2748 = vmatprep.subr.mxu0 0.0
    %2749 = vmatpush1.msra.mxu0 0.0
    %2750 = vmatprep.subr.mxu0 0.0
    %2751 = vmatpush1.msra.mxu0 0.0
    %2752 = vmatprep.subr.mxu0 0.0
    %2753 = vmatpush1.msra.mxu0 0.0
    %2754 = vmatprep.subr.mxu0 0.0
    %2755 = vmatpush1.msra.mxu0 %v2713
    %2756 = vmatprep.subr.mxu0 0.0
    %2757 = vmatpush1.msra.mxu0 %v2711
    %2758 = vmatprep.subr.mxu0 0.0
    %2759 = vmatpush1.msra.mxu0 %v2709
    %2760 = vmatprep.subr.mxu0 0.0
    %2761 = vmatpush1.msra.mxu0 %v2707
    %2762 = vmatprep.subr.mxu0 0.0
    %2763 = vmatpush2.msra.mxu0 0.0
    %2764 = vmatprep.subr.mxu0 0.0
    %2765 = vmatpush2.msra.mxu0 0.0
    %2766 = vmatprep.subr.mxu0 0.0
    %2767 = vmatpush2.msra.mxu0 0.0
    %2768 = vmatprep.subr.mxu0 0.0
    %2769 = vmatpush2.msra.mxu0 0.0
    %2770 = vmatprep.subr.mxu0 0.0
    %2771 = vmatpush2.msra.mxu0 0.0
    %2772 = vmatprep.subr.mxu0 0.0
    %2773 = vmatpush2.msra.mxu0 0.0
    %2774 = vmatprep.subr.mxu0 0.0
    %2775 = vmatpush2.msra.mxu0 0.0
    %2776 = vmatprep.subr.mxu0 0.0
    %2777 = vmatpush2.msra.mxu0 0.0
    %2778 = vmatprep.subr.mxu0 0.0
    %2779 = vmatpush2.msra.mxu0 0.0
    %2780 = vmatprep.subr.mxu0 0.0
    %2781 = vmatpush2.msra.mxu0 0.0
    %2782 = vmatprep.subr.mxu0 0.0
    %2783 = vmatpush2.msra.mxu0 0.0
    %2784 = vmatprep.subr.mxu0 0.0
    %2785 = vmatpush2.msra.mxu0 0.0
    %2786 = vmatprep.subr.mxu0 0.0
    %2787 = vmatpush2.msra.mxu0 0.0
    %2788 = vmatprep.subr.mxu0 0.0
    %2789 = vmatpush2.msra.mxu0 0.0
    %2790 = vmatprep.subr.mxu0 0.0
    %2791 = vmatpush2.msra.mxu0 0.0
    %2792 = vmatprep.subr.mxu0 0.0
    %2793 = vmatpush2.msra.mxu0 0.0
    %2794 = vmatprep.mubr.f32.mxu0 0.0
    %2795 = vmatmul.mubr.f32.gmra.mxu0 %v2719
    %v2796 = vpop.f32.mrf.mxu0
    %v2797 = vadd.f32 0.0, %v2796
    %v2798 = vpop.f32.mrf.mxu0
    %2799 = vmatprep.mubr.f32.mxu0 0.0
    %2800 = vmatmul.mubr.f32.gmra.mxu0 %v2722
    %v2801 = vpop.f32.mrf.mxu0
    %v2802 = vadd.f32 0.0, %v2801
    %v2803 = vpop.f32.mrf.mxu0
    %2804 = vmatprep.mubr.f32.mxu0 0.0
    %2805 = vmatmul.mubr.f32.gmra.mxu0 %v2725
    %v2806 = vpop.f32.mrf.mxu0
    %v2807 = vadd.f32 0.0, %v2806
    %v2808 = vpop.f32.mrf.mxu0
    %2809 = vmatprep.mubr.f32.mxu0 0.0
    %2810 = vmatmul.mubr.f32.gmra.mxu0 %v2728
    %v2811 = vpop.f32.mrf.mxu0
    %v2812 = vadd.f32 0.0, %v2811
    %v2813 = vpop.f32.mrf.mxu0
    %2814 = vdwg.mxu0
    %v2815 = vadd.f32 %v2537, %v2797
    %v2816 = vadd.f32 %v2538, %v2802
    %v2817 = vadd.f32 %v2539, %v2807
    %v2818 = vadd.f32 %v2540, %v2812
    %v2819 = vlaneseq
    %v2820 = vshrl.u32 %v2819, 7
    %v2821 = vsub.s32 0, %v2820
    %v2822 = vrot.slane %v1630, %v2821
    %v2823 = vadd.f32 %v2815, %v2822
    %v2824 = vadd.f32 %v2816, %v2822
    %v2825 = vadd.f32 %v2817, %v2822
    %v2826 = vadd.f32 %v2818, %v2822
    %v2827 = vadd.f32 %v2823, %v1616
    %v2828 = vadd.f32 %v2824, %v1617
    %v2829 = vadd.f32 %v2825, %v1618
    %v2830 = vadd.f32 %v2826, %v1619
    %v2831 = vld [vmem:[%s2 + $0x1a4] sm:$0x1]
    %v2832 = vld [vmem:[%s2 + $0x1a5] sm:$0x1]
    %v2833 = vsel %vm63, %v2827, 0.0
    %2834 = vadd.xlane.f32.xlu0 %v2833
    %v2835 = vpop.xlane.xlu0 %2834
    %v2836 = vsel %vm63, %v2828, 0.0
    %2837 = vadd.xlane.f32.xlu0 %v2836
    %v2838 = vpop.xlane.xlu0 %2837
    %v2839 = vsel %vm63, %v2829, 0.0
    %2840 = vadd.xlane.f32.xlu0 %v2839
    %v2841 = vpop.xlane.xlu0 %2840
    %v2842 = vsel %vm63, %v2830, 0.0
    %2843 = vadd.xlane.f32.xlu0 %v2842
    %v2844 = vpop.xlane.xlu0 %2843
    %v2845 = vmul.f32 %v2835, %v1268
    %v2846 = vmul.f32 %v2838, %v1268
    %v2847 = vmul.f32 %v2841, %v1268
    %v2848 = vmul.f32 %v2844, %v1268
    %v2849 = vsub.f32 %v2827, %v2845
    %v2850 = vsub.f32 %v2828, %v2846
    %v2851 = vsub.f32 %v2829, %v2847
    %v2852 = vsub.f32 %v2830, %v2848
    %v2853 = vmul.f32 %v2849, %v2849
    %v2854 = vmul.f32 %v2850, %v2850
    %v2855 = vmul.f32 %v2851, %v2851
    %v2856 = vmul.f32 %v2852, %v2852
    %v2857 = vsel %vm63, %v2853, 0.0
    %2858 = vadd.xlane.f32.xlu0 %v2857
    %v2859 = vpop.xlane.xlu0 %2858
    %v2860 = vsel %vm63, %v2854, 0.0
    %2861 = vadd.xlane.f32.xlu0 %v2860
    %v2862 = vpop.xlane.xlu0 %2861
    %v2863 = vsel %vm63, %v2855, 0.0
    %2864 = vadd.xlane.f32.xlu0 %v2863
    %v2865 = vpop.xlane.xlu0 %2864
    %v2866 = vsel %vm63, %v2856, 0.0
    %2867 = vadd.xlane.f32.xlu0 %v2866
    %v2868 = vpop.xlane.xlu0 %2867
    %v2869 = vmul.f32 %v2859, %v1268
    %v2870 = vmul.f32 %v2862, %v1268
    %v2871 = vmul.f32 %v2865, %v1268
    %v2872 = vmul.f32 %v2868, %v1268
    %v2873 = vadd.f32 %v2869, 1e-05
    %v2874 = vadd.f32 %v2870, 1e-05
    %v2875 = vadd.f32 %v2871, 1e-05
    %v2876 = vadd.f32 %v2872, 1e-05
    %v2877 = vrsqrt.pop %v2873
    %v2878 = vrsqrt.pop %v2874
    %v2879 = vrsqrt.pop %v2875
    %v2880 = vrsqrt.pop %v2876
    %v2881 = vmul.f32 %v2849, %v2877
    %v2882 = vmul.f32 %v2850, %v2878
    %v2883 = vmul.f32 %v2851, %v2879
    %v2884 = vmul.f32 %v2852, %v2880
    %v2885 = vlaneseq
    %v2886 = vshrl.u32 %v2885, 7
    %v2887 = vsub.s32 0, %v2886
    %v2888 = vrot.slane %v2831, %v2887
    %v2889 = vmul.f32 %v2881, %v2888
    %v2890 = vmul.f32 %v2882, %v2888
    %v2891 = vmul.f32 %v2883, %v2888
    %v2892 = vmul.f32 %v2884, %v2888
    %v2893 = vlaneseq
    %v2894 = vshrl.u32 %v2893, 7
    %v2895 = vsub.s32 0, %v2894
    %v2896 = vrot.slane %v2832, %v2895
    %v2897 = vadd.f32 %v2889, %v2896
    %v2898 = vadd.f32 %v2890, %v2896
    %v2899 = vadd.f32 %v2891, %v2896
    %v2900 = vadd.f32 %v2892, %v2896
    %v2901 = vld [vmem:[%s2 + $0x60] sm:$0xff]
    %v2902 = vld [vmem:[%s2 + $0x68] sm:$0xff]
    %v2903 = vld [vmem:[%s2 + $0x70] sm:$0xff]
    %v2904 = vld [vmem:[%s2 + $0x78] sm:$0xff]
    %v2905 = vld [vmem:[%s2 + $0x1a6] sm:$0x1]
    %v2906 = vlaneseq
    %v2907 = vshrl.u32 %v2906, 7
    %v2908 = vsub.s32 0, %v2907
    %v2909 = vrot.slane %v2905, %v2908
    %v2911 = vsel %vm63, %v2897, 0
    %v2914 = vsel %vm63, %v2898, 0
    %v2917 = vsel %vm63, %v2899, 0
    %v2920 = vsel %vm63, %v2900, 0
    %2922 = vmatprep.subr.mxu0 0.0
    %2923 = vmatpush1.msra.mxu0 0.0
    %2924 = vmatprep.subr.mxu0 0.0
    %2925 = vmatpush1.msra.mxu0 0.0
    %2926 = vmatprep.subr.mxu0 0.0
    %2927 = vmatpush1.msra.mxu0 0.0
    %2928 = vmatprep.subr.mxu0 0.0
    %2929 = vmatpush1.msra.mxu0 0.0
    %2930 = vmatprep.subr.mxu0 0.0
    %2931 = vmatpush1.msra.mxu0 0.0
    %2932 = vmatprep.subr.mxu0 0.0
    %2933 = vmatpush1.msra.mxu0 0.0
    %2934 = vmatprep.subr.mxu0 0.0
    %2935 = vmatpush1.msra.mxu0 0.0
    %2936 = vmatprep.subr.mxu0 0.0
    %2937 = vmatpush1.msra.mxu0 0.0
    %2938 = vmatprep.subr.mxu0 0.0
    %2939 = vmatpush1.msra.mxu0 0.0
    %2940 = vmatprep.subr.mxu0 0.0
    %2941 = vmatpush1.msra.mxu0 0.0
    %2942 = vmatprep.subr.mxu0 0.0
    %2943 = vmatpush1.msra.mxu0 0.0
    %2944 = vmatprep.subr.mxu0 0.0
    %2945 = vmatpush1.msra.mxu0 0.0
    %2946 = vmatprep.subr.mxu0 0.0
    %2947 = vmatpush1.msra.mxu0 %v2904
    %2948 = vmatprep.subr.mxu0 0.0
    %2949 = vmatpush1.msra.mxu0 %v2903
    %2950 = vmatprep.subr.mxu0 0.0
    %2951 = vmatpush1.msra.mxu0 %v2902
    %2952 = vmatprep.subr.mxu0 0.0
    %2953 = vmatpush1.msra.mxu0 %v2901
    %2954 = vmatprep.subr.mxu0 0.0
    %2955 = vmatpush2.msra.mxu0 0.0
    %2956 = vmatprep.subr.mxu0 0.0
    %2957 = vmatpush2.msra.mxu0 0.0
    %2958 = vmatprep.subr.mxu0 0.0
    %2959 = vmatpush2.msra.mxu0 0.0
    %2960 = vmatprep.subr.mxu0 0.0
    %2961 = vmatpush2.msra.mxu0 0.0
    %2962 = vmatprep.subr.mxu0 0.0
    %2963 = vmatpush2.msra.mxu0 0.0
    %2964 = vmatprep.subr.mxu0 0.0
    %2965 = vmatpush2.msra.mxu0 0.0
    %2966 = vmatprep.subr.mxu0 0.0
    %2967 = vmatpush2.msra.mxu0 0.0
    %2968 = vmatprep.subr.mxu0 0.0
    %2969 = vmatpush2.msra.mxu0 0.0
    %2970 = vmatprep.subr.mxu0 0.0
    %2971 = vmatpush2.msra.mxu0 0.0
    %2972 = vmatprep.subr.mxu0 0.0
    %2973 = vmatpush2.msra.mxu0 0.0
    %2974 = vmatprep.subr.mxu0 0.0
    %2975 = vmatpush2.msra.mxu0 0.0
    %2976 = vmatprep.subr.mxu0 0.0
    %2977 = vmatpush2.msra.mxu0 0.0
    %2978 = vmatprep.subr.mxu0 0.0
    %2979 = vmatpush2.msra.mxu0 0.0
    %2980 = vmatprep.subr.mxu0 0.0
    %2981 = vmatpush2.msra.mxu0 0.0
    %2982 = vmatprep.subr.mxu0 0.0
    %2983 = vmatpush2.msra.mxu0 0.0
    %2984 = vmatprep.subr.mxu0 0.0
    %2985 = vmatpush2.msra.mxu0 0.0
    %2986 = vmatprep.mubr.f32.mxu0 0.0
    %2987 = vmatmul.mubr.f32.gmra.mxu0 %v2911
    %v2988 = vpop.f32.mrf.mxu0
    %v2989 = vadd.f32 %v2909, %v2988
    %v2990 = vpop.f32.mrf.mxu0
    %2991 = vmatprep.mubr.f32.mxu0 0.0
    %2992 = vmatmul.mubr.f32.gmra.mxu0 %v2914
    %v2993 = vpop.f32.mrf.mxu0
    %v2994 = vadd.f32 %v2909, %v2993
    %v2995 = vpop.f32.mrf.mxu0
    %2996 = vmatprep.mubr.f32.mxu0 0.0
    %2997 = vmatmul.mubr.f32.gmra.mxu0 %v2917
    %v2998 = vpop.f32.mrf.mxu0
    %v2999 = vadd.f32 %v2909, %v2998
    %v3000 = vpop.f32.mrf.mxu0
    %3001 = vmatprep.mubr.f32.mxu0 0.0
    %3002 = vmatmul.mubr.f32.gmra.mxu0 %v2920
    %v3003 = vpop.f32.mrf.mxu0
    %v3004 = vadd.f32 %v2909, %v3003
    %v3005 = vpop.f32.mrf.mxu0
    %3006 = vdwg.mxu0
    %v3007 = vmax.f32 %v2989, 0.0
    %v3008 = vmax.f32 %v2994, 0.0
    %v3009 = vmax.f32 %v2999, 0.0
    %v3010 = vmax.f32 %v3004, 0.0
    %v3011 = vld [vmem:[%s2 + $0x80] sm:$0xff]
    %v3012 = vld [vmem:[%s2 + $0x88] sm:$0xff]
    %v3013 = vld [vmem:[%s2 + $0x90] sm:$0xff]
    %v3014 = vld [vmem:[%s2 + $0x98] sm:$0xff]
    %v3015 = vld [vmem:[%s2 + $0xa0] sm:$0xff]
    %v3016 = vld [vmem:[%s2 + $0xa8] sm:$0xff]
    %v3017 = vld [vmem:[%s2 + $0xb0] sm:$0xff]
    %v3018 = vld [vmem:[%s2 + $0xb8] sm:$0xff]
    %v3019 = vld [vmem:[%s2 + $0x1a7] sm:$0x1]
    %v3020 = vlaneseq
    %v3021 = vshrl.u32 %v3020, 7
    %v3022 = vsub.s32 0, %v3021
    %v3023 = vrot.slane %v3019, %v3022
    %v3025 = vsel %vm1448, %v3007, 0
    %v3028 = vsel %vm1448, %v3008, 0
    %v3031 = vsel %vm1448, %v3009, 0
    %v3034 = vsel %vm1448, %v3010, 0
    %3036 = vmatprep.subr.mxu0 0.0
    %3037 = vmatpush1.msra.mxu0 0.0
    %3038 = vmatprep.subr.mxu0 0.0
    %3039 = vmatpush1.msra.mxu0 0.0
    %3040 = vmatprep.subr.mxu0 0.0
    %3041 = vmatpush1.msra.mxu0 0.0
    %3042 = vmatprep.subr.mxu0 0.0
    %3043 = vmatpush1.msra.mxu0 0.0
    %3044 = vmatprep.subr.mxu0 0.0
    %3045 = vmatpush1.msra.mxu0 0.0
    %3046 = vmatprep.subr.mxu0 0.0
    %3047 = vmatpush1.msra.mxu0 0.0
    %3048 = vmatprep.subr.mxu0 0.0
    %3049 = vmatpush1.msra.mxu0 0.0
    %3050 = vmatprep.subr.mxu0 0.0
    %3051 = vmatpush1.msra.mxu0 0.0
    %3052 = vmatprep.subr.mxu0 0.0
    %3053 = vmatpush1.msra.mxu0 %v3018
    %3054 = vmatprep.subr.mxu0 0.0
    %3055 = vmatpush1.msra.mxu0 %v3017
    %3056 = vmatprep.subr.mxu0 0.0
    %3057 = vmatpush1.msra.mxu0 %v3016
    %3058 = vmatprep.subr.mxu0 0.0
    %3059 = vmatpush1.msra.mxu0 %v3015
    %3060 = vmatprep.subr.mxu0 0.0
    %3061 = vmatpush1.msra.mxu0 %v3014
    %3062 = vmatprep.subr.mxu0 0.0
    %3063 = vmatpush1.msra.mxu0 %v3013
    %3064 = vmatprep.subr.mxu0 0.0
    %3065 = vmatpush1.msra.mxu0 %v3012
    %3066 = vmatprep.subr.mxu0 0.0
    %3067 = vmatpush1.msra.mxu0 %v3011
    %3068 = vmatprep.subr.mxu0 0.0
    %3069 = vmatpush2.msra.mxu0 0.0
    %3070 = vmatprep.subr.mxu0 0.0
    %3071 = vmatpush2.msra.mxu0 0.0
    %3072 = vmatprep.subr.mxu0 0.0
    %3073 = vmatpush2.msra.mxu0 0.0
    %3074 = vmatprep.subr.mxu0 0.0
    %3075 = vmatpush2.msra.mxu0 0.0
    %3076 = vmatprep.subr.mxu0 0.0
    %3077 = vmatpush2.msra.mxu0 0.0
    %3078 = vmatprep.subr.mxu0 0.0
    %3079 = vmatpush2.msra.mxu0 0.0
    %3080 = vmatprep.subr.mxu0 0.0
    %3081 = vmatpush2.msra.mxu0 0.0
    %3082 = vmatprep.subr.mxu0 0.0
    %3083 = vmatpush2.msra.mxu0 0.0
    %3084 = vmatprep.subr.mxu0 0.0
    %3085 = vmatpush2.msra.mxu0 0.0
    %3086 = vmatprep.subr.mxu0 0.0
    %3087 = vmatpush2.msra.mxu0 0.0
    %3088 = vmatprep.subr.mxu0 0.0
    %3089 = vmatpush2.msra.mxu0 0.0
    %3090 = vmatprep.subr.mxu0 0.0
    %3091 = vmatpush2.msra.mxu0 0.0
    %3092 = vmatprep.subr.mxu0 0.0
    %3093 = vmatpush2.msra.mxu0 0.0
    %3094 = vmatprep.subr.mxu0 0.0
    %3095 = vmatpush2.msra.mxu0 0.0
    %3096 = vmatprep.subr.mxu0 0.0
    %3097 = vmatpush2.msra.mxu0 0.0
    %3098 = vmatprep.subr.mxu0 0.0
    %3099 = vmatpush2.msra.mxu0 0.0
    %3100 = vmatprep.mubr.f32.mxu0 0.0
    %3101 = vmatmul.mubr.f32.gmra.mxu0 %v3025
    %v3102 = vpop.f32.mrf.mxu0
    %v3103 = vadd.f32 %v3023, %v3102
    %v3104 = vpop.f32.mrf.mxu0
    %3105 = vmatprep.mubr.f32.mxu0 0.0
    %3106 = vmatmul.mubr.f32.gmra.mxu0 %v3028
    %v3107 = vpop.f32.mrf.mxu0
    %v3108 = vadd.f32 %v3023, %v3107
    %v3109 = vpop.f32.mrf.mxu0
    %3110 = vmatprep.mubr.f32.mxu0 0.0
    %3111 = vmatmul.mubr.f32.gmra.mxu0 %v3031
    %v3112 = vpop.f32.mrf.mxu0
    %v3113 = vadd.f32 %v3023, %v3112
    %v3114 = vpop.f32.mrf.mxu0
    %3115 = vmatprep.mubr.f32.mxu0 0.0
    %3116 = vmatmul.mubr.f32.gmra.mxu0 %v3034
    %v3117 = vpop.f32.mrf.mxu0
    %v3118 = vadd.f32 %v3023, %v3117
    %v3119 = vpop.f32.mrf.mxu0
    %3120 = vdwg.mxu0
    %v3121 = vadd.f32 %v3103, %v2897
    %v3122 = vadd.f32 %v3108, %v2898
    %v3123 = vadd.f32 %v3113, %v2899
    %v3124 = vadd.f32 %v3118, %v2900
    %v3125 = vld [vmem:[%s2 + $0x1a8] sm:$0x1]
    %v3126 = vld [vmem:[%s2 + $0x1a9] sm:$0x1]
    %v3127 = vsel %vm63, %v3121, 0.0
    %3128 = vadd.xlane.f32.xlu0 %v3127
    %v3129 = vpop.xlane.xlu0 %3128
    %v3130 = vsel %vm63, %v3122, 0.0
    %3131 = vadd.xlane.f32.xlu0 %v3130
    %v3132 = vpop.xlane.xlu0 %3131
    %v3133 = vsel %vm63, %v3123, 0.0
    %3134 = vadd.xlane.f32.xlu0 %v3133
    %v3135 = vpop.xlane.xlu0 %3134
    %v3136 = vsel %vm63, %v3124, 0.0
    %3137 = vadd.xlane.f32.xlu0 %v3136
    %v3138 = vpop.xlane.xlu0 %3137
    %v3139 = vmul.f32 %v3129, %v1268
    %v3140 = vmul.f32 %v3132, %v1268
    %v3141 = vmul.f32 %v3135, %v1268
    %v3142 = vmul.f32 %v3138, %v1268
    %v3143 = vsub.f32 %v3121, %v3139
    %v3144 = vsub.f32 %v3122, %v3140
    %v3145 = vsub.f32 %v3123, %v3141
    %v3146 = vsub.f32 %v3124, %v3142
    %v3147 = vmul.f32 %v3143, %v3143
    %v3148 = vmul.f32 %v3144, %v3144
    %v3149 = vmul.f32 %v3145, %v3145
    %v3150 = vmul.f32 %v3146, %v3146
    %v3151 = vsel %vm63, %v3147, 0.0
    %3152 = vadd.xlane.f32.xlu0 %v3151
    %v3153 = vpop.xlane.xlu0 %3152
    %v3154 = vsel %vm63, %v3148, 0.0
    %3155 = vadd.xlane.f32.xlu0 %v3154
    %v3156 = vpop.xlane.xlu0 %3155
    %v3157 = vsel %vm63, %v3149, 0.0
    %3158 = vadd.xlane.f32.xlu0 %v3157
    %v3159 = vpop.xlane.xlu0 %3158
    %v3160 = vsel %vm63, %v3150, 0.0
    %3161 = vadd.xlane.f32.xlu0 %v3160
    %v3162 = vpop.xlane.xlu0 %3161
    %v3163 = vmul.f32 %v3153, %v1268
    %v3164 = vmul.f32 %v3156, %v1268
    %v3165 = vmul.f32 %v3159, %v1268
    %v3166 = vmul.f32 %v3162, %v1268
    %v3167 = vadd.f32 %v3163, 1e-05
    %v3168 = vadd.f32 %v3164, 1e-05
    %v3169 = vadd.f32 %v3165, 1e-05
    %v3170 = vadd.f32 %v3166, 1e-05
    %v3171 = vrsqrt.pop %v3167
    %v3172 = vrsqrt.pop %v3168
    %v3173 = vrsqrt.pop %v3169
    %v3174 = vrsqrt.pop %v3170
    %v3175 = vmul.f32 %v3143, %v3171
    %v3176 = vmul.f32 %v3144, %v3172
    %v3177 = vmul.f32 %v3145, %v3173
    %v3178 = vmul.f32 %v3146, %v3174
    %v3179 = vlaneseq
    %v3180 = vshrl.u32 %v3179, 7
    %v3181 = vsub.s32 0, %v3180
    %v3182 = vrot.slane %v3125, %v3181
    %v3183 = vmul.f32 %v3175, %v3182
    %v3184 = vmul.f32 %v3176, %v3182
    %v3185 = vmul.f32 %v3177, %v3182
    %v3186 = vmul.f32 %v3178, %v3182
    %v3187 = vlaneseq
    %v3188 = vshrl.u32 %v3187, 7
    %v3189 = vsub.s32 0, %v3188
    %v3190 = vrot.slane %v3126, %v3189
    %v3191 = vadd.f32 %v3183, %v3190
    %v3192 = vadd.f32 %v3184, %v3190
    %v3193 = vadd.f32 %v3185, %v3190
    %v3194 = vadd.f32 %v3186, %v3190
    %v3195 = vld [vmem:[%s1 + $0x80] sm:$0xff]
    %v3196 = vld [vmem:[%s1 + $0x88] sm:$0xff]
    %v3197 = vld [vmem:[%s1 + $0x90] sm:$0xff]
    %v3198 = vld [vmem:[%s1 + $0x98] sm:$0xff]
    %v3199 = vld [vmem:[%s1 + $0xa0] sm:$0xff]
    %v3200 = vld [vmem:[%s1 + $0xa8] sm:$0xff]
    %v3201 = vld [vmem:[%s1 + $0xb0] sm:$0xff]
    %v3202 = vld [vmem:[%s1 + $0xb8] sm:$0xff]
    %s3203 = scalar_lea.vmem %s1, 194
    %v3204 = vld [vmem:[%s3203] ss:$8 sm:$0x3]
    %v3205 = vld [vmem:[%s2 + $0x1aa] sm:$0x1]
    %v3207 = vlaneseq
    %v3208 = vshrl.u32 %v3207, 7
    %v3209 = vsub.s32 0, %v3208
    %v3210 = vrot.slane %v3204, %v3209
    %v3211 = vlaneseq
    %v3212 = vshrl.u32 %v3211, 7
    %v3213 = vsub.s32 1, %v3212
    %v3214 = vrot.slane %v3204, %v3213
    %v3218 = vsel %vm63, %v3191, 0
    %v3221 = vsel %vm63, %v3192, 0
    %v3224 = vsel %vm63, %v3193, 0
    %v3227 = vsel %vm63, %v3194, 0
    %3229 = vmatprep.subr.mxu0 0.0
    %3230 = vmatpush1.msra.mxu0 0.0
    %3231 = vmatprep.subr.mxu0 0.0
    %3232 = vmatpush1.msra.mxu0 0.0
    %3233 = vmatprep.subr.mxu0 0.0
    %3234 = vmatpush1.msra.mxu0 0.0
    %3235 = vmatprep.subr.mxu0 0.0
    %3236 = vmatpush1.msra.mxu0 0.0
    %3237 = vmatprep.subr.mxu0 0.0
    %3238 = vmatpush1.msra.mxu0 0.0
    %3239 = vmatprep.subr.mxu0 0.0
    %3240 = vmatpush1.msra.mxu0 0.0
    %3241 = vmatprep.subr.mxu0 0.0
    %3242 = vmatpush1.msra.mxu0 0.0
    %3243 = vmatprep.subr.mxu0 0.0
    %3244 = vmatpush1.msra.mxu0 0.0
    %3245 = vmatprep.subr.mxu0 0.0
    %3246 = vmatpush1.msra.mxu0 0.0
    %3247 = vmatprep.subr.mxu0 0.0
    %3248 = vmatpush1.msra.mxu0 0.0
    %3249 = vmatprep.subr.mxu0 0.0
    %3250 = vmatpush1.msra.mxu0 0.0
    %3251 = vmatprep.subr.mxu0 0.0
    %3252 = vmatpush1.msra.mxu0 0.0
    %3253 = vmatprep.subr.mxu0 %v3202
    %3254 = vmatpush1.msra.mxu0 %v3201
    %3255 = vmatprep.subr.mxu0 %v3200
    %3256 = vmatpush1.msra.mxu0 %v3199
    %3257 = vmatprep.subr.mxu0 %v3198
    %3258 = vmatpush1.msra.mxu0 %v3197
    %3259 = vmatprep.subr.mxu0 %v3196
    %3260 = vmatpush1.msra.mxu0 %v3195
    %3261 = vmatprep.subr.mxu0 0.0
    %3262 = vmatpush2.msra.mxu0 0.0
    %3263 = vmatprep.subr.mxu0 0.0
    %3264 = vmatpush2.msra.mxu0 0.0
    %3265 = vmatprep.subr.mxu0 0.0
    %3266 = vmatpush2.msra.mxu0 0.0
    %3267 = vmatprep.subr.mxu0 0.0
    %3268 = vmatpush2.msra.mxu0 0.0
    %3269 = vmatprep.subr.mxu0 0.0
    %3270 = vmatpush2.msra.mxu0 0.0
    %3271 = vmatprep.subr.mxu0 0.0
    %3272 = vmatpush2.msra.mxu0 0.0
    %3273 = vmatprep.subr.mxu0 0.0
    %3274 = vmatpush2.msra.mxu0 0.0
    %3275 = vmatprep.subr.mxu0 0.0
    %3276 = vmatpush2.msra.mxu0 0.0
    %3277 = vmatprep.subr.mxu0 0.0
    %3278 = vmatpush2.msra.mxu0 0.0
    %3279 = vmatprep.subr.mxu0 0.0
    %3280 = vmatpush2.msra.mxu0 0.0
    %3281 = vmatprep.subr.mxu0 0.0
    %3282 = vmatpush2.msra.mxu0 0.0
    %3283 = vmatprep.subr.mxu0 0.0
    %3284 = vmatpush2.msra.mxu0 0.0
    %3285 = vmatprep.subr.mxu0 0.0
    %3286 = vmatpush2.msra.mxu0 0.0
    %3287 = vmatprep.subr.mxu0 0.0
    %3288 = vmatpush2.msra.mxu0 0.0
    %3289 = vmatprep.subr.mxu0 0.0
    %3290 = vmatpush2.msra.mxu0 0.0
    %3291 = vmatprep.subr.mxu0 0.0
    %3292 = vmatpush2.msra.mxu0 0.0
    %3293 = vmatprep.mubr.f32.mxu0 0.0
    %3294 = vmatmul.mubr.f32.gmra.mxu0 %v3218
    %v3295 = vpop.f32.mrf.mxu0
    %v3296 = vadd.f32 %v3210, %v3295
    %v3297 = vpop.f32.mrf.mxu0
    %v3298 = vadd.f32 %v3214, %v3297
    %3299 = vmatprep.mubr.f32.mxu0 0.0
    %3300 = vmatmul.mubr.f32.gmra.mxu0 %v3221
    %v3301 = vpop.f32.mrf.mxu0
    %v3302 = vadd.f32 %v3210, %v3301
    %v3303 = vpop.f32.mrf.mxu0
    %v3304 = vadd.f32 %v3214, %v3303
    %3305 = vmatprep.mubr.f32.mxu0 0.0
    %3306 = vmatmul.mubr.f32.gmra.mxu0 %v3224
    %v3307 = vpop.f32.mrf.mxu0
    %v3308 = vadd.f32 %v3210, %v3307
    %v3309 = vpop.f32.mrf.mxu0
    %v3310 = vadd.f32 %v3214, %v3309
    %3311 = vmatprep.mubr.f32.mxu0 0.0
    %3312 = vmatmul.mubr.f32.gmra.mxu0 %v3227
    %v3313 = vpop.f32.mrf.mxu0
    %v3314 = vadd.f32 %v3210, %v3313
    %v3315 = vpop.f32.mrf.mxu0
    %v3316 = vadd.f32 %v3214, %v3315
    %3317 = vdwg.mxu0
    %3322 = vrot.lane.b32.xlu0 %v3296, 96
    %v3323 = vpop.permute.xlu0 %3322
    %3324 = vrot.lane.b32.xlu0 %v3302, 96
    %v3325 = vpop.permute.xlu0 %3324
    %3326 = vrot.lane.b32.xlu0 %v3308, 96
    %v3327 = vpop.permute.xlu0 %3326
    %3328 = vrot.lane.b32.xlu0 %v3314, 96
    %v3329 = vpop.permute.xlu0 %3328
    %v3330 = vsel %vm177, %v3296, 0
    %v3332 = vsel %vm177, %v3302, 0
    %v3334 = vsel %vm177, %v3308, 0
    %v3336 = vsel %vm177, %v3314, 0
    %v3338 = vsel %vm177, %v3323, 0
    %v3340 = vsel %vm177, %v3325, 0
    %v3342 = vsel %vm177, %v3327, 0
    %v3344 = vsel %vm177, %v3329, 0
    %3346 = vmatprep.subr.mxu0 0.0
    %3347 = vmatpush1.xpose.msra.mxu0 0.0
    %3348 = vmatprep.subr.mxu0 0.0
    %3349 = vmatpush1.xpose.msra.mxu0 0.0
    %3350 = vmatprep.subr.mxu0 0.0
    %3351 = vmatpush1.xpose.msra.mxu0 0.0
    %3352 = vmatprep.subr.mxu0 0.0
    %3353 = vmatpush1.xpose.msra.mxu0 0.0
    %3354 = vmatprep.subr.mxu0 0.0
    %3355 = vmatpush1.xpose.msra.mxu0 0.0
    %3356 = vmatprep.subr.mxu0 0.0
    %3357 = vmatpush1.xpose.msra.mxu0 0.0
    %3358 = vmatprep.subr.mxu0 0.0
    %3359 = vmatpush1.xpose.msra.mxu0 0.0
    %3360 = vmatprep.subr.mxu0 0.0
    %3361 = vmatpush1.xpose.msra.mxu0 0.0
    %3362 = vmatprep.subr.mxu0 0.0
    %3363 = vmatpush1.xpose.msra.mxu0 0.0
    %3364 = vmatprep.subr.mxu0 0.0
    %3365 = vmatpush1.xpose.msra.mxu0 0.0
    %3366 = vmatprep.subr.mxu0 0.0
    %3367 = vmatpush1.xpose.msra.mxu0 0.0
    %3368 = vmatprep.subr.mxu0 0.0
    %3369 = vmatpush1.xpose.msra.mxu0 0.0
    %3370 = vmatprep.subr.mxu0 0.0
    %3371 = vmatpush1.xpose.msra.mxu0 %v3344
    %3372 = vmatprep.subr.mxu0 0.0
    %3373 = vmatpush1.xpose.msra.mxu0 %v3342
    %3374 = vmatprep.subr.mxu0 0.0
    %3375 = vmatpush1.xpose.msra.mxu0 %v3340
    %3376 = vmatprep.subr.mxu0 0.0
    %3377 = vmatpush1.xpose.msra.mxu0 %v3338
    %3378 = vmatprep.subr.mxu0 0.0
    %3379 = vmatpush2.xpose.msra.mxu0 0.0
    %3380 = vmatprep.subr.mxu0 0.0
    %3381 = vmatpush2.xpose.msra.mxu0 0.0
    %3382 = vmatprep.subr.mxu0 0.0
    %3383 = vmatpush2.xpose.msra.mxu0 0.0
    %3384 = vmatprep.subr.mxu0 0.0
    %3385 = vmatpush2.xpose.msra.mxu0 0.0
    %3386 = vmatprep.subr.mxu0 0.0
    %3387 = vmatpush2.xpose.msra.mxu0 0.0
    %3388 = vmatprep.subr.mxu0 0.0
    %3389 = vmatpush2.xpose.msra.mxu0 0.0
    %3390 = vmatprep.subr.mxu0 0.0
    %3391 = vmatpush2.xpose.msra.mxu0 0.0
    %3392 = vmatprep.subr.mxu0 0.0
    %3393 = vmatpush2.xpose.msra.mxu0 0.0
    %3394 = vmatprep.subr.mxu0 0.0
    %3395 = vmatpush2.xpose.msra.mxu0 0.0
    %3396 = vmatprep.subr.mxu0 0.0
    %3397 = vmatpush2.xpose.msra.mxu0 0.0
    %3398 = vmatprep.subr.mxu0 0.0
    %3399 = vmatpush2.xpose.msra.mxu0 0.0
    %3400 = vmatprep.subr.mxu0 0.0
    %3401 = vmatpush2.xpose.msra.mxu0 0.0
    %3402 = vmatprep.subr.mxu0 0.0
    %3403 = vmatpush2.xpose.msra.mxu0 0.0
    %3404 = vmatprep.subr.mxu0 0.0
    %3405 = vmatpush2.xpose.msra.mxu0 0.0
    %3406 = vmatprep.subr.mxu0 0.0
    %3407 = vmatpush2.xpose.msra.mxu0 0.0
    %3408 = vmatprep.subr.mxu0 0.0
    %3409 = vmatpush2.xpose.msra.mxu0 0.0
    %3410 = vmatprep.mubr.f32.mxu0 0.0
    %3411 = vmatmul.mubr.f32.gmra.mxu0 %v3330
    %v3412 = vpop.f32.mrf.mxu0
    %v3413 = vadd.f32 %v23, %v3412
    %v3414 = vpop.f32.mrf.mxu0
    %3415 = vmatprep.mubr.f32.mxu0 0.0
    %3416 = vmatmul.mubr.f32.gmra.mxu0 %v3332
    %v3417 = vpop.f32.mrf.mxu0
    %v3418 = vadd.f32 %v24, %v3417
    %v3419 = vpop.f32.mrf.mxu0
    %3420 = vmatprep.mubr.f32.mxu0 0.0
    %3421 = vmatmul.mubr.f32.gmra.mxu0 %v3334
    %v3422 = vpop.f32.mrf.mxu0
    %v3423 = vadd.f32 %v25, %v3422
    %v3424 = vpop.f32.mrf.mxu0
    %3425 = vmatprep.mubr.f32.mxu0 0.0
    %3426 = vmatmul.mubr.f32.gmra.mxu0 %v3336
    %v3427 = vpop.f32.mrf.mxu0
    %v3428 = vadd.f32 %v26, %v3427
    %v3429 = vpop.f32.mrf.mxu0
    %3430 = vdwg.mxu0
    %v3431 = vsel %vm63, %v3413, -inf
    %3432 = vmax.xlane.f32.xlu0 %v3431
    %v3433 = vpop.xlane.xlu0 %3432
    %v3434 = vsel %vm63, %v3418, -inf
    %3435 = vmax.xlane.f32.xlu0 %v3434
    %v3436 = vpop.xlane.xlu0 %3435
    %v3437 = vsel %vm63, %v3423, -inf
    %3438 = vmax.xlane.f32.xlu0 %v3437
    %v3439 = vpop.xlane.xlu0 %3438
    %v3440 = vsel %vm63, %v3428, -inf
    %3441 = vmax.xlane.f32.xlu0 %v3440
    %v3442 = vpop.xlane.xlu0 %3441
    %v3443 = vsub.f32 %v3413, %v3433
    %v3444 = vsub.f32 %v3418, %v3436
    %v3445 = vsub.f32 %v3423, %v3439
    %v3446 = vsub.f32 %v3428, %v3442
    %v3447 = vmul.f32 %v3443, 1.442695
    %v3448 = vpow.pop %v3447
    %v3449 = vmul.f32 %v3444, 1.442695
    %v3450 = vpow.pop %v3449
    %v3451 = vmul.f32 %v3445, 1.442695
    %v3452 = vpow.pop %v3451
    %v3453 = vmul.f32 %v3446, 1.442695
    %v3454 = vpow.pop %v3453
    %v3455 = vsel %vm63, %v3448, 0.0
    %3456 = vadd.xlane.f32.xlu0 %v3455
    %v3457 = vpop.xlane.xlu0 %3456
    %v3458 = vsel %vm63, %v3450, 0.0
    %3459 = vadd.xlane.f32.xlu0 %v3458
    %v3460 = vpop.xlane.xlu0 %3459
    %v3461 = vsel %vm63, %v3452, 0.0
    %3462 = vadd.xlane.f32.xlu0 %v3461
    %v3463 = vpop.xlane.xlu0 %3462
    %v3464 = vsel %vm63, %v3454, 0.0
    %3465 = vadd.xlane.f32.xlu0 %v3464
    %v3466 = vpop.xlane.xlu0 %3465
    %v3467 = vrcp.pop %v3457
    %v3468 = vrcp.pop %v3460
    %v3469 = vrcp.pop %v3463
    %v3470 = vrcp.pop %v3466
    %v3471 = vmul.f32 %v3448, %v3467
    %v3472 = vmul.f32 %v3450, %v3468
    %v3473 = vmul.f32 %v3452, %v3469
    %v3474 = vmul.f32 %v3454, %v3470
    %3475 = vrot.lane.b32.xlu0 %v3296, 120
    %v3476 = vpop.permute.xlu0 %3475
    %3477 = vrot.lane.b32.xlu0 %v3302, 120
    %v3478 = vpop.permute.xlu0 %3477
    %3479 = vrot.lane.b32.xlu0 %v3308, 120
    %v3480 = vpop.permute.xlu0 %3479
    %3481 = vrot.lane.b32.xlu0 %v3314, 120
    %v3482 = vpop.permute.xlu0 %3481
    %3483 = vrot.lane.b32.xlu0 %v3296, 88
    %v3484 = vpop.permute.xlu0 %3483
    %3485 = vrot.lane.b32.xlu0 %v3302, 88
    %v3486 = vpop.permute.xlu0 %3485
    %3487 = vrot.lane.b32.xlu0 %v3308, 88
    %v3488 = vpop.permute.xlu0 %3487
    %3489 = vrot.lane.b32.xlu0 %v3314, 88
    %v3490 = vpop.permute.xlu0 %3489
    %v3491 = vsel %vm177, %v3476, 0
    %v3493 = vsel %vm177, %v3478, 0
    %v3495 = vsel %vm177, %v3480, 0
    %v3497 = vsel %vm177, %v3482, 0
    %v3499 = vsel %vm177, %v3484, 0
    %v3501 = vsel %vm177, %v3486, 0
    %v3503 = vsel %vm177, %v3488, 0
    %v3505 = vsel %vm177, %v3490, 0
    %3507 = vmatprep.subr.mxu0 0.0
    %3508 = vmatpush1.xpose.msra.mxu0 0.0
    %3509 = vmatprep.subr.mxu0 0.0
    %3510 = vmatpush1.xpose.msra.mxu0 0.0
    %3511 = vmatprep.subr.mxu0 0.0
    %3512 = vmatpush1.xpose.msra.mxu0 0.0
    %3513 = vmatprep.subr.mxu0 0.0
    %3514 = vmatpush1.xpose.msra.mxu0 0.0
    %3515 = vmatprep.subr.mxu0 0.0
    %3516 = vmatpush1.xpose.msra.mxu0 0.0
    %3517 = vmatprep.subr.mxu0 0.0
    %3518 = vmatpush1.xpose.msra.mxu0 0.0
    %3519 = vmatprep.subr.mxu0 0.0
    %3520 = vmatpush1.xpose.msra.mxu0 0.0
    %3521 = vmatprep.subr.mxu0 0.0
    %3522 = vmatpush1.xpose.msra.mxu0 0.0
    %3523 = vmatprep.subr.mxu0 0.0
    %3524 = vmatpush1.xpose.msra.mxu0 0.0
    %3525 = vmatprep.subr.mxu0 0.0
    %3526 = vmatpush1.xpose.msra.mxu0 0.0
    %3527 = vmatprep.subr.mxu0 0.0
    %3528 = vmatpush1.xpose.msra.mxu0 0.0
    %3529 = vmatprep.subr.mxu0 0.0
    %3530 = vmatpush1.xpose.msra.mxu0 0.0
    %3531 = vmatprep.subr.mxu0 0.0
    %3532 = vmatpush1.xpose.msra.mxu0 %v3505
    %3533 = vmatprep.subr.mxu0 0.0
    %3534 = vmatpush1.xpose.msra.mxu0 %v3503
    %3535 = vmatprep.subr.mxu0 0.0
    %3536 = vmatpush1.xpose.msra.mxu0 %v3501
    %3537 = vmatprep.subr.mxu0 0.0
    %3538 = vmatpush1.xpose.msra.mxu0 %v3499
    %3539 = vmatprep.subr.mxu0 0.0
    %3540 = vmatpush2.xpose.msra.mxu0 0.0
    %3541 = vmatprep.subr.mxu0 0.0
    %3542 = vmatpush2.xpose.msra.mxu0 0.0
    %3543 = vmatprep.subr.mxu0 0.0
    %3544 = vmatpush2.xpose.msra.mxu0 0.0
    %3545 = vmatprep.subr.mxu0 0.0
    %3546 = vmatpush2.xpose.msra.mxu0 0.0
    %3547 = vmatprep.subr.mxu0 0.0
    %3548 = vmatpush2.xpose.msra.mxu0 0.0
    %3549 = vmatprep.subr.mxu0 0.0
    %3550 = vmatpush2.xpose.msra.mxu0 0.0
    %3551 = vmatprep.subr.mxu0 0.0
    %3552 = vmatpush2.xpose.msra.mxu0 0.0
    %3553 = vmatprep.subr.mxu0 0.0
    %3554 = vmatpush2.xpose.msra.mxu0 0.0
    %3555 = vmatprep.subr.mxu0 0.0
    %3556 = vmatpush2.xpose.msra.mxu0 0.0
    %3557 = vmatprep.subr.mxu0 0.0
    %3558 = vmatpush2.xpose.msra.mxu0 0.0
    %3559 = vmatprep.subr.mxu0 0.0
    %3560 = vmatpush2.xpose.msra.mxu0 0.0
    %3561 = vmatprep.subr.mxu0 0.0
    %3562 = vmatpush2.xpose.msra.mxu0 0.0
    %3563 = vmatprep.subr.mxu0 0.0
    %3564 = vmatpush2.xpose.msra.mxu0 0.0
    %3565 = vmatprep.subr.mxu0 0.0
    %3566 = vmatpush2.xpose.msra.mxu0 0.0
    %3567 = vmatprep.subr.mxu0 0.0
    %3568 = vmatpush2.xpose.msra.mxu0 0.0
    %3569 = vmatprep.subr.mxu0 0.0
    %3570 = vmatpush2.xpose.msra.mxu0 0.0
    %3571 = vmatprep.mubr.f32.mxu0 0.0
    %3572 = vmatmul.mubr.f32.gmra.mxu0 %v3491
    %v3573 = vpop.f32.mrf.mxu0
    %v3574 = vadd.f32 %v23, %v3573
    %v3575 = vpop.f32.mrf.mxu0
    %3576 = vmatprep.mubr.f32.mxu0 0.0
    %3577 = vmatmul.mubr.f32.gmra.mxu0 %v3493
    %v3578 = vpop.f32.mrf.mxu0
    %v3579 = vadd.f32 %v24, %v3578
    %v3580 = vpop.f32.mrf.mxu0
    %3581 = vmatprep.mubr.f32.mxu0 0.0
    %3582 = vmatmul.mubr.f32.gmra.mxu0 %v3495
    %v3583 = vpop.f32.mrf.mxu0
    %v3584 = vadd.f32 %v25, %v3583
    %v3585 = vpop.f32.mrf.mxu0
    %3586 = vmatprep.mubr.f32.mxu0 0.0
    %3587 = vmatmul.mubr.f32.gmra.mxu0 %v3497
    %v3588 = vpop.f32.mrf.mxu0
    %v3589 = vadd.f32 %v26, %v3588
    %v3590 = vpop.f32.mrf.mxu0
    %3591 = vdwg.mxu0
    %v3592 = vsel %vm63, %v3574, -inf
    %3593 = vmax.xlane.f32.xlu0 %v3592
    %v3594 = vpop.xlane.xlu0 %3593
    %v3595 = vsel %vm63, %v3579, -inf
    %3596 = vmax.xlane.f32.xlu0 %v3595
    %v3597 = vpop.xlane.xlu0 %3596
    %v3598 = vsel %vm63, %v3584, -inf
    %3599 = vmax.xlane.f32.xlu0 %v3598
    %v3600 = vpop.xlane.xlu0 %3599
    %v3601 = vsel %vm63, %v3589, -inf
    %3602 = vmax.xlane.f32.xlu0 %v3601
    %v3603 = vpop.xlane.xlu0 %3602
    %v3604 = vsub.f32 %v3574, %v3594
    %v3605 = vsub.f32 %v3579, %v3597
    %v3606 = vsub.f32 %v3584, %v3600
    %v3607 = vsub.f32 %v3589, %v3603
    %v3608 = vmul.f32 %v3604, 1.442695
    %v3609 = vpow.pop %v3608
    %v3610 = vmul.f32 %v3605, 1.442695
    %v3611 = vpow.pop %v3610
    %v3612 = vmul.f32 %v3606, 1.442695
    %v3613 = vpow.pop %v3612
    %v3614 = vmul.f32 %v3607, 1.442695
    %v3615 = vpow.pop %v3614
    %v3616 = vsel %vm63, %v3609, 0.0
    %3617 = vadd.xlane.f32.xlu0 %v3616
    %v3618 = vpop.xlane.xlu0 %3617
    %v3619 = vsel %vm63, %v3611, 0.0
    %3620 = vadd.xlane.f32.xlu0 %v3619
    %v3621 = vpop.xlane.xlu0 %3620
    %v3622 = vsel %vm63, %v3613, 0.0
    %3623 = vadd.xlane.f32.xlu0 %v3622
    %v3624 = vpop.xlane.xlu0 %3623
    %v3625 = vsel %vm63, %v3615, 0.0
    %3626 = vadd.xlane.f32.xlu0 %v3625
    %v3627 = vpop.xlane.xlu0 %3626
    %v3628 = vrcp.pop %v3618
    %v3629 = vrcp.pop %v3621
    %v3630 = vrcp.pop %v3624
    %v3631 = vrcp.pop %v3627
    %v3632 = vmul.f32 %v3609, %v3628
    %v3633 = vmul.f32 %v3611, %v3629
    %v3634 = vmul.f32 %v3613, %v3630
    %v3635 = vmul.f32 %v3615, %v3631
    %v3636 = vadd.f32 %v3471, %v3632
    %v3637 = vadd.f32 %v3472, %v3633
    %v3638 = vadd.f32 %v3473, %v3634
    %v3639 = vadd.f32 %v3474, %v3635
    %3640 = vrot.lane.b32.xlu0 %v3296, 32
    %v3641 = vpop.permute.xlu0 %3640
    %3642 = vrot.lane.b32.xlu0 %v3302, 32
    %v3643 = vpop.permute.xlu0 %3642
    %3644 = vrot.lane.b32.xlu0 %v3308, 32
    %v3645 = vpop.permute.xlu0 %3644
    %3646 = vrot.lane.b32.xlu0 %v3314, 32
    %v3647 = vpop.permute.xlu0 %3646
    %v3653 = vsel %vm63, %v3632, 0
    %v3656 = vsel %vm63, %v3633, 0
    %v3659 = vsel %vm63, %v3634, 0
    %v3662 = vsel %vm63, %v3635, 0
    %3664 = vmatprep.subr.mxu0 0.0
    %3665 = vmatpush1.msra.mxu0 0.0
    %3666 = vmatprep.subr.mxu0 0.0
    %3667 = vmatpush1.msra.mxu0 0.0
    %3668 = vmatprep.subr.mxu0 0.0
    %3669 = vmatpush1.msra.mxu0 0.0
    %3670 = vmatprep.subr.mxu0 0.0
    %3671 = vmatpush1.msra.mxu0 0.0
    %3672 = vmatprep.subr.mxu0 0.0
    %3673 = vmatpush1.msra.mxu0 0.0
    %3674 = vmatprep.subr.mxu0 0.0
    %3675 = vmatpush1.msra.mxu0 0.0
    %3676 = vmatprep.subr.mxu0 0.0
    %3677 = vmatpush1.msra.mxu0 0.0
    %3678 = vmatprep.subr.mxu0 0.0
    %3679 = vmatpush1.msra.mxu0 0.0
    %3680 = vmatprep.subr.mxu0 0.0
    %3681 = vmatpush1.msra.mxu0 0.0
    %3682 = vmatprep.subr.mxu0 0.0
    %3683 = vmatpush1.msra.mxu0 0.0
    %3684 = vmatprep.subr.mxu0 0.0
    %3685 = vmatpush1.msra.mxu0 0.0
    %3686 = vmatprep.subr.mxu0 0.0
    %3687 = vmatpush1.msra.mxu0 0.0
    %3688 = vmatprep.subr.mxu0 0.0
    %3689 = vmatpush1.msra.mxu0 %v3647
    %3690 = vmatprep.subr.mxu0 0.0
    %3691 = vmatpush1.msra.mxu0 %v3645
    %3692 = vmatprep.subr.mxu0 0.0
    %3693 = vmatpush1.msra.mxu0 %v3643
    %3694 = vmatprep.subr.mxu0 0.0
    %3695 = vmatpush1.msra.mxu0 %v3641
    %3696 = vmatprep.subr.mxu0 0.0
    %3697 = vmatpush2.msra.mxu0 0.0
    %3698 = vmatprep.subr.mxu0 0.0
    %3699 = vmatpush2.msra.mxu0 0.0
    %3700 = vmatprep.subr.mxu0 0.0
    %3701 = vmatpush2.msra.mxu0 0.0
    %3702 = vmatprep.subr.mxu0 0.0
    %3703 = vmatpush2.msra.mxu0 0.0
    %3704 = vmatprep.subr.mxu0 0.0
    %3705 = vmatpush2.msra.mxu0 0.0
    %3706 = vmatprep.subr.mxu0 0.0
    %3707 = vmatpush2.msra.mxu0 0.0
    %3708 = vmatprep.subr.mxu0 0.0
    %3709 = vmatpush2.msra.mxu0 0.0
    %3710 = vmatprep.subr.mxu0 0.0
    %3711 = vmatpush2.msra.mxu0 0.0
    %3712 = vmatprep.subr.mxu0 0.0
    %3713 = vmatpush2.msra.mxu0 0.0
    %3714 = vmatprep.subr.mxu0 0.0
    %3715 = vmatpush2.msra.mxu0 0.0
    %3716 = vmatprep.subr.mxu0 0.0
    %3717 = vmatpush2.msra.mxu0 0.0
    %3718 = vmatprep.subr.mxu0 0.0
    %3719 = vmatpush2.msra.mxu0 0.0
    %3720 = vmatprep.subr.mxu0 0.0
    %3721 = vmatpush2.msra.mxu0 0.0
    %3722 = vmatprep.subr.mxu0 0.0
    %3723 = vmatpush2.msra.mxu0 0.0
    %3724 = vmatprep.subr.mxu0 0.0
    %3725 = vmatpush2.msra.mxu0 0.0
    %3726 = vmatprep.subr.mxu0 0.0
    %3727 = vmatpush2.msra.mxu0 0.0
    %3728 = vmatprep.mubr.f32.mxu0 0.0
    %3729 = vmatmul.mubr.f32.gmra.mxu0 %v3653
    %v3730 = vpop.f32.mrf.mxu0
    %v3731 = vadd.f32 0.0, %v3730
    %v3732 = vpop.f32.mrf.mxu0
    %3733 = vmatprep.mubr.f32.mxu0 0.0
    %3734 = vmatmul.mubr.f32.gmra.mxu0 %v3656
    %v3735 = vpop.f32.mrf.mxu0
    %v3736 = vadd.f32 0.0, %v3735
    %v3737 = vpop.f32.mrf.mxu0
    %3738 = vmatprep.mubr.f32.mxu0 0.0
    %3739 = vmatmul.mubr.f32.gmra.mxu0 %v3659
    %v3740 = vpop.f32.mrf.mxu0
    %v3741 = vadd.f32 0.0, %v3740
    %v3742 = vpop.f32.mrf.mxu0
    %3743 = vmatprep.mubr.f32.mxu0 0.0
    %3744 = vmatmul.mubr.f32.gmra.mxu0 %v3662
    %v3745 = vpop.f32.mrf.mxu0
    %v3746 = vadd.f32 0.0, %v3745
    %v3747 = vpop.f32.mrf.mxu0
    %3748 = vdwg.mxu0
    %3749 = vrot.lane.b32.xlu0 %v3296, 64
    %v3750 = vpop.permute.xlu0 %3749
    %3751 = vrot.lane.b32.xlu0 %v3302, 64
    %v3752 = vpop.permute.xlu0 %3751
    %3753 = vrot.lane.b32.xlu0 %v3308, 64
    %v3754 = vpop.permute.xlu0 %3753
    %3755 = vrot.lane.b32.xlu0 %v3314, 64
    %v3756 = vpop.permute.xlu0 %3755
    %v3762 = vsel %vm63, %v3471, 0
    %v3765 = vsel %vm63, %v3472, 0
    %v3768 = vsel %vm63, %v3473, 0
    %v3771 = vsel %vm63, %v3474, 0
    %3773 = vmatprep.subr.mxu0 0.0
    %3774 = vmatpush1.msra.mxu0 0.0
    %3775 = vmatprep.subr.mxu0 0.0
    %3776 = vmatpush1.msra.mxu0 0.0
    %3777 = vmatprep.subr.mxu0 0.0
    %3778 = vmatpush1.msra.mxu0 0.0
    %3779 = vmatprep.subr.mxu0 0.0
    %3780 = vmatpush1.msra.mxu0 0.0
    %3781 = vmatprep.subr.mxu0 0.0
    %3782 = vmatpush1.msra.mxu0 0.0
    %3783 = vmatprep.subr.mxu0 0.0
    %3784 = vmatpush1.msra.mxu0 0.0
    %3785 = vmatprep.subr.mxu0 0.0
    %3786 = vmatpush1.msra.mxu0 0.0
    %3787 = vmatprep.subr.mxu0 0.0
    %3788 = vmatpush1.msra.mxu0 0.0
    %3789 = vmatprep.subr.mxu0 0.0
    %3790 = vmatpush1.msra.mxu0 0.0
    %3791 = vmatprep.subr.mxu0 0.0
    %3792 = vmatpush1.msra.mxu0 0.0
    %3793 = vmatprep.subr.mxu0 0.0
    %3794 = vmatpush1.msra.mxu0 0.0
    %3795 = vmatprep.subr.mxu0 0.0
    %3796 = vmatpush1.msra.mxu0 0.0
    %3797 = vmatprep.subr.mxu0 0.0
    %3798 = vmatpush1.msra.mxu0 %v3756
    %3799 = vmatprep.subr.mxu0 0.0
    %3800 = vmatpush1.msra.mxu0 %v3754
    %3801 = vmatprep.subr.mxu0 0.0
    %3802 = vmatpush1.msra.mxu0 %v3752
    %3803 = vmatprep.subr.mxu0 0.0
    %3804 = vmatpush1.msra.mxu0 %v3750
    %3805 = vmatprep.subr.mxu0 0.0
    %3806 = vmatpush2.msra.mxu0 0.0
    %3807 = vmatprep.subr.mxu0 0.0
    %3808 = vmatpush2.msra.mxu0 0.0
    %3809 = vmatprep.subr.mxu0 0.0
    %3810 = vmatpush2.msra.mxu0 0.0
    %3811 = vmatprep.subr.mxu0 0.0
    %3812 = vmatpush2.msra.mxu0 0.0
    %3813 = vmatprep.subr.mxu0 0.0
    %3814 = vmatpush2.msra.mxu0 0.0
    %3815 = vmatprep.subr.mxu0 0.0
    %3816 = vmatpush2.msra.mxu0 0.0
    %3817 = vmatprep.subr.mxu0 0.0
    %3818 = vmatpush2.msra.mxu0 0.0
    %3819 = vmatprep.subr.mxu0 0.0
    %3820 = vmatpush2.msra.mxu0 0.0
    %3821 = vmatprep.subr.mxu0 0.0
    %3822 = vmatpush2.msra.mxu0 0.0
    %3823 = vmatprep.subr.mxu0 0.0
    %3824 = vmatpush2.msra.mxu0 0.0
    %3825 = vmatprep.subr.mxu0 0.0
    %3826 = vmatpush2.msra.mxu0 0.0
    %3827 = vmatprep.subr.mxu0 0.0
    %3828 = vmatpush2.msra.mxu0 0.0
    %3829 = vmatprep.subr.mxu0 0.0
    %3830 = vmatpush2.msra.mxu0 0.0
    %3831 = vmatprep.subr.mxu0 0.0
    %3832 = vmatpush2.msra.mxu0 0.0
    %3833 = vmatprep.subr.mxu0 0.0
    %3834 = vmatpush2.msra.mxu0 0.0
    %3835 = vmatprep.subr.mxu0 0.0
    %3836 = vmatpush2.msra.mxu0 0.0
    %3837 = vmatprep.mubr.f32.mxu0 0.0
    %3838 = vmatmul.mubr.f32.gmra.mxu0 %v3762
    %v3839 = vpop.f32.mrf.mxu0
    %v3840 = vadd.f32 %v3731, %v3839
    %v3841 = vpop.f32.mrf.mxu0
    %3842 = vmatprep.mubr.f32.mxu0 0.0
    %3843 = vmatmul.mubr.f32.gmra.mxu0 %v3765
    %v3844 = vpop.f32.mrf.mxu0
    %v3845 = vadd.f32 %v3736, %v3844
    %v3846 = vpop.f32.mrf.mxu0
    %3847 = vmatprep.mubr.f32.mxu0 0.0
    %3848 = vmatmul.mubr.f32.gmra.mxu0 %v3768
    %v3849 = vpop.f32.mrf.mxu0
    %v3850 = vadd.f32 %v3741, %v3849
    %v3851 = vpop.f32.mrf.mxu0
    %3852 = vmatprep.mubr.f32.mxu0 0.0
    %3853 = vmatmul.mubr.f32.gmra.mxu0 %v3771
    %v3854 = vpop.f32.mrf.mxu0
    %v3855 = vadd.f32 %v3746, %v3854
    %v3856 = vpop.f32.mrf.mxu0
    %3857 = vdwg.mxu0
    %3858 = vrot.lane.b32.xlu0 %v3296, 112
    %v3859 = vpop.permute.xlu0 %3858
    %3860 = vrot.lane.b32.xlu0 %v3302, 112
    %v3861 = vpop.permute.xlu0 %3860
    %3862 = vrot.lane.b32.xlu0 %v3308, 112
    %v3863 = vpop.permute.xlu0 %3862
    %3864 = vrot.lane.b32.xlu0 %v3314, 112
    %v3865 = vpop.permute.xlu0 %3864
    %3866 = vrot.lane.b32.xlu0 %v3296, 80
    %v3867 = vpop.permute.xlu0 %3866
    %3868 = vrot.lane.b32.xlu0 %v3302, 80
    %v3869 = vpop.permute.xlu0 %3868
    %3870 = vrot.lane.b32.xlu0 %v3308, 80
    %v3871 = vpop.permute.xlu0 %3870
    %3872 = vrot.lane.b32.xlu0 %v3314, 80
    %v3873 = vpop.permute.xlu0 %3872
    %v3874 = vsel %vm177, %v3859, 0
    %v3876 = vsel %vm177, %v3861, 0
    %v3878 = vsel %vm177, %v3863, 0
    %v3880 = vsel %vm177, %v3865, 0
    %v3882 = vsel %vm177, %v3867, 0
    %v3884 = vsel %vm177, %v3869, 0
    %v3886 = vsel %vm177, %v3871, 0
    %v3888 = vsel %vm177, %v3873, 0
    %3890 = vmatprep.subr.mxu0 0.0
    %3891 = vmatpush1.xpose.msra.mxu0 0.0
    %3892 = vmatprep.subr.mxu0 0.0
    %3893 = vmatpush1.xpose.msra.mxu0 0.0
    %3894 = vmatprep.subr.mxu0 0.0
    %3895 = vmatpush1.xpose.msra.mxu0 0.0
    %3896 = vmatprep.subr.mxu0 0.0
    %3897 = vmatpush1.xpose.msra.mxu0 0.0
    %3898 = vmatprep.subr.mxu0 0.0
    %3899 = vmatpush1.xpose.msra.mxu0 0.0
    %3900 = vmatprep.subr.mxu0 0.0
    %3901 = vmatpush1.xpose.msra.mxu0 0.0
    %3902 = vmatprep.subr.mxu0 0.0
    %3903 = vmatpush1.xpose.msra.mxu0 0.0
    %3904 = vmatprep.subr.mxu0 0.0
    %3905 = vmatpush1.xpose.msra.mxu0 0.0
    %3906 = vmatprep.subr.mxu0 0.0
    %3907 = vmatpush1.xpose.msra.mxu0 0.0
    %3908 = vmatprep.subr.mxu0 0.0
    %3909 = vmatpush1.xpose.msra.mxu0 0.0
    %3910 = vmatprep.subr.mxu0 0.0
    %3911 = vmatpush1.xpose.msra.mxu0 0.0
    %3912 = vmatprep.subr.mxu0 0.0
    %3913 = vmatpush1.xpose.msra.mxu0 0.0
    %3914 = vmatprep.subr.mxu0 0.0
    %3915 = vmatpush1.xpose.msra.mxu0 %v3888
    %3916 = vmatprep.subr.mxu0 0.0
    %3917 = vmatpush1.xpose.msra.mxu0 %v3886
    %3918 = vmatprep.subr.mxu0 0.0
    %3919 = vmatpush1.xpose.msra.mxu0 %v3884
    %3920 = vmatprep.subr.mxu0 0.0
    %3921 = vmatpush1.xpose.msra.mxu0 %v3882
    %3922 = vmatprep.subr.mxu0 0.0
    %3923 = vmatpush2.xpose.msra.mxu0 0.0
    %3924 = vmatprep.subr.mxu0 0.0
    %3925 = vmatpush2.xpose.msra.mxu0 0.0
    %3926 = vmatprep.subr.mxu0 0.0
    %3927 = vmatpush2.xpose.msra.mxu0 0.0
    %3928 = vmatprep.subr.mxu0 0.0
    %3929 = vmatpush2.xpose.msra.mxu0 0.0
    %3930 = vmatprep.subr.mxu0 0.0
    %3931 = vmatpush2.xpose.msra.mxu0 0.0
    %3932 = vmatprep.subr.mxu0 0.0
    %3933 = vmatpush2.xpose.msra.mxu0 0.0
    %3934 = vmatprep.subr.mxu0 0.0
    %3935 = vmatpush2.xpose.msra.mxu0 0.0
    %3936 = vmatprep.subr.mxu0 0.0
    %3937 = vmatpush2.xpose.msra.mxu0 0.0
    %3938 = vmatprep.subr.mxu0 0.0
    %3939 = vmatpush2.xpose.msra.mxu0 0.0
    %3940 = vmatprep.subr.mxu0 0.0
    %3941 = vmatpush2.xpose.msra.mxu0 0.0
    %3942 = vmatprep.subr.mxu0 0.0
    %3943 = vmatpush2.xpose.msra.mxu0 0.0
    %3944 = vmatprep.subr.mxu0 0.0
    %3945 = vmatpush2.xpose.msra.mxu0 0.0
    %3946 = vmatprep.subr.mxu0 0.0
    %3947 = vmatpush2.xpose.msra.mxu0 0.0
    %3948 = vmatprep.subr.mxu0 0.0
    %3949 = vmatpush2.xpose.msra.mxu0 0.0
    %3950 = vmatprep.subr.mxu0 0.0
    %3951 = vmatpush2.xpose.msra.mxu0 0.0
    %3952 = vmatprep.subr.mxu0 0.0
    %3953 = vmatpush2.xpose.msra.mxu0 0.0
    %3954 = vmatprep.mubr.f32.mxu0 0.0
    %3955 = vmatmul.mubr.f32.gmra.mxu0 %v3874
    %v3956 = vpop.f32.mrf.mxu0
    %v3957 = vadd.f32 %v23, %v3956
    %v3958 = vpop.f32.mrf.mxu0
    %3959 = vmatprep.mubr.f32.mxu0 0.0
    %3960 = vmatmul.mubr.f32.gmra.mxu0 %v3876
    %v3961 = vpop.f32.mrf.mxu0
    %v3962 = vadd.f32 %v24, %v3961
    %v3963 = vpop.f32.mrf.mxu0
    %3964 = vmatprep.mubr.f32.mxu0 0.0
    %3965 = vmatmul.mubr.f32.gmra.mxu0 %v3878
    %v3966 = vpop.f32.mrf.mxu0
    %v3967 = vadd.f32 %v25, %v3966
    %v3968 = vpop.f32.mrf.mxu0
    %3969 = vmatprep.mubr.f32.mxu0 0.0
    %3970 = vmatmul.mubr.f32.gmra.mxu0 %v3880
    %v3971 = vpop.f32.mrf.mxu0
    %v3972 = vadd.f32 %v26, %v3971
    %v3973 = vpop.f32.mrf.mxu0
    %3974 = vdwg.mxu0
    %v3975 = vsel %vm63, %v3957, -inf
    %3976 = vmax.xlane.f32.xlu0 %v3975
    %v3977 = vpop.xlane.xlu0 %3976
    %v3978 = vsel %vm63, %v3962, -inf
    %3979 = vmax.xlane.f32.xlu0 %v3978
    %v3980 = vpop.xlane.xlu0 %3979
    %v3981 = vsel %vm63, %v3967, -inf
    %3982 = vmax.xlane.f32.xlu0 %v3981
    %v3983 = vpop.xlane.xlu0 %3982
    %v3984 = vsel %vm63, %v3972, -inf
    %3985 = vmax.xlane.f32.xlu0 %v3984
    %v3986 = vpop.xlane.xlu0 %3985
    %v3987 = vsub.f32 %v3957, %v3977
    %v3988 = vsub.f32 %v3962, %v3980
    %v3989 = vsub.f32 %v3967, %v3983
    %v3990 = vsub.f32 %v3972, %v3986
    %v3991 = vmul.f32 %v3987, 1.442695
    %v3992 = vpow.pop %v3991
    %v3993 = vmul.f32 %v3988, 1.442695
    %v3994 = vpow.pop %v3993
    %v3995 = vmul.f32 %v3989, 1.442695
    %v3996 = vpow.pop %v3995
    %v3997 = vmul.f32 %v3990, 1.442695
    %v3998 = vpow.pop %v3997
    %v3999 = vsel %vm63, %v3992, 0.0
    %4000 = vadd.xlane.f32.xlu0 %v3999
    %v4001 = vpop.xlane.xlu0 %4000
    %v4002 = vsel %vm63, %v3994, 0.0
    %4003 = vadd.xlane.f32.xlu0 %v4002
    %v4004 = vpop.xlane.xlu0 %4003
    %v4005 = vsel %vm63, %v3996, 0.0
    %4006 = vadd.xlane.f32.xlu0 %v4005
    %v4007 = vpop.xlane.xlu0 %4006
    %v4008 = vsel %vm63, %v3998, 0.0
    %4009 = vadd.xlane.f32.xlu0 %v4008
    %v4010 = vpop.xlane.xlu0 %4009
    %v4011 = vrcp.pop %v4001
    %v4012 = vrcp.pop %v4004
    %v4013 = vrcp.pop %v4007
    %v4014 = vrcp.pop %v4010
    %v4015 = vmul.f32 %v3992, %v4011
    %v4016 = vmul.f32 %v3994, %v4012
    %v4017 = vmul.f32 %v3996, %v4013
    %v4018 = vmul.f32 %v3998, %v4014
    %v4019 = vadd.f32 %v3636, %v4015
    %v4020 = vadd.f32 %v3637, %v4016
    %v4021 = vadd.f32 %v3638, %v4017
    %v4022 = vadd.f32 %v3639, %v4018
    %v4024 = vsel %vm63, %v4015, 0
    %v4027 = vsel %vm63, %v4016, 0
    %v4030 = vsel %vm63, %v4017, 0
    %v4033 = vsel %vm63, %v4018, 0
    %4035 = vmatprep.subr.mxu0 0.0
    %4036 = vmatpush1.msra.mxu0 0.0
    %4037 = vmatprep.subr.mxu0 0.0
    %4038 = vmatpush1.msra.mxu0 0.0
    %4039 = vmatprep.subr.mxu0 0.0
    %4040 = vmatpush1.msra.mxu0 0.0
    %4041 = vmatprep.subr.mxu0 0.0
    %4042 = vmatpush1.msra.mxu0 0.0
    %4043 = vmatprep.subr.mxu0 0.0
    %4044 = vmatpush1.msra.mxu0 0.0
    %4045 = vmatprep.subr.mxu0 0.0
    %4046 = vmatpush1.msra.mxu0 0.0
    %4047 = vmatprep.subr.mxu0 0.0
    %4048 = vmatpush1.msra.mxu0 0.0
    %4049 = vmatprep.subr.mxu0 0.0
    %4050 = vmatpush1.msra.mxu0 0.0
    %4051 = vmatprep.subr.mxu0 0.0
    %4052 = vmatpush1.msra.mxu0 0.0
    %4053 = vmatprep.subr.mxu0 0.0
    %4054 = vmatpush1.msra.mxu0 0.0
    %4055 = vmatprep.subr.mxu0 0.0
    %4056 = vmatpush1.msra.mxu0 0.0
    %4057 = vmatprep.subr.mxu0 0.0
    %4058 = vmatpush1.msra.mxu0 0.0
    %4059 = vmatprep.subr.mxu0 0.0
    %4060 = vmatpush1.msra.mxu0 %v3316
    %4061 = vmatprep.subr.mxu0 0.0
    %4062 = vmatpush1.msra.mxu0 %v3310
    %4063 = vmatprep.subr.mxu0 0.0
    %4064 = vmatpush1.msra.mxu0 %v3304
    %4065 = vmatprep.subr.mxu0 0.0
    %4066 = vmatpush1.msra.mxu0 %v3298
    %4067 = vmatprep.subr.mxu0 0.0
    %4068 = vmatpush2.msra.mxu0 0.0
    %4069 = vmatprep.subr.mxu0 0.0
    %4070 = vmatpush2.msra.mxu0 0.0
    %4071 = vmatprep.subr.mxu0 0.0
    %4072 = vmatpush2.msra.mxu0 0.0
    %4073 = vmatprep.subr.mxu0 0.0
    %4074 = vmatpush2.msra.mxu0 0.0
    %4075 = vmatprep.subr.mxu0 0.0
    %4076 = vmatpush2.msra.mxu0 0.0
    %4077 = vmatprep.subr.mxu0 0.0
    %4078 = vmatpush2.msra.mxu0 0.0
    %4079 = vmatprep.subr.mxu0 0.0
    %4080 = vmatpush2.msra.mxu0 0.0
    %4081 = vmatprep.subr.mxu0 0.0
    %4082 = vmatpush2.msra.mxu0 0.0
    %4083 = vmatprep.subr.mxu0 0.0
    %4084 = vmatpush2.msra.mxu0 0.0
    %4085 = vmatprep.subr.mxu0 0.0
    %4086 = vmatpush2.msra.mxu0 0.0
    %4087 = vmatprep.subr.mxu0 0.0
    %4088 = vmatpush2.msra.mxu0 0.0
    %4089 = vmatprep.subr.mxu0 0.0
    %4090 = vmatpush2.msra.mxu0 0.0
    %4091 = vmatprep.subr.mxu0 0.0
    %4092 = vmatpush2.msra.mxu0 0.0
    %4093 = vmatprep.subr.mxu0 0.0
    %4094 = vmatpush2.msra.mxu0 0.0
    %4095 = vmatprep.subr.mxu0 0.0
    %4096 = vmatpush2.msra.mxu0 0.0
    %4097 = vmatprep.subr.mxu0 0.0
    %4098 = vmatpush2.msra.mxu0 0.0
    %4099 = vmatprep.mubr.f32.mxu0 0.0
    %4100 = vmatmul.mubr.f32.gmra.mxu0 %v4024
    %v4101 = vpop.f32.mrf.mxu0
    %v4102 = vadd.f32 0.0, %v4101
    %v4103 = vpop.f32.mrf.mxu0
    %4104 = vmatprep.mubr.f32.mxu0 0.0
    %4105 = vmatmul.mubr.f32.gmra.mxu0 %v4027
    %v4106 = vpop.f32.mrf.mxu0
    %v4107 = vadd.f32 0.0, %v4106
    %v4108 = vpop.f32.mrf.mxu0
    %4109 = vmatprep.mubr.f32.mxu0 0.0
    %4110 = vmatmul.mubr.f32.gmra.mxu0 %v4030
    %v4111 = vpop.f32.mrf.mxu0
    %v4112 = vadd.f32 0.0, %v4111
    %v4113 = vpop.f32.mrf.mxu0
    %4114 = vmatprep.mubr.f32.mxu0 0.0
    %4115 = vmatmul.mubr.f32.gmra.mxu0 %v4033
    %v4116 = vpop.f32.mrf.mxu0
    %v4117 = vadd.f32 0.0, %v4116
    %v4118 = vpop.f32.mrf.mxu0
    %4119 = vdwg.mxu0
    %v4120 = vadd.f32 %v3840, %v4102
    %v4121 = vadd.f32 %v3845, %v4107
    %v4122 = vadd.f32 %v3850, %v4112
    %v4123 = vadd.f32 %v3855, %v4117
    %4124 = vrot.lane.b32.xlu0 %v3296, 104
    %v4125 = vpop.permute.xlu0 %4124
    %4126 = vrot.lane.b32.xlu0 %v3302, 104
    %v4127 = vpop.permute.xlu0 %4126
    %4128 = vrot.lane.b32.xlu0 %v3308, 104
    %v4129 = vpop.permute.xlu0 %4128
    %4130 = vrot.lane.b32.xlu0 %v3314, 104
    %v4131 = vpop.permute.xlu0 %4130
    %4132 = vrot.lane.b32.xlu0 %v3296, 72
    %v4133 = vpop.permute.xlu0 %4132
    %4134 = vrot.lane.b32.xlu0 %v3302, 72
    %v4135 = vpop.permute.xlu0 %4134
    %4136 = vrot.lane.b32.xlu0 %v3308, 72
    %v4137 = vpop.permute.xlu0 %4136
    %4138 = vrot.lane.b32.xlu0 %v3314, 72
    %v4139 = vpop.permute.xlu0 %4138
    %v4140 = vsel %vm177, %v4125, 0
    %v4142 = vsel %vm177, %v4127, 0
    %v4144 = vsel %vm177, %v4129, 0
    %v4146 = vsel %vm177, %v4131, 0
    %v4148 = vsel %vm177, %v4133, 0
    %v4150 = vsel %vm177, %v4135, 0
    %v4152 = vsel %vm177, %v4137, 0
    %v4154 = vsel %vm177, %v4139, 0
    %4156 = vmatprep.subr.mxu0 0.0
    %4157 = vmatpush1.xpose.msra.mxu0 0.0
    %4158 = vmatprep.subr.mxu0 0.0
    %4159 = vmatpush1.xpose.msra.mxu0 0.0
    %4160 = vmatprep.subr.mxu0 0.0
    %4161 = vmatpush1.xpose.msra.mxu0 0.0
    %4162 = vmatprep.subr.mxu0 0.0
    %4163 = vmatpush1.xpose.msra.mxu0 0.0
    %4164 = vmatprep.subr.mxu0 0.0
    %4165 = vmatpush1.xpose.msra.mxu0 0.0
    %4166 = vmatprep.subr.mxu0 0.0
    %4167 = vmatpush1.xpose.msra.mxu0 0.0
    %4168 = vmatprep.subr.mxu0 0.0
    %4169 = vmatpush1.xpose.msra.mxu0 0.0
    %4170 = vmatprep.subr.mxu0 0.0
    %4171 = vmatpush1.xpose.msra.mxu0 0.0
    %4172 = vmatprep.subr.mxu0 0.0
    %4173 = vmatpush1.xpose.msra.mxu0 0.0
    %4174 = vmatprep.subr.mxu0 0.0
    %4175 = vmatpush1.xpose.msra.mxu0 0.0
    %4176 = vmatprep.subr.mxu0 0.0
    %4177 = vmatpush1.xpose.msra.mxu0 0.0
    %4178 = vmatprep.subr.mxu0 0.0
    %4179 = vmatpush1.xpose.msra.mxu0 0.0
    %4180 = vmatprep.subr.mxu0 0.0
    %4181 = vmatpush1.xpose.msra.mxu0 %v4154
    %4182 = vmatprep.subr.mxu0 0.0
    %4183 = vmatpush1.xpose.msra.mxu0 %v4152
    %4184 = vmatprep.subr.mxu0 0.0
    %4185 = vmatpush1.xpose.msra.mxu0 %v4150
    %4186 = vmatprep.subr.mxu0 0.0
    %4187 = vmatpush1.xpose.msra.mxu0 %v4148
    %4188 = vmatprep.subr.mxu0 0.0
    %4189 = vmatpush2.xpose.msra.mxu0 0.0
    %4190 = vmatprep.subr.mxu0 0.0
    %4191 = vmatpush2.xpose.msra.mxu0 0.0
    %4192 = vmatprep.subr.mxu0 0.0
    %4193 = vmatpush2.xpose.msra.mxu0 0.0
    %4194 = vmatprep.subr.mxu0 0.0
    %4195 = vmatpush2.xpose.msra.mxu0 0.0
    %4196 = vmatprep.subr.mxu0 0.0
    %4197 = vmatpush2.xpose.msra.mxu0 0.0
    %4198 = vmatprep.subr.mxu0 0.0
    %4199 = vmatpush2.xpose.msra.mxu0 0.0
    %4200 = vmatprep.subr.mxu0 0.0
    %4201 = vmatpush2.xpose.msra.mxu0 0.0
    %4202 = vmatprep.subr.mxu0 0.0
    %4203 = vmatpush2.xpose.msra.mxu0 0.0
    %4204 = vmatprep.subr.mxu0 0.0
    %4205 = vmatpush2.xpose.msra.mxu0 0.0
    %4206 = vmatprep.subr.mxu0 0.0
    %4207 = vmatpush2.xpose.msra.mxu0 0.0
    %4208 = vmatprep.subr.mxu0 0.0
    %4209 = vmatpush2.xpose.msra.mxu0 0.0
    %4210 = vmatprep.subr.mxu0 0.0
    %4211 = vmatpush2.xpose.msra.mxu0 0.0
    %4212 = vmatprep.subr.mxu0 0.0
    %4213 = vmatpush2.xpose.msra.mxu0 0.0
    %4214 = vmatprep.subr.mxu0 0.0
    %4215 = vmatpush2.xpose.msra.mxu0 0.0
    %4216 = vmatprep.subr.mxu0 0.0
    %4217 = vmatpush2.xpose.msra.mxu0 0.0
    %4218 = vmatprep.subr.mxu0 0.0
    %4219 = vmatpush2.xpose.msra.mxu0 0.0
    %4220 = vmatprep.mubr.f32.mxu0 0.0
    %4221 = vmatmul.mubr.f32.gmra.mxu0 %v4140
    %v4222 = vpop.f32.mrf.mxu0
    %v4223 = vadd.f32 %v23, %v4222
    %v4224 = vpop.f32.mrf.mxu0
    %4225 = vmatprep.mubr.f32.mxu0 0.0
    %4226 = vmatmul.mubr.f32.gmra.mxu0 %v4142
    %v4227 = vpop.f32.mrf.mxu0
    %v4228 = vadd.f32 %v24, %v4227
    %v4229 = vpop.f32.mrf.mxu0
    %4230 = vmatprep.mubr.f32.mxu0 0.0
    %4231 = vmatmul.mubr.f32.gmra.mxu0 %v4144
    %v4232 = vpop.f32.mrf.mxu0
    %v4233 = vadd.f32 %v25, %v4232
    %v4234 = vpop.f32.mrf.mxu0
    %4235 = vmatprep.mubr.f32.mxu0 0.0
    %4236 = vmatmul.mubr.f32.gmra.mxu0 %v4146
    %v4237 = vpop.f32.mrf.mxu0
    %v4238 = vadd.f32 %v26, %v4237
    %v4239 = vpop.f32.mrf.mxu0
    %4240 = vdwg.mxu0
    %v4241 = vsel %vm63, %v4223, -inf
    %4242 = vmax.xlane.f32.xlu0 %v4241
    %v4243 = vpop.xlane.xlu0 %4242
    %v4244 = vsel %vm63, %v4228, -inf
    %4245 = vmax.xlane.f32.xlu0 %v4244
    %v4246 = vpop.xlane.xlu0 %4245
    %v4247 = vsel %vm63, %v4233, -inf
    %4248 = vmax.xlane.f32.xlu0 %v4247
    %v4249 = vpop.xlane.xlu0 %4248
    %v4250 = vsel %vm63, %v4238, -inf
    %4251 = vmax.xlane.f32.xlu0 %v4250
    %v4252 = vpop.xlane.xlu0 %4251
    %v4253 = vsub.f32 %v4223, %v4243
    %v4254 = vsub.f32 %v4228, %v4246
    %v4255 = vsub.f32 %v4233, %v4249
    %v4256 = vsub.f32 %v4238, %v4252
    %v4257 = vmul.f32 %v4253, 1.442695
    %v4258 = vpow.pop %v4257
    %v4259 = vmul.f32 %v4254, 1.442695
    %v4260 = vpow.pop %v4259
    %v4261 = vmul.f32 %v4255, 1.442695
    %v4262 = vpow.pop %v4261
    %v4263 = vmul.f32 %v4256, 1.442695
    %v4264 = vpow.pop %v4263
    %v4265 = vsel %vm63, %v4258, 0.0
    %4266 = vadd.xlane.f32.xlu0 %v4265
    %v4267 = vpop.xlane.xlu0 %4266
    %v4268 = vsel %vm63, %v4260, 0.0
    %4269 = vadd.xlane.f32.xlu0 %v4268
    %v4270 = vpop.xlane.xlu0 %4269
    %v4271 = vsel %vm63, %v4262, 0.0
    %4272 = vadd.xlane.f32.xlu0 %v4271
    %v4273 = vpop.xlane.xlu0 %4272
    %v4274 = vsel %vm63, %v4264, 0.0
    %4275 = vadd.xlane.f32.xlu0 %v4274
    %v4276 = vpop.xlane.xlu0 %4275
    %v4277 = vrcp.pop %v4267
    %v4278 = vrcp.pop %v4270
    %v4279 = vrcp.pop %v4273
    %v4280 = vrcp.pop %v4276
    %v4281 = vmul.f32 %v4258, %v4277
    %v4282 = vmul.f32 %v4260, %v4278
    %v4283 = vmul.f32 %v4262, %v4279
    %v4284 = vmul.f32 %v4264, %v4280
    %v4285 = vadd.f32 %v4019, %v4281
    %v4286 = vadd.f32 %v4020, %v4282
    %v4287 = vadd.f32 %v4021, %v4283
    %v4288 = vadd.f32 %v4022, %v4284
    %4293 = vrot.lane.b32.xlu0 %v3298, 96
    %v4294 = vpop.permute.xlu0 %4293
    %4295 = vrot.lane.b32.xlu0 %v3304, 96
    %v4296 = vpop.permute.xlu0 %4295
    %4297 = vrot.lane.b32.xlu0 %v3310, 96
    %v4298 = vpop.permute.xlu0 %4297
    %4299 = vrot.lane.b32.xlu0 %v3316, 96
    %v4300 = vpop.permute.xlu0 %4299
    %v4306 = vsel %vm63, %v4281, 0
    %v4309 = vsel %vm63, %v4282, 0
    %v4312 = vsel %vm63, %v4283, 0
    %v4315 = vsel %vm63, %v4284, 0
    %4317 = vmatprep.subr.mxu0 0.0
    %4318 = vmatpush1.msra.mxu0 0.0
    %4319 = vmatprep.subr.mxu0 0.0
    %4320 = vmatpush1.msra.mxu0 0.0
    %4321 = vmatprep.subr.mxu0 0.0
    %4322 = vmatpush1.msra.mxu0 0.0
    %4323 = vmatprep.subr.mxu0 0.0
    %4324 = vmatpush1.msra.mxu0 0.0
    %4325 = vmatprep.subr.mxu0 0.0
    %4326 = vmatpush1.msra.mxu0 0.0
    %4327 = vmatprep.subr.mxu0 0.0
    %4328 = vmatpush1.msra.mxu0 0.0
    %4329 = vmatprep.subr.mxu0 0.0
    %4330 = vmatpush1.msra.mxu0 0.0
    %4331 = vmatprep.subr.mxu0 0.0
    %4332 = vmatpush1.msra.mxu0 0.0
    %4333 = vmatprep.subr.mxu0 0.0
    %4334 = vmatpush1.msra.mxu0 0.0
    %4335 = vmatprep.subr.mxu0 0.0
    %4336 = vmatpush1.msra.mxu0 0.0
    %4337 = vmatprep.subr.mxu0 0.0
    %4338 = vmatpush1.msra.mxu0 0.0
    %4339 = vmatprep.subr.mxu0 0.0
    %4340 = vmatpush1.msra.mxu0 0.0
    %4341 = vmatprep.subr.mxu0 0.0
    %4342 = vmatpush1.msra.mxu0 %v4300
    %4343 = vmatprep.subr.mxu0 0.0
    %4344 = vmatpush1.msra.mxu0 %v4298
    %4345 = vmatprep.subr.mxu0 0.0
    %4346 = vmatpush1.msra.mxu0 %v4296
    %4347 = vmatprep.subr.mxu0 0.0
    %4348 = vmatpush1.msra.mxu0 %v4294
    %4349 = vmatprep.subr.mxu0 0.0
    %4350 = vmatpush2.msra.mxu0 0.0
    %4351 = vmatprep.subr.mxu0 0.0
    %4352 = vmatpush2.msra.mxu0 0.0
    %4353 = vmatprep.subr.mxu0 0.0
    %4354 = vmatpush2.msra.mxu0 0.0
    %4355 = vmatprep.subr.mxu0 0.0
    %4356 = vmatpush2.msra.mxu0 0.0
    %4357 = vmatprep.subr.mxu0 0.0
    %4358 = vmatpush2.msra.mxu0 0.0
    %4359 = vmatprep.subr.mxu0 0.0
    %4360 = vmatpush2.msra.mxu0 0.0
    %4361 = vmatprep.subr.mxu0 0.0
    %4362 = vmatpush2.msra.mxu0 0.0
    %4363 = vmatprep.subr.mxu0 0.0
    %4364 = vmatpush2.msra.mxu0 0.0
    %4365 = vmatprep.subr.mxu0 0.0
    %4366 = vmatpush2.msra.mxu0 0.0
    %4367 = vmatprep.subr.mxu0 0.0
    %4368 = vmatpush2.msra.mxu0 0.0
    %4369 = vmatprep.subr.mxu0 0.0
    %4370 = vmatpush2.msra.mxu0 0.0
    %4371 = vmatprep.subr.mxu0 0.0
    %4372 = vmatpush2.msra.mxu0 0.0
    %4373 = vmatprep.subr.mxu0 0.0
    %4374 = vmatpush2.msra.mxu0 0.0
    %4375 = vmatprep.subr.mxu0 0.0
    %4376 = vmatpush2.msra.mxu0 0.0
    %4377 = vmatprep.subr.mxu0 0.0
    %4378 = vmatpush2.msra.mxu0 0.0
    %4379 = vmatprep.subr.mxu0 0.0
    %4380 = vmatpush2.msra.mxu0 0.0
    %4381 = vmatprep.mubr.f32.mxu0 0.0
    %4382 = vmatmul.mubr.f32.gmra.mxu0 %v4306
    %v4383 = vpop.f32.mrf.mxu0
    %v4384 = vadd.f32 0.0, %v4383
    %v4385 = vpop.f32.mrf.mxu0
    %4386 = vmatprep.mubr.f32.mxu0 0.0
    %4387 = vmatmul.mubr.f32.gmra.mxu0 %v4309
    %v4388 = vpop.f32.mrf.mxu0
    %v4389 = vadd.f32 0.0, %v4388
    %v4390 = vpop.f32.mrf.mxu0
    %4391 = vmatprep.mubr.f32.mxu0 0.0
    %4392 = vmatmul.mubr.f32.gmra.mxu0 %v4312
    %v4393 = vpop.f32.mrf.mxu0
    %v4394 = vadd.f32 0.0, %v4393
    %v4395 = vpop.f32.mrf.mxu0
    %4396 = vmatprep.mubr.f32.mxu0 0.0
    %4397 = vmatmul.mubr.f32.gmra.mxu0 %v4315
    %v4398 = vpop.f32.mrf.mxu0
    %v4399 = vadd.f32 0.0, %v4398
    %v4400 = vpop.f32.mrf.mxu0
    %4401 = vdwg.mxu0
    %v4402 = vadd.f32 %v4120, %v4384
    %v4403 = vadd.f32 %v4121, %v4389
    %v4404 = vadd.f32 %v4122, %v4394
    %v4405 = vadd.f32 %v4123, %v4399
    %v4406 = vlaneseq
    %v4407 = vshrl.u32 %v4406, 7
    %v4408 = vsub.s32 0, %v4407
    %v4409 = vrot.slane %v3205, %v4408
    %v4410 = vadd.f32 %v4402, %v4409
    %v4411 = vadd.f32 %v4403, %v4409
    %v4412 = vadd.f32 %v4404, %v4409
    %v4413 = vadd.f32 %v4405, %v4409
    %v4415 = vsel %vm63, %v4285, 0
    %v4418 = vsel %vm63, %v4286, 0
    %v4421 = vsel %vm63, %v4287, 0
    %v4424 = vsel %vm63, %v4288, 0
    %4426 = vmatprep.subr.mxu0 0.0
    %4427 = vmatpush1.msra.mxu0 0.0
    %4428 = vmatprep.subr.mxu0 0.0
    %4429 = vmatpush1.msra.mxu0 0.0
    %4430 = vmatprep.subr.mxu0 0.0
    %4431 = vmatpush1.msra.mxu0 0.0
    %4432 = vmatprep.subr.mxu0 0.0
    %4433 = vmatpush1.msra.mxu0 0.0
    %4434 = vmatprep.subr.mxu0 0.0
    %4435 = vmatpush1.msra.mxu0 0.0
    %4436 = vmatprep.subr.mxu0 0.0
    %4437 = vmatpush1.msra.mxu0 0.0
    %4438 = vmatprep.subr.mxu0 0.0
    %4439 = vmatpush1.msra.mxu0 0.0
    %4440 = vmatprep.subr.mxu0 0.0
    %4441 = vmatpush1.msra.mxu0 0.0
    %4442 = vmatprep.subr.mxu0 0.0
    %4443 = vmatpush1.msra.mxu0 0.0
    %4444 = vmatprep.subr.mxu0 0.0
    %4445 = vmatpush1.msra.mxu0 0.0
    %4446 = vmatprep.subr.mxu0 0.0
    %4447 = vmatpush1.msra.mxu0 0.0
    %4448 = vmatprep.subr.mxu0 0.0
    %4449 = vmatpush1.msra.mxu0 0.0
    %4450 = vmatprep.subr.mxu0 0.0
    %4451 = vmatpush1.msra.mxu0 %v30
    %4452 = vmatprep.subr.mxu0 0.0
    %4453 = vmatpush1.msra.mxu0 %v29
    %4454 = vmatprep.subr.mxu0 0.0
    %4455 = vmatpush1.msra.mxu0 %v28
    %4456 = vmatprep.subr.mxu0 0.0
    %4457 = vmatpush1.msra.mxu0 %v27
    %4458 = vmatprep.subr.mxu0 0.0
    %4459 = vmatpush2.msra.mxu0 0.0
    %4460 = vmatprep.subr.mxu0 0.0
    %4461 = vmatpush2.msra.mxu0 0.0
    %4462 = vmatprep.subr.mxu0 0.0
    %4463 = vmatpush2.msra.mxu0 0.0
    %4464 = vmatprep.subr.mxu0 0.0
    %4465 = vmatpush2.msra.mxu0 0.0
    %4466 = vmatprep.subr.mxu0 0.0
    %4467 = vmatpush2.msra.mxu0 0.0
    %4468 = vmatprep.subr.mxu0 0.0
    %4469 = vmatpush2.msra.mxu0 0.0
    %4470 = vmatprep.subr.mxu0 0.0
    %4471 = vmatpush2.msra.mxu0 0.0
    %4472 = vmatprep.subr.mxu0 0.0
    %4473 = vmatpush2.msra.mxu0 0.0
    %4474 = vmatprep.subr.mxu0 0.0
    %4475 = vmatpush2.msra.mxu0 0.0
    %4476 = vmatprep.subr.mxu0 0.0
    %4477 = vmatpush2.msra.mxu0 0.0
    %4478 = vmatprep.subr.mxu0 0.0
    %4479 = vmatpush2.msra.mxu0 0.0
    %4480 = vmatprep.subr.mxu0 0.0
    %4481 = vmatpush2.msra.mxu0 0.0
    %4482 = vmatprep.subr.mxu0 0.0
    %4483 = vmatpush2.msra.mxu0 0.0
    %4484 = vmatprep.subr.mxu0 0.0
    %4485 = vmatpush2.msra.mxu0 0.0
    %4486 = vmatprep.subr.mxu0 0.0
    %4487 = vmatpush2.msra.mxu0 0.0
    %4488 = vmatprep.subr.mxu0 0.0
    %4489 = vmatpush2.msra.mxu0 0.0
    %4490 = vmatprep.mubr.f32.mxu0 0.0
    %4491 = vmatmul.mubr.f32.gmra.mxu0 %v4415
    %v4492 = vpop.f32.mrf.mxu0
    %v4493 = vadd.f32 0.0, %v4492
    %v4494 = vpop.f32.mrf.mxu0
    %4495 = vmatprep.mubr.f32.mxu0 0.0
    %4496 = vmatmul.mubr.f32.gmra.mxu0 %v4418
    %v4497 = vpop.f32.mrf.mxu0
    %v4498 = vadd.f32 0.0, %v4497
    %v4499 = vpop.f32.mrf.mxu0
    %4500 = vmatprep.mubr.f32.mxu0 0.0
    %4501 = vmatmul.mubr.f32.gmra.mxu0 %v4421
    %v4502 = vpop.f32.mrf.mxu0
    %v4503 = vadd.f32 0.0, %v4502
    %v4504 = vpop.f32.mrf.mxu0
    %4505 = vmatprep.mubr.f32.mxu0 0.0
    %4506 = vmatmul.mubr.f32.gmra.mxu0 %v4424
    %v4507 = vpop.f32.mrf.mxu0
    %v4508 = vadd.f32 0.0, %v4507
    %v4509 = vpop.f32.mrf.mxu0
    %4510 = vdwg.mxu0
    %vm4511 = vcmask 31744
    %4512 = vst.msk [vmem:[%s4] sm:$0xff] %vm4511, %v4493
    %4513 = vst.msk [vmem:[%s4 + $0x8] sm:$0xff] %vm4511, %v4498
    %4514 = vst.msk [vmem:[%s4 + $0x10] sm:$0xff] %vm4511, %v4503
    %4515 = vst.msk [vmem:[%s4 + $0x18] sm:$0xff] %vm4511, %v4508
    %v4516 = vmul.f32 %v4410, 0.3
    %v4517 = vmul.f32 %v4411, 0.3
    %v4518 = vmul.f32 %v4412, 0.3
    %v4519 = vmul.f32 %v4413, 0.3
    %v4520 = vadd.f32 %v3191, %v4516
    %v4521 = vadd.f32 %v3192, %v4517
    %v4522 = vadd.f32 %v3193, %v4518
    %v4523 = vadd.f32 %v3194, %v4519
    %4524 = vst.msk [vmem:[#allocation2] sm:$0xff] %vm63, %v4520
    %4525 = vst.msk [vmem:[#allocation2 + $0x8] sm:$0xff] %vm63, %v4521
    %4526 = vst.msk [vmem:[#allocation2 + $0x10] sm:$0xff] %vm63, %v4522
    %4527 = vst.msk [vmem:[#allocation2 + $0x18] sm:$0xff] %vm63, %v4523
    %v4529 = vsel %vm63, %v31, 0
    %4531 = vmatprep.subr.mxu0 0.0
    %4532 = vmatpush1.msra.mxu0 0.0
    %4533 = vmatprep.subr.mxu0 0.0
    %4534 = vmatpush1.msra.mxu0 0.0
    %4535 = vmatprep.subr.mxu0 0.0
    %4536 = vmatpush1.msra.mxu0 0.0
    %4537 = vmatprep.subr.mxu0 0.0
    %4538 = vmatpush1.msra.mxu0 0.0
    %4539 = vmatprep.subr.mxu0 0.0
    %4540 = vmatpush1.msra.mxu0 0.0
    %4541 = vmatprep.subr.mxu0 0.0
    %4542 = vmatpush1.msra.mxu0 0.0
    %4543 = vmatprep.subr.mxu0 0.0
    %4544 = vmatpush1.msra.mxu0 0.0
    %4545 = vmatprep.subr.mxu0 0.0
    %4546 = vmatpush1.msra.mxu0 0.0
    %4547 = vmatprep.subr.mxu0 0.0
    %4548 = vmatpush1.msra.mxu0 0.0
    %4549 = vmatprep.subr.mxu0 0.0
    %4550 = vmatpush1.msra.mxu0 0.0
    %4551 = vmatprep.subr.mxu0 0.0
    %4552 = vmatpush1.msra.mxu0 0.0
    %4553 = vmatprep.subr.mxu0 0.0
    %4554 = vmatpush1.msra.mxu0 0.0
    %4555 = vmatprep.subr.mxu0 0.0
    %4556 = vmatpush1.msra.mxu0 %v4413
    %4557 = vmatprep.subr.mxu0 0.0
    %4558 = vmatpush1.msra.mxu0 %v4412
    %4559 = vmatprep.subr.mxu0 0.0
    %4560 = vmatpush1.msra.mxu0 %v4411
    %4561 = vmatprep.subr.mxu0 0.0
    %4562 = vmatpush1.msra.mxu0 %v4410
    %4563 = vmatprep.subr.mxu0 0.0
    %4564 = vmatpush2.msra.mxu0 0.0
    %4565 = vmatprep.subr.mxu0 0.0
    %4566 = vmatpush2.msra.mxu0 0.0
    %4567 = vmatprep.subr.mxu0 0.0
    %4568 = vmatpush2.msra.mxu0 0.0
    %4569 = vmatprep.subr.mxu0 0.0
    %4570 = vmatpush2.msra.mxu0 0.0
    %4571 = vmatprep.subr.mxu0 0.0
    %4572 = vmatpush2.msra.mxu0 0.0
    %4573 = vmatprep.subr.mxu0 0.0
    %4574 = vmatpush2.msra.mxu0 0.0
    %4575 = vmatprep.subr.mxu0 0.0
    %4576 = vmatpush2.msra.mxu0 0.0
    %4577 = vmatprep.subr.mxu0 0.0
    %4578 = vmatpush2.msra.mxu0 0.0
    %4579 = vmatprep.subr.mxu0 0.0
    %4580 = vmatpush2.msra.mxu0 0.0
    %4581 = vmatprep.subr.mxu0 0.0
    %4582 = vmatpush2.msra.mxu0 0.0
    %4583 = vmatprep.subr.mxu0 0.0
    %4584 = vmatpush2.msra.mxu0 0.0
    %4585 = vmatprep.subr.mxu0 0.0
    %4586 = vmatpush2.msra.mxu0 0.0
    %4587 = vmatprep.subr.mxu0 0.0
    %4588 = vmatpush2.msra.mxu0 0.0
    %4589 = vmatprep.subr.mxu0 0.0
    %4590 = vmatpush2.msra.mxu0 0.0
    %4591 = vmatprep.subr.mxu0 0.0
    %4592 = vmatpush2.msra.mxu0 0.0
    %4593 = vmatprep.subr.mxu0 0.0
    %4594 = vmatpush2.msra.mxu0 0.0
    %4595 = vmatprep.mubr.f32.mxu0 0.0
    %4596 = vmatmul.mubr.f32.gmra.mxu0 %v4529
    %v4597 = vpop.f32.mrf.mxu0
    %v4598 = vadd.f32 0.0, %v4597
    %v4599 = vpop.f32.mrf.mxu0
    %4600 = vdwg.mxu0
    %4601 = vmatprep.subr.mxu0 0.0
    %4602 = vmatpush1.msra.mxu0 0.0
    %4603 = vmatprep.subr.mxu0 0.0
    %4604 = vmatpush1.msra.mxu0 0.0
    %4605 = vmatprep.subr.mxu0 0.0
    %4606 = vmatpush1.msra.mxu0 0.0
    %4607 = vmatprep.subr.mxu0 0.0
    %4608 = vmatpush1.msra.mxu0 0.0
    %4609 = vmatprep.subr.mxu0 0.0
    %4610 = vmatpush1.msra.mxu0 0.0
    %4611 = vmatprep.subr.mxu0 0.0
    %4612 = vmatpush1.msra.mxu0 0.0
    %4613 = vmatprep.subr.mxu0 0.0
    %4614 = vmatpush1.msra.mxu0 0.0
    %4615 = vmatprep.subr.mxu0 0.0
    %4616 = vmatpush1.msra.mxu0 0.0
    %4617 = vmatprep.subr.mxu0 0.0
    %4618 = vmatpush1.msra.mxu0 0.0
    %4619 = vmatprep.subr.mxu0 0.0
    %4620 = vmatpush1.msra.mxu0 0.0
    %4621 = vmatprep.subr.mxu0 0.0
    %4622 = vmatpush1.msra.mxu0 0.0
    %4623 = vmatprep.subr.mxu0 0.0
    %4624 = vmatpush1.msra.mxu0 0.0
    %4625 = vmatprep.subr.mxu0 0.0
    %4626 = vmatpush1.msra.mxu0 %v3194
    %4627 = vmatprep.subr.mxu0 0.0
    %4628 = vmatpush1.msra.mxu0 %v3193
    %4629 = vmatprep.subr.mxu0 0.0
    %4630 = vmatpush1.msra.mxu0 %v3192
    %4631 = vmatprep.subr.mxu0 0.0
    %4632 = vmatpush1.msra.mxu0 %v3191
    %4633 = vmatprep.subr.mxu0 0.0
    %4634 = vmatpush2.msra.mxu0 0.0
    %4635 = vmatprep.subr.mxu0 0.0
    %4636 = vmatpush2.msra.mxu0 0.0
    %4637 = vmatprep.subr.mxu0 0.0
    %4638 = vmatpush2.msra.mxu0 0.0
    %4639 = vmatprep.subr.mxu0 0.0
    %4640 = vmatpush2.msra.mxu0 0.0
    %4641 = vmatprep.subr.mxu0 0.0
    %4642 = vmatpush2.msra.mxu0 0.0
    %4643 = vmatprep.subr.mxu0 0.0
    %4644 = vmatpush2.msra.mxu0 0.0
    %4645 = vmatprep.subr.mxu0 0.0
    %4646 = vmatpush2.msra.mxu0 0.0
    %4647 = vmatprep.subr.mxu0 0.0
    %4648 = vmatpush2.msra.mxu0 0.0
    %4649 = vmatprep.subr.mxu0 0.0
    %4650 = vmatpush2.msra.mxu0 0.0
    %4651 = vmatprep.subr.mxu0 0.0
    %4652 = vmatpush2.msra.mxu0 0.0
    %4653 = vmatprep.subr.mxu0 0.0
    %4654 = vmatpush2.msra.mxu0 0.0
    %4655 = vmatprep.subr.mxu0 0.0
    %4656 = vmatpush2.msra.mxu0 0.0
    %4657 = vmatprep.subr.mxu0 0.0
    %4658 = vmatpush2.msra.mxu0 0.0
    %4659 = vmatprep.subr.mxu0 0.0
    %4660 = vmatpush2.msra.mxu0 0.0
    %4661 = vmatprep.subr.mxu0 0.0
    %4662 = vmatpush2.msra.mxu0 0.0
    %4663 = vmatprep.subr.mxu0 0.0
    %4664 = vmatpush2.msra.mxu0 0.0
    %4665 = vmatprep.mubr.f32.mxu0 0.0
    %4666 = vmatmul.mubr.f32.gmra.mxu0 %v4529
    %v4667 = vpop.f32.mrf.mxu0
    %v4668 = vadd.f32 0.0, %v4667
    %v4669 = vpop.f32.mrf.mxu0
    %4670 = vdwg.mxu0
    %v4671 = vld [vmem:[%s2 + $0xc0] sm:$0xff]
    %v4672 = vld [vmem:[%s2 + $0xc8] sm:$0xff]
    %v4673 = vld [vmem:[%s2 + $0xd0] sm:$0xff]
    %v4674 = vld [vmem:[%s2 + $0xd8] sm:$0xff]
    %v4675 = vld [vmem:[%s2 + $0xe0] sm:$0xff]
    %v4676 = vld [vmem:[%s2 + $0xe8] sm:$0xff]
    %v4677 = vld [vmem:[%s2 + $0xf0] sm:$0xff]
    %v4678 = vld [vmem:[%s2 + $0xf8] sm:$0xff]
    %v4680 = vsel %vm63, %v4668, 0
    %4682 = vmatprep.subr.mxu0 0.0
    %4683 = vmatpush1.msra.mxu0 0.0
    %4684 = vmatprep.subr.mxu0 0.0
    %4685 = vmatpush1.msra.mxu0 0.0
    %4686 = vmatprep.subr.mxu0 0.0
    %4687 = vmatpush1.msra.mxu0 0.0
    %4688 = vmatprep.subr.mxu0 0.0
    %4689 = vmatpush1.msra.mxu0 0.0
    %4690 = vmatprep.subr.mxu0 0.0
    %4691 = vmatpush1.msra.mxu0 0.0
    %4692 = vmatprep.subr.mxu0 0.0
    %4693 = vmatpush1.msra.mxu0 0.0
    %4694 = vmatprep.subr.mxu0 0.0
    %4695 = vmatpush1.msra.mxu0 0.0
    %4696 = vmatprep.subr.mxu0 0.0
    %4697 = vmatpush1.msra.mxu0 0.0
    %4698 = vmatprep.subr.mxu0 0.0
    %4699 = vmatpush1.msra.mxu0 0.0
    %4700 = vmatprep.subr.mxu0 0.0
    %4701 = vmatpush1.msra.mxu0 0.0
    %4702 = vmatprep.subr.mxu0 0.0
    %4703 = vmatpush1.msra.mxu0 0.0
    %4704 = vmatprep.subr.mxu0 0.0
    %4705 = vmatpush1.msra.mxu0 0.0
    %4706 = vmatprep.subr.mxu0 0.0
    %4707 = vmatpush1.msra.mxu0 %v4678
    %4708 = vmatprep.subr.mxu0 0.0
    %4709 = vmatpush1.msra.mxu0 %v4677
    %4710 = vmatprep.subr.mxu0 0.0
    %4711 = vmatpush1.msra.mxu0 %v4676
    %4712 = vmatprep.subr.mxu0 0.0
    %4713 = vmatpush1.msra.mxu0 %v4675
    %4714 = vmatprep.subr.mxu0 0.0
    %4715 = vmatpush2.msra.mxu0 0.0
    %4716 = vmatprep.subr.mxu0 0.0
    %4717 = vmatpush2.msra.mxu0 0.0
    %4718 = vmatprep.subr.mxu0 0.0
    %4719 = vmatpush2.msra.mxu0 0.0
    %4720 = vmatprep.subr.mxu0 0.0
    %4721 = vmatpush2.msra.mxu0 0.0
    %4722 = vmatprep.subr.mxu0 0.0
    %4723 = vmatpush2.msra.mxu0 0.0
    %4724 = vmatprep.subr.mxu0 0.0
    %4725 = vmatpush2.msra.mxu0 0.0
    %4726 = vmatprep.subr.mxu0 0.0
    %4727 = vmatpush2.msra.mxu0 0.0
    %4728 = vmatprep.subr.mxu0 0.0
    %4729 = vmatpush2.msra.mxu0 0.0
    %4730 = vmatprep.subr.mxu0 0.0
    %4731 = vmatpush2.msra.mxu0 0.0
    %4732 = vmatprep.subr.mxu0 0.0
    %4733 = vmatpush2.msra.mxu0 0.0
    %4734 = vmatprep.subr.mxu0 0.0
    %4735 = vmatpush2.msra.mxu0 0.0
    %4736 = vmatprep.subr.mxu0 0.0
    %4737 = vmatpush2.msra.mxu0 0.0
    %4738 = vmatprep.subr.mxu0 0.0
    %4739 = vmatpush2.msra.mxu0 0.0
    %4740 = vmatprep.subr.mxu0 0.0
    %4741 = vmatpush2.msra.mxu0 0.0
    %4742 = vmatprep.subr.mxu0 0.0
    %4743 = vmatpush2.msra.mxu0 0.0
    %4744 = vmatprep.subr.mxu0 0.0
    %4745 = vmatpush2.msra.mxu0 0.0
    %4746 = vmatprep.mubr.f32.mxu0 0.0
    %4747 = vmatmul.mubr.f32.gmra.mxu0 %v4680
    %v4748 = vpop.f32.mrf.mxu0
    %v4749 = vadd.f32 0.0, %v4748
    %v4750 = vpop.f32.mrf.mxu0
    %4751 = vdwg.mxu0
    %v4753 = vsel %vm63, %v4598, 0
    %4755 = vmatprep.subr.mxu0 0.0
    %4756 = vmatpush1.msra.mxu0 0.0
    %4757 = vmatprep.subr.mxu0 0.0
    %4758 = vmatpush1.msra.mxu0 0.0
    %4759 = vmatprep.subr.mxu0 0.0
    %4760 = vmatpush1.msra.mxu0 0.0
    %4761 = vmatprep.subr.mxu0 0.0
    %4762 = vmatpush1.msra.mxu0 0.0
    %4763 = vmatprep.subr.mxu0 0.0
    %4764 = vmatpush1.msra.mxu0 0.0
    %4765 = vmatprep.subr.mxu0 0.0
    %4766 = vmatpush1.msra.mxu0 0.0
    %4767 = vmatprep.subr.mxu0 0.0
    %4768 = vmatpush1.msra.mxu0 0.0
    %4769 = vmatprep.subr.mxu0 0.0
    %4770 = vmatpush1.msra.mxu0 0.0
    %4771 = vmatprep.subr.mxu0 0.0
    %4772 = vmatpush1.msra.mxu0 0.0
    %4773 = vmatprep.subr.mxu0 0.0
    %4774 = vmatpush1.msra.mxu0 0.0
    %4775 = vmatprep.subr.mxu0 0.0
    %4776 = vmatpush1.msra.mxu0 0.0
    %4777 = vmatprep.subr.mxu0 0.0
    %4778 = vmatpush1.msra.mxu0 0.0
    %4779 = vmatprep.subr.mxu0 0.0
    %4780 = vmatpush1.msra.mxu0 %v4674
    %4781 = vmatprep.subr.mxu0 0.0
    %4782 = vmatpush1.msra.mxu0 %v4673
    %4783 = vmatprep.subr.mxu0 0.0
    %4784 = vmatpush1.msra.mxu0 %v4672
    %4785 = vmatprep.subr.mxu0 0.0
    %4786 = vmatpush1.msra.mxu0 %v4671
    %4787 = vmatprep.subr.mxu0 0.0
    %4788 = vmatpush2.msra.mxu0 0.0
    %4789 = vmatprep.subr.mxu0 0.0
    %4790 = vmatpush2.msra.mxu0 0.0
    %4791 = vmatprep.subr.mxu0 0.0
    %4792 = vmatpush2.msra.mxu0 0.0
    %4793 = vmatprep.subr.mxu0 0.0
    %4794 = vmatpush2.msra.mxu0 0.0
    %4795 = vmatprep.subr.mxu0 0.0
    %4796 = vmatpush2.msra.mxu0 0.0
    %4797 = vmatprep.subr.mxu0 0.0
    %4798 = vmatpush2.msra.mxu0 0.0
    %4799 = vmatprep.subr.mxu0 0.0
    %4800 = vmatpush2.msra.mxu0 0.0
    %4801 = vmatprep.subr.mxu0 0.0
    %4802 = vmatpush2.msra.mxu0 0.0
    %4803 = vmatprep.subr.mxu0 0.0
    %4804 = vmatpush2.msra.mxu0 0.0
    %4805 = vmatprep.subr.mxu0 0.0
    %4806 = vmatpush2.msra.mxu0 0.0
    %4807 = vmatprep.subr.mxu0 0.0
    %4808 = vmatpush2.msra.mxu0 0.0
    %4809 = vmatprep.subr.mxu0 0.0
    %4810 = vmatpush2.msra.mxu0 0.0
    %4811 = vmatprep.subr.mxu0 0.0
    %4812 = vmatpush2.msra.mxu0 0.0
    %4813 = vmatprep.subr.mxu0 0.0
    %4814 = vmatpush2.msra.mxu0 0.0
    %4815 = vmatprep.subr.mxu0 0.0
    %4816 = vmatpush2.msra.mxu0 0.0
    %4817 = vmatprep.subr.mxu0 0.0
    %4818 = vmatpush2.msra.mxu0 0.0
    %4819 = vmatprep.mubr.f32.mxu0 0.0
    %4820 = vmatmul.mubr.f32.gmra.mxu0 %v4753
    %v4821 = vpop.f32.mrf.mxu0
    %v4822 = vadd.f32 %v4749, %v4821
    %v4823 = vpop.f32.mrf.mxu0
    %4824 = vdwg.mxu0
    %v4825 = vld [vmem:[%s2 + $0x1ab] sm:$0x1]
    %v4826 = vlaneseq
    %v4827 = vshrl.u32 %v4826, 7
    %v4828 = vsub.s32 0, %v4827
    %v4829 = vrot.slane %v4825, %v4828
    %v4830 = vadd.f32 %v4822, %v4829
    %v4831 = vmax.f32 %v4830, 0.0
    %v4832 = vld [vmem:[%s2 + $0x100] sm:$0xff]
    %v4833 = vld [vmem:[%s2 + $0x108] sm:$0xff]
    %v4834 = vld [vmem:[%s2 + $0x110] sm:$0xff]
    %v4835 = vld [vmem:[%s2 + $0x118] sm:$0xff]
    %v4836 = vld [vmem:[%s2 + $0x120] sm:$0xff]
    %v4837 = vld [vmem:[%s2 + $0x128] sm:$0xff]
    %v4838 = vld [vmem:[%s2 + $0x1ac] sm:$0x1]
    %v4839 = vlaneseq
    %v4840 = vshrl.u32 %v4839, 7
    %v4841 = vsub.s32 0, %v4840
    %v4842 = vrot.slane %v4838, %v4841
    %vm4843 = vcmask 392192
    %v4845 = vsel %vm4843, %v4831, 0
    %4847 = vmatprep.subr.mxu0 0.0
    %4848 = vmatpush1.msra.mxu0 0.0
    %4849 = vmatprep.subr.mxu0 0.0
    %4850 = vmatpush1.msra.mxu0 0.0
    %4851 = vmatprep.subr.mxu0 0.0
    %4852 = vmatpush1.msra.mxu0 0.0
    %4853 = vmatprep.subr.mxu0 0.0
    %4854 = vmatpush1.msra.mxu0 0.0
    %4855 = vmatprep.subr.mxu0 0.0
    %4856 = vmatpush1.msra.mxu0 0.0
    %4857 = vmatprep.subr.mxu0 0.0
    %4858 = vmatpush1.msra.mxu0 0.0
    %4859 = vmatprep.subr.mxu0 0.0
    %4860 = vmatpush1.msra.mxu0 0.0
    %4861 = vmatprep.subr.mxu0 0.0
    %4862 = vmatpush1.msra.mxu0 0.0
    %4863 = vmatprep.subr.mxu0 0.0
    %4864 = vmatpush1.msra.mxu0 0.0
    %4865 = vmatprep.subr.mxu0 0.0
    %4866 = vmatpush1.msra.mxu0 0.0
    %4867 = vmatprep.subr.mxu0 0.0
    %4868 = vmatpush1.msra.mxu0 %v4837
    %4869 = vmatprep.subr.mxu0 0.0
    %4870 = vmatpush1.msra.mxu0 %v4836
    %4871 = vmatprep.subr.mxu0 0.0
    %4872 = vmatpush1.msra.mxu0 %v4835
    %4873 = vmatprep.subr.mxu0 0.0
    %4874 = vmatpush1.msra.mxu0 %v4834
    %4875 = vmatprep.subr.mxu0 0.0
    %4876 = vmatpush1.msra.mxu0 %v4833
    %4877 = vmatprep.subr.mxu0 0.0
    %4878 = vmatpush1.msra.mxu0 %v4832
    %4879 = vmatprep.subr.mxu0 0.0
    %4880 = vmatpush2.msra.mxu0 0.0
    %4881 = vmatprep.subr.mxu0 0.0
    %4882 = vmatpush2.msra.mxu0 0.0
    %4883 = vmatprep.subr.mxu0 0.0
    %4884 = vmatpush2.msra.mxu0 0.0
    %4885 = vmatprep.subr.mxu0 0.0
    %4886 = vmatpush2.msra.mxu0 0.0
    %4887 = vmatprep.subr.mxu0 0.0
    %4888 = vmatpush2.msra.mxu0 0.0
    %4889 = vmatprep.subr.mxu0 0.0
    %4890 = vmatpush2.msra.mxu0 0.0
    %4891 = vmatprep.subr.mxu0 0.0
    %4892 = vmatpush2.msra.mxu0 0.0
    %4893 = vmatprep.subr.mxu0 0.0
    %4894 = vmatpush2.msra.mxu0 0.0
    %4895 = vmatprep.subr.mxu0 0.0
    %4896 = vmatpush2.msra.mxu0 0.0
    %4897 = vmatprep.subr.mxu0 0.0
    %4898 = vmatpush2.msra.mxu0 0.0
    %4899 = vmatprep.subr.mxu0 0.0
    %4900 = vmatpush2.msra.mxu0 0.0
    %4901 = vmatprep.subr.mxu0 0.0
    %4902 = vmatpush2.msra.mxu0 0.0
    %4903 = vmatprep.subr.mxu0 0.0
    %4904 = vmatpush2.msra.mxu0 0.0
    %4905 = vmatprep.subr.mxu0 0.0
    %4906 = vmatpush2.msra.mxu0 0.0
    %4907 = vmatprep.subr.mxu0 0.0
    %4908 = vmatpush2.msra.mxu0 0.0
    %4909 = vmatprep.subr.mxu0 0.0
    %4910 = vmatpush2.msra.mxu0 0.0
    %4911 = vmatprep.mubr.f32.mxu0 0.0
    %4912 = vmatmul.mubr.f32.gmra.mxu0 %v4845
    %v4913 = vpop.f32.mrf.mxu0
    %v4914 = vadd.f32 %v4842, %v4913
    %v4915 = vpop.f32.mrf.mxu0
    %4916 = vdwg.mxu0
    %vm4917 = vcmask 44032
    %4918 = vst.msk [vmem:[#allocation4] sm:$0xf] %vm4917, %v4914
    // Predicated region
    $region14: #{tpu_custom_call.1} parent=1 // pred_check
      _
    $region15: #{tpu_custom_call.1} parent=1 // pred_check_branch
      %4920 = sbr.rel (0) target = $region17
    $region16: #{tpu_custom_call.1} parent=1 // pred_region
      %s4922 = ssub.s32 512, 512
      %4923 = vsyncadd [#allocation3], %s4922
      %s4924 = sshll.u32 [#allocation2], 4
      %s4925 = int_to_ptr.vmem [resolvable:$true] %s4924
      %4930 = dma.vmem_to_hbm [thread:$0]  %s4925, 512, %s3, [#allocation3], 128, 128, 8
    $region17: #{tpu_custom_call.1} parent=1 // pred_fallthru
      _
    // Predicated region
    $region18: #{tpu_custom_call.1} parent=1 // pred_check
      _
    $region19: #{tpu_custom_call.1} parent=1 // pred_check_branch
      %4932 = sbr.rel (0) target = $region21
    $region20: #{tpu_custom_call.1} parent=1 // pred_region
      _
    $region21: #{tpu_custom_call.1} parent=1 // pred_fallthru
      _
    // Predicated region
    $region22: #{tpu_custom_call.1} parent=1 // pred_check
      _
    $region23: #{tpu_custom_call.1} parent=1 // pred_check_branch
      %4934 = sbr.rel (0) target = $region25
    $region24: #{tpu_custom_call.1} parent=1 // pred_region
      %s4936 = ssub.s32 64, 64
      %4937 = vsyncadd [#allocation5], %s4936
      %s4939 = sshll.u32 [#allocation4], 4
      %s4940 = int_to_ptr.vmem [resolvable:$true] %s4939
      %4942 = dma.vmem_to_hbm [thread:$0]  %s4940, 64, %s5, [#allocation5]
    $region25: #{tpu_custom_call.1} parent=1 // pred_fallthru
      _
    // Predicated region
    $region26: #{tpu_custom_call.1} parent=1 // pred_check
      _
    $region27: #{tpu_custom_call.1} parent=1 // pred_check_branch
      %4944 = sbr.rel (0) target = $region29
    $region28: #{tpu_custom_call.1} parent=1 // pred_region
      %4945 = dma.done [#allocation3], 512
    $region29: #{tpu_custom_call.1} parent=1 // pred_fallthru
      _
    // Predicated region
    $region30: #{tpu_custom_call.1} parent=1 // pred_check
      _
    $region31: #{tpu_custom_call.1} parent=1 // pred_check_branch
      %4947 = sbr.rel (0) target = $region33
    $region32: #{tpu_custom_call.1} parent=1 // pred_region
      _
    $region33: #{tpu_custom_call.1} parent=1 // pred_fallthru
      _
    // Predicated region
    $region34: #{tpu_custom_call.1} parent=1 // pred_check
      _
    $region35: #{tpu_custom_call.1} parent=1 // pred_check_branch
      %4949 = sbr.rel (0) target = $region37
    $region36: #{tpu_custom_call.1} parent=1 // pred_region
      %4950 = dma.done [#allocation5], 64
    $region37: #{tpu_custom_call.1} parent=1 // pred_fallthru
      _
    %4951 = vsyncpa [#allocation3], 1
    %4952 = vsyncpa [#allocation5], 1

</llo_original>
